<compile_context>
chip_gen: v6e
topology: v6e:2x2x1
jax: 0.10.0
libtpu: 0.0.40
codegen_flags: <defaults>
</compile_context>

<pallas_src>
import functools

import jax
import jax.numpy as jnp
import numpy as np
from jax.experimental import pallas as pl
from jax.experimental.pallas import tpu as pltpu


def nonlocal_dilation_pallas(x, wk, wq, wv, wt, *, kernel_size, dilation, padding):
    """x: (B, C, H, W) NCHW.  wk/wq/wv: (C, O).  wt: (O, C)."""
    B, C, H, W = x.shape
    O = wk.shape[1]
    KS, D, P = kernel_size, dilation, padding
    assert 2 * P == D * (KS - 1), "unfold output grid must equal H x W (stride=1)"
    Hp, Wp = H + 2 * P, W + 2 * P
    offs = [(i * D, j * D) for i in range(KS) for j in range(KS)]  # torch unfold order

    # Fused head weight, rows ordered [K; V; Q]: (3*O, C).  Tail weight: (O, C).
    w_kqv = jnp.concatenate([wk.T, wv.T, wq.T], axis=0).astype(jnp.float32)
    wt_m = wt.astype(jnp.float32)

    def kernel(x_ref, w_ref, wt_ref, o_ref, kv_pad_s):
        def tree(op, xs):   # balanced reduction -> independent partials
            xs = list(xs)
            while len(xs) > 1:
                nxt = [op(xs[i], xs[i + 1]) for i in range(0, len(xs) - 1, 2)]
                if len(xs) % 2:
                    nxt.append(xs[-1])
                xs = nxt
            return xs[0]

        def edge_pad2d(p):  # (H, W) -> (Hp, Wp) replicate padding, in registers
            if P == 0:
                return p
            lcol = jnp.broadcast_to(p[:, :1], (H, P))
            rcol = jnp.broadcast_to(p[:, W - 1:], (H, P))
            pw = jnp.concatenate([lcol, p, rcol], axis=1)        # (H, Wp)
            trow = jnp.broadcast_to(pw[:1, :], (P, Wp))
            brow = jnp.broadcast_to(pw[H - 1:, :], (P, Wp))
            return jnp.concatenate([trow, pw, brow], axis=0)     # (Hp, Wp)

        # Input channel planes (W on lanes), reused by all 3*O head channels.
        x_planes = [x_ref[0, c].astype(jnp.float32) for c in range(C)]

        def head_plane(row):   # relu(sum_c w[row, c] * x[c])  -- pure VPU FMAs
            acc = tree(jnp.add, [w_ref[row, c] * x_planes[c] for c in range(C)])
            return jnp.maximum(acc, 0.0)

        # K / V: replicate-pad and park in VMEM scratch (windows sliced later).
        for o in range(O):
            kv_pad_s[o] = edge_pad2d(head_plane(o))              # K_pad[o]
        for o in range(O):
            kv_pad_s[O + o] = edge_pad2d(head_plane(O + o))      # V_pad[o]
        # Q stays as live (H, W) values.
        q_pl = [head_plane(2 * O + o) for o in range(O)]

        # logits[k] = sum_c K_pad[c][dy:dy+H, dx:dx+W] * Q[c]     (pure VPU)
        logits = [
            tree(jnp.add,
                 [kv_pad_s[o, dy:dy + H, dx:dx + W] * q_pl[o] for o in range(O)])
            for (dy, dx) in offs
        ]

        # softmax over the k*k neighbor axis (EUP exp + approx reciprocal).
        m = tree(jnp.maximum, logits)
        exps = [jnp.exp(l - m) for l in logits]
        denom = tree(jnp.add, exps)
        inv = pl.reciprocal(denom, approx=True)
        attn = [e * inv for e in exps]

        # out[o] = sum_k V_pad[o][shift_k] * A[k]                 (pure VPU)
        out_pl = [
            tree(jnp.add,
                 [kv_pad_s[O + o, dy:dy + H, dx:dx + W] * attn[k]
                  for k, (dy, dx) in enumerate(offs)])
            for o in range(O)
        ]

        # tail 1x1 conv + residual: y[c] = sum_o wt[o, c] * out[o] + x[c]
        for c in range(C):
            acc = tree(jnp.add, [wt_ref[o, c] * out_pl[o] for o in range(O)])
            o_ref[0, c] = (acc + x_ref[0, c]).astype(o_ref.dtype)

    out = pl.pallas_call(
        kernel,
        out_shape=jax.ShapeDtypeStruct((B, C, H, W), x.dtype),
        grid_spec=pltpu.PrefetchScalarGridSpec(
            num_scalar_prefetch=0,
            grid=(B,),
            in_specs=[
                pl.BlockSpec((1, C, H, W), lambda b: (b, 0, 0, 0)),
                pl.BlockSpec(memory_space=pltpu.MemorySpace.SMEM),   # fused K/V/Q weights
                pl.BlockSpec(memory_space=pltpu.MemorySpace.SMEM),   # tail weights
            ],
            out_specs=pl.BlockSpec((1, C, H, W), lambda b: (b, 0, 0, 0)),
            scratch_shapes=[
                pltpu.VMEM((2 * O, Hp, Wp), jnp.float32),            # padded K / V planes
            ],
        ),
        compiler_params=pltpu.CompilerParams(
            dimension_semantics=("parallel",),
        ),
    )(x, w_kqv, wt_m)
    return out


def nonlocal_dilation_ref(x, wk, wq, wv, wt, *, kernel_size, dilation, padding):
    """Pure-JAX NCHW reference mirroring the PyTorch forward exactly."""
    B, C, H, W = x.shape
    KS, D, P = kernel_size, dilation, padding

    def conv1x1(inp, w):  # w: (Cin, Cout)
        return jnp.einsum("bchw,co->bohw", inp, w)

    K = jnp.maximum(conv1x1(x, wk), 0.0)
    Q = jnp.maximum(conv1x1(x, wq), 0.0)
    V = jnp.maximum(conv1x1(x, wv), 0.0)

    def pad_unfold(t):  # (B, O, H, W) -> (B, O, k*k, H, W)
        tp = jnp.pad(t, ((0, 0), (0, 0), (P, P), (P, P)), mode="edge")
        patches = []
        for i in range(KS):
            for j in range(KS):
                patches.append(tp[:, :, i * D:i * D + H, j * D:j * D + W])
        return jnp.stack(patches, axis=2)

    Ku = pad_unfold(K)
    Vu = pad_unfold(V)
    A = jnp.einsum("bckhw,bchw->bkhw", Ku, Q)
    A = jax.nn.softmax(A, axis=1)
    out = jnp.einsum("bckhw,bkhw->bchw", Vu, A)
    y = jnp.einsum("bohw,oc->bchw", out, wt) + x
    return y


if __name__ == "__main__":
    # Small shapes consistent with the module (exercising dilation > 1).
    B, C, H, W = 2, 4, 16, 16
    O = 8
    kernel_size, dilation = 3, 2
    padding = dilation * (kernel_size - 1) // 2  # = 2, keeps unfold grid == HxW

    key = jax.random.PRNGKey(0)
    kx, kk_, kq_, kv_, kt_ = jax.random.split(key, 5)
    x = jax.random.normal(kx, (B, C, H, W), jnp.float32)
    # Deterministic weight init (shapes match the torch 1x1 convs, bias=False).
    wk = jax.random.normal(kk_, (C, O), jnp.float32) * 0.2
    wq = jax.random.normal(kq_, (C, O), jnp.float32) * 0.2
    wv = jax.random.normal(kv_, (C, O), jnp.float32) * 0.2
    wt = jax.random.normal(kt_, (O, C), jnp.float32) * 0.2

    fn = functools.partial(nonlocal_dilation_pallas,
                           kernel_size=kernel_size, dilation=dilation,
                           padding=padding)
    y = jax.jit(fn)(x, wk, wq, wv, wt)
    y = jax.block_until_ready(y)

    y_ref = nonlocal_dilation_ref(x, wk, wq, wv, wt,
                                  kernel_size=kernel_size, dilation=dilation,
                                  padding=padding)
    # approx=True reciprocal introduces ~1e-4-level drift vs the f32 reference.
    np.testing.assert_allclose(np.asarray(y), np.asarray(y_ref),
                               rtol=2e-3, atol=2e-3)
    print("KERNEL_OK")
</pallas_src>

<mosaic_0001>
module attributes {stable_mosaic.version = 11 : i64} {
  func.func @kernel(%arg0: i32, %arg1: memref<1x4x16x16xf32, #tpu.memory_space<vmem>>, %arg2: memref<24x4xf32, #tpu.memory_space<smem>>, %arg3: memref<8x4xf32, #tpu.memory_space<smem>>, %arg4: memref<1x4x16x16xf32, #tpu.memory_space<vmem>>, %arg5: memref<16x20x20xf32, #tpu.memory_space<vmem>>) attributes {dimension_semantics = [#tpu.dimension_semantics<parallel>], iteration_bounds = array<i64: 2>, scalar_prefetch = 0 : i64, scratch_operands = 1 : i64, tpu.core_type = #tpu.core_type<tc>, window_params = [{transform_indices = @transform_0, window_bounds = array<i64: 1, 4, 16, 16>}, {transform_indices = @transform_1, window_bounds = array<i64: 24, 4>}, {transform_indices = @transform_2, window_bounds = array<i64: 8, 4>}, {transform_indices = @transform_3, window_bounds = array<i64: 1, 4, 16, 16>}]} {
    %c0 = arith.constant 0 : index
    %c0_0 = arith.constant 0 : index
    %c0_1 = arith.constant 0 : index
    %c0_2 = arith.constant 0 : index
    %0 = vector.load %arg1[%c0, %c0_0, %c0_1, %c0_2] : memref<1x4x16x16xf32, #tpu.memory_space<vmem>>, vector<1x1x16x16xf32>
    %1 = vector.shape_cast %0 : vector<1x1x16x16xf32> to vector<16x16xf32>
    %c0_3 = arith.constant 0 : index
    %c1 = arith.constant 1 : index
    %c0_4 = arith.constant 0 : index
    %c0_5 = arith.constant 0 : index
    %2 = vector.load %arg1[%c0_3, %c1, %c0_4, %c0_5] : memref<1x4x16x16xf32, #tpu.memory_space<vmem>>, vector<1x1x16x16xf32>
    %3 = vector.shape_cast %2 : vector<1x1x16x16xf32> to vector<16x16xf32>
    %c0_6 = arith.constant 0 : index
    %c2 = arith.constant 2 : index
    %c0_7 = arith.constant 0 : index
    %c0_8 = arith.constant 0 : index
    %4 = vector.load %arg1[%c0_6, %c2, %c0_7, %c0_8] : memref<1x4x16x16xf32, #tpu.memory_space<vmem>>, vector<1x1x16x16xf32>
    %5 = vector.shape_cast %4 : vector<1x1x16x16xf32> to vector<16x16xf32>
    %c0_9 = arith.constant 0 : index
    %c3 = arith.constant 3 : index
    %c0_10 = arith.constant 0 : index
    %c0_11 = arith.constant 0 : index
    %6 = vector.load %arg1[%c0_9, %c3, %c0_10, %c0_11] : memref<1x4x16x16xf32, #tpu.memory_space<vmem>>, vector<1x1x16x16xf32>
    %7 = vector.shape_cast %6 : vector<1x1x16x16xf32> to vector<16x16xf32>
    %c0_12 = arith.constant 0 : index
    %c0_13 = arith.constant 0 : index
    %8 = memref.load %arg2[%c0_12, %c0_13] : memref<24x4xf32, #tpu.memory_space<smem>>
    %9 = vector.broadcast %8 : f32 to vector<16x16xf32>
    %10 = arith.mulf %9, %1 : vector<16x16xf32>
    %c0_14 = arith.constant 0 : index
    %c1_15 = arith.constant 1 : index
    %11 = memref.load %arg2[%c0_14, %c1_15] : memref<24x4xf32, #tpu.memory_space<smem>>
    %12 = vector.broadcast %11 : f32 to vector<16x16xf32>
    %13 = arith.mulf %12, %3 : vector<16x16xf32>
    %c0_16 = arith.constant 0 : index
    %c2_17 = arith.constant 2 : index
    %14 = memref.load %arg2[%c0_16, %c2_17] : memref<24x4xf32, #tpu.memory_space<smem>>
    %15 = vector.broadcast %14 : f32 to vector<16x16xf32>
    %16 = arith.mulf %15, %5 : vector<16x16xf32>
    %c0_18 = arith.constant 0 : index
    %c3_19 = arith.constant 3 : index
    %17 = memref.load %arg2[%c0_18, %c3_19] : memref<24x4xf32, #tpu.memory_space<smem>>
    %18 = vector.broadcast %17 : f32 to vector<16x16xf32>
    %19 = arith.mulf %18, %7 : vector<16x16xf32>
    %20 = arith.addf %10, %13 : vector<16x16xf32>
    %21 = arith.addf %16, %19 : vector<16x16xf32>
    %22 = arith.addf %20, %21 : vector<16x16xf32>
    %cst = arith.constant 0.000000e+00 : f32
    %23 = vector.broadcast %cst : f32 to vector<16x16xf32>
    %24 = arith.maximumf %22, %23 : vector<16x16xf32>
    %25 = vector.extract_strided_slice %24 {offsets = [0, 0], sizes = [16, 1], strides = [1, 1]} : vector<16x16xf32> to vector<16x1xf32>
    %26 = vector.shape_cast %25 : vector<16x1xf32> to vector<16x1xf32>
    %27 = vector.broadcast %26 : vector<16x1xf32> to vector<16x2xf32>
    %28 = vector.extract_strided_slice %24 {offsets = [0, 15], sizes = [16, 1], strides = [1, 1]} : vector<16x16xf32> to vector<16x1xf32>
    %29 = vector.shape_cast %28 : vector<16x1xf32> to vector<16x1xf32>
    %30 = vector.broadcast %29 : vector<16x1xf32> to vector<16x2xf32>
    %31 = tpu.concatenate %27, %24, %30 in 1 : vector<16x2xf32>, vector<16x16xf32>, vector<16x2xf32> -> vector<16x20xf32>
    %32 = vector.extract_strided_slice %31 {offsets = [0, 0], sizes = [1, 20], strides = [1, 1]} : vector<16x20xf32> to vector<1x20xf32>
    %33 = vector.shape_cast %32 : vector<1x20xf32> to vector<1x20xf32>
    %34 = vector.broadcast %33 : vector<1x20xf32> to vector<2x20xf32>
    %35 = vector.extract_strided_slice %31 {offsets = [15, 0], sizes = [1, 20], strides = [1, 1]} : vector<16x20xf32> to vector<1x20xf32>
    %36 = vector.shape_cast %35 : vector<1x20xf32> to vector<1x20xf32>
    %37 = vector.broadcast %36 : vector<1x20xf32> to vector<2x20xf32>
    %38 = tpu.concatenate %34, %31, %37 in 0 : vector<2x20xf32>, vector<16x20xf32>, vector<2x20xf32> -> vector<20x20xf32>
    %c0_20 = arith.constant 0 : index
    %c0_21 = arith.constant 0 : index
    %c0_22 = arith.constant 0 : index
    %39 = vector.load %arg5[%c0_20, %c0_21, %c0_22] : memref<16x20x20xf32, #tpu.memory_space<vmem>>, vector<1x20x20xf32>
    %40 = vector.shape_cast %39 : vector<1x20x20xf32> to vector<20x20xf32>
    %41 = vector.shape_cast %38 : vector<20x20xf32> to vector<1x20x20xf32>
    tpu.vector_store %arg5[%c0_20, %c0_21, %c0_22], %41 {strides = array<i32>} : memref<16x20x20xf32, #tpu.memory_space<vmem>>, vector<1x20x20xf32>,
    %c1_23 = arith.constant 1 : index
    %c0_24 = arith.constant 0 : index
    %42 = memref.load %arg2[%c1_23, %c0_24] : memref<24x4xf32, #tpu.memory_space<smem>>
    %43 = vector.broadcast %42 : f32 to vector<16x16xf32>
    %44 = arith.mulf %43, %1 : vector<16x16xf32>
    %c1_25 = arith.constant 1 : index
    %c1_26 = arith.constant 1 : index
    %45 = memref.load %arg2[%c1_25, %c1_26] : memref<24x4xf32, #tpu.memory_space<smem>>
    %46 = vector.broadcast %45 : f32 to vector<16x16xf32>
    %47 = arith.mulf %46, %3 : vector<16x16xf32>
    %c1_27 = arith.constant 1 : index
    %c2_28 = arith.constant 2 : index
    %48 = memref.load %arg2[%c1_27, %c2_28] : memref<24x4xf32, #tpu.memory_space<smem>>
    %49 = vector.broadcast %48 : f32 to vector<16x16xf32>
    %50 = arith.mulf %49, %5 : vector<16x16xf32>
    %c1_29 = arith.constant 1 : index
    %c3_30 = arith.constant 3 : index
    %51 = memref.load %arg2[%c1_29, %c3_30] : memref<24x4xf32, #tpu.memory_space<smem>>
    %52 = vector.broadcast %51 : f32 to vector<16x16xf32>
    %53 = arith.mulf %52, %7 : vector<16x16xf32>
    %54 = arith.addf %44, %47 : vector<16x16xf32>
    %55 = arith.addf %50, %53 : vector<16x16xf32>
    %56 = arith.addf %54, %55 : vector<16x16xf32>
    %cst_31 = arith.constant 0.000000e+00 : f32
    %57 = vector.broadcast %cst_31 : f32 to vector<16x16xf32>
    %58 = arith.maximumf %56, %57 : vector<16x16xf32>
    %59 = vector.extract_strided_slice %58 {offsets = [0, 0], sizes = [16, 1], strides = [1, 1]} : vector<16x16xf32> to vector<16x1xf32>
    %60 = vector.shape_cast %59 : vector<16x1xf32> to vector<16x1xf32>
    %61 = vector.broadcast %60 : vector<16x1xf32> to vector<16x2xf32>
    %62 = vector.extract_strided_slice %58 {offsets = [0, 15], sizes = [16, 1], strides = [1, 1]} : vector<16x16xf32> to vector<16x1xf32>
    %63 = vector.shape_cast %62 : vector<16x1xf32> to vector<16x1xf32>
    %64 = vector.broadcast %63 : vector<16x1xf32> to vector<16x2xf32>
    %65 = tpu.concatenate %61, %58, %64 in 1 : vector<16x2xf32>, vector<16x16xf32>, vector<16x2xf32> -> vector<16x20xf32>
    %66 = vector.extract_strided_slice %65 {offsets = [0, 0], sizes = [1, 20], strides = [1, 1]} : vector<16x20xf32> to vector<1x20xf32>
    %67 = vector.shape_cast %66 : vector<1x20xf32> to vector<1x20xf32>
    %68 = vector.broadcast %67 : vector<1x20xf32> to vector<2x20xf32>
    %69 = vector.extract_strided_slice %65 {offsets = [15, 0], sizes = [1, 20], strides = [1, 1]} : vector<16x20xf32> to vector<1x20xf32>
    %70 = vector.shape_cast %69 : vector<1x20xf32> to vector<1x20xf32>
    %71 = vector.broadcast %70 : vector<1x20xf32> to vector<2x20xf32>
    %72 = tpu.concatenate %68, %65, %71 in 0 : vector<2x20xf32>, vector<16x20xf32>, vector<2x20xf32> -> vector<20x20xf32>
    %c1_32 = arith.constant 1 : index
    %c0_33 = arith.constant 0 : index
    %c0_34 = arith.constant 0 : index
    %73 = vector.load %arg5[%c1_32, %c0_33, %c0_34] : memref<16x20x20xf32, #tpu.memory_space<vmem>>, vector<1x20x20xf32>
    %74 = vector.shape_cast %73 : vector<1x20x20xf32> to vector<20x20xf32>
    %75 = vector.shape_cast %72 : vector<20x20xf32> to vector<1x20x20xf32>
    tpu.vector_store %arg5[%c1_32, %c0_33, %c0_34], %75 {strides = array<i32>} : memref<16x20x20xf32, #tpu.memory_space<vmem>>, vector<1x20x20xf32>,
    %c2_35 = arith.constant 2 : index
    %c0_36 = arith.constant 0 : index
    %76 = memref.load %arg2[%c2_35, %c0_36] : memref<24x4xf32, #tpu.memory_space<smem>>
    %77 = vector.broadcast %76 : f32 to vector<16x16xf32>
    %78 = arith.mulf %77, %1 : vector<16x16xf32>
    %c2_37 = arith.constant 2 : index
    %c1_38 = arith.constant 1 : index
    %79 = memref.load %arg2[%c2_37, %c1_38] : memref<24x4xf32, #tpu.memory_space<smem>>
    %80 = vector.broadcast %79 : f32 to vector<16x16xf32>
    %81 = arith.mulf %80, %3 : vector<16x16xf32>
    %c2_39 = arith.constant 2 : index
    %c2_40 = arith.constant 2 : index
    %82 = memref.load %arg2[%c2_39, %c2_40] : memref<24x4xf32, #tpu.memory_space<smem>>
    %83 = vector.broadcast %82 : f32 to vector<16x16xf32>
    %84 = arith.mulf %83, %5 : vector<16x16xf32>
    %c2_41 = arith.constant 2 : index
    %c3_42 = arith.constant 3 : index
    %85 = memref.load %arg2[%c2_41, %c3_42] : memref<24x4xf32, #tpu.memory_space<smem>>
    %86 = vector.broadcast %85 : f32 to vector<16x16xf32>
    %87 = arith.mulf %86, %7 : vector<16x16xf32>
    %88 = arith.addf %78, %81 : vector<16x16xf32>
    %89 = arith.addf %84, %87 : vector<16x16xf32>
    %90 = arith.addf %88, %89 : vector<16x16xf32>
    %cst_43 = arith.constant 0.000000e+00 : f32
    %91 = vector.broadcast %cst_43 : f32 to vector<16x16xf32>
    %92 = arith.maximumf %90, %91 : vector<16x16xf32>
    %93 = vector.extract_strided_slice %92 {offsets = [0, 0], sizes = [16, 1], strides = [1, 1]} : vector<16x16xf32> to vector<16x1xf32>
    %94 = vector.shape_cast %93 : vector<16x1xf32> to vector<16x1xf32>
    %95 = vector.broadcast %94 : vector<16x1xf32> to vector<16x2xf32>
    %96 = vector.extract_strided_slice %92 {offsets = [0, 15], sizes = [16, 1], strides = [1, 1]} : vector<16x16xf32> to vector<16x1xf32>
    %97 = vector.shape_cast %96 : vector<16x1xf32> to vector<16x1xf32>
    %98 = vector.broadcast %97 : vector<16x1xf32> to vector<16x2xf32>
    %99 = tpu.concatenate %95, %92, %98 in 1 : vector<16x2xf32>, vector<16x16xf32>, vector<16x2xf32> -> vector<16x20xf32>
    %100 = vector.extract_strided_slice %99 {offsets = [0, 0], sizes = [1, 20], strides = [1, 1]} : vector<16x20xf32> to vector<1x20xf32>
    %101 = vector.shape_cast %100 : vector<1x20xf32> to vector<1x20xf32>
    %102 = vector.broadcast %101 : vector<1x20xf32> to vector<2x20xf32>
    %103 = vector.extract_strided_slice %99 {offsets = [15, 0], sizes = [1, 20], strides = [1, 1]} : vector<16x20xf32> to vector<1x20xf32>
    %104 = vector.shape_cast %103 : vector<1x20xf32> to vector<1x20xf32>
    %105 = vector.broadcast %104 : vector<1x20xf32> to vector<2x20xf32>
    %106 = tpu.concatenate %102, %99, %105 in 0 : vector<2x20xf32>, vector<16x20xf32>, vector<2x20xf32> -> vector<20x20xf32>
    %c2_44 = arith.constant 2 : index
    %c0_45 = arith.constant 0 : index
    %c0_46 = arith.constant 0 : index
    %107 = vector.load %arg5[%c2_44, %c0_45, %c0_46] : memref<16x20x20xf32, #tpu.memory_space<vmem>>, vector<1x20x20xf32>
    %108 = vector.shape_cast %107 : vector<1x20x20xf32> to vector<20x20xf32>
    %109 = vector.shape_cast %106 : vector<20x20xf32> to vector<1x20x20xf32>
    tpu.vector_store %arg5[%c2_44, %c0_45, %c0_46], %109 {strides = array<i32>} : memref<16x20x20xf32, #tpu.memory_space<vmem>>, vector<1x20x20xf32>,
    %c3_47 = arith.constant 3 : index
    %c0_48 = arith.constant 0 : index
    %110 = memref.load %arg2[%c3_47, %c0_48] : memref<24x4xf32, #tpu.memory_space<smem>>
    %111 = vector.broadcast %110 : f32 to vector<16x16xf32>
    %112 = arith.mulf %111, %1 : vector<16x16xf32>
    %c3_49 = arith.constant 3 : index
    %c1_50 = arith.constant 1 : index
    %113 = memref.load %arg2[%c3_49, %c1_50] : memref<24x4xf32, #tpu.memory_space<smem>>
    %114 = vector.broadcast %113 : f32 to vector<16x16xf32>
    %115 = arith.mulf %114, %3 : vector<16x16xf32>
    %c3_51 = arith.constant 3 : index
    %c2_52 = arith.constant 2 : index
    %116 = memref.load %arg2[%c3_51, %c2_52] : memref<24x4xf32, #tpu.memory_space<smem>>
    %117 = vector.broadcast %116 : f32 to vector<16x16xf32>
    %118 = arith.mulf %117, %5 : vector<16x16xf32>
    %c3_53 = arith.constant 3 : index
    %c3_54 = arith.constant 3 : index
    %119 = memref.load %arg2[%c3_53, %c3_54] : memref<24x4xf32, #tpu.memory_space<smem>>
    %120 = vector.broadcast %119 : f32 to vector<16x16xf32>
    %121 = arith.mulf %120, %7 : vector<16x16xf32>
    %122 = arith.addf %112, %115 : vector<16x16xf32>
    %123 = arith.addf %118, %121 : vector<16x16xf32>
    %124 = arith.addf %122, %123 : vector<16x16xf32>
    %cst_55 = arith.constant 0.000000e+00 : f32
    %125 = vector.broadcast %cst_55 : f32 to vector<16x16xf32>
    %126 = arith.maximumf %124, %125 : vector<16x16xf32>
    %127 = vector.extract_strided_slice %126 {offsets = [0, 0], sizes = [16, 1], strides = [1, 1]} : vector<16x16xf32> to vector<16x1xf32>
    %128 = vector.shape_cast %127 : vector<16x1xf32> to vector<16x1xf32>
    %129 = vector.broadcast %128 : vector<16x1xf32> to vector<16x2xf32>
    %130 = vector.extract_strided_slice %126 {offsets = [0, 15], sizes = [16, 1], strides = [1, 1]} : vector<16x16xf32> to vector<16x1xf32>
    %131 = vector.shape_cast %130 : vector<16x1xf32> to vector<16x1xf32>
    %132 = vector.broadcast %131 : vector<16x1xf32> to vector<16x2xf32>
    %133 = tpu.concatenate %129, %126, %132 in 1 : vector<16x2xf32>, vector<16x16xf32>, vector<16x2xf32> -> vector<16x20xf32>
    %134 = vector.extract_strided_slice %133 {offsets = [0, 0], sizes = [1, 20], strides = [1, 1]} : vector<16x20xf32> to vector<1x20xf32>
    %135 = vector.shape_cast %134 : vector<1x20xf32> to vector<1x20xf32>
    %136 = vector.broadcast %135 : vector<1x20xf32> to vector<2x20xf32>
    %137 = vector.extract_strided_slice %133 {offsets = [15, 0], sizes = [1, 20], strides = [1, 1]} : vector<16x20xf32> to vector<1x20xf32>
    %138 = vector.shape_cast %137 : vector<1x20xf32> to vector<1x20xf32>
    %139 = vector.broadcast %138 : vector<1x20xf32> to vector<2x20xf32>
    %140 = tpu.concatenate %136, %133, %139 in 0 : vector<2x20xf32>, vector<16x20xf32>, vector<2x20xf32> -> vector<20x20xf32>
    %c3_56 = arith.constant 3 : index
    %c0_57 = arith.constant 0 : index
    %c0_58 = arith.constant 0 : index
    %141 = vector.load %arg5[%c3_56, %c0_57, %c0_58] : memref<16x20x20xf32, #tpu.memory_space<vmem>>, vector<1x20x20xf32>
    %142 = vector.shape_cast %141 : vector<1x20x20xf32> to vector<20x20xf32>
    %143 = vector.shape_cast %140 : vector<20x20xf32> to vector<1x20x20xf32>
    tpu.vector_store %arg5[%c3_56, %c0_57, %c0_58], %143 {strides = array<i32>} : memref<16x20x20xf32, #tpu.memory_space<vmem>>, vector<1x20x20xf32>,
    %c4 = arith.constant 4 : index
    %c0_59 = arith.constant 0 : index
    %144 = memref.load %arg2[%c4, %c0_59] : memref<24x4xf32, #tpu.memory_space<smem>>
    %145 = vector.broadcast %144 : f32 to vector<16x16xf32>
    %146 = arith.mulf %145, %1 : vector<16x16xf32>
    %c4_60 = arith.constant 4 : index
    %c1_61 = arith.constant 1 : index
    %147 = memref.load %arg2[%c4_60, %c1_61] : memref<24x4xf32, #tpu.memory_space<smem>>
    %148 = vector.broadcast %147 : f32 to vector<16x16xf32>
    %149 = arith.mulf %148, %3 : vector<16x16xf32>
    %c4_62 = arith.constant 4 : index
    %c2_63 = arith.constant 2 : index
    %150 = memref.load %arg2[%c4_62, %c2_63] : memref<24x4xf32, #tpu.memory_space<smem>>
    %151 = vector.broadcast %150 : f32 to vector<16x16xf32>
    %152 = arith.mulf %151, %5 : vector<16x16xf32>
    %c4_64 = arith.constant 4 : index
    %c3_65 = arith.constant 3 : index
    %153 = memref.load %arg2[%c4_64, %c3_65] : memref<24x4xf32, #tpu.memory_space<smem>>
    %154 = vector.broadcast %153 : f32 to vector<16x16xf32>
    %155 = arith.mulf %154, %7 : vector<16x16xf32>
    %156 = arith.addf %146, %149 : vector<16x16xf32>
    %157 = arith.addf %152, %155 : vector<16x16xf32>
    %158 = arith.addf %156, %157 : vector<16x16xf32>
    %cst_66 = arith.constant 0.000000e+00 : f32
    %159 = vector.broadcast %cst_66 : f32 to vector<16x16xf32>
    %160 = arith.maximumf %158, %159 : vector<16x16xf32>
    %161 = vector.extract_strided_slice %160 {offsets = [0, 0], sizes = [16, 1], strides = [1, 1]} : vector<16x16xf32> to vector<16x1xf32>
    %162 = vector.shape_cast %161 : vector<16x1xf32> to vector<16x1xf32>
    %163 = vector.broadcast %162 : vector<16x1xf32> to vector<16x2xf32>
    %164 = vector.extract_strided_slice %160 {offsets = [0, 15], sizes = [16, 1], strides = [1, 1]} : vector<16x16xf32> to vector<16x1xf32>
    %165 = vector.shape_cast %164 : vector<16x1xf32> to vector<16x1xf32>
    %166 = vector.broadcast %165 : vector<16x1xf32> to vector<16x2xf32>
    %167 = tpu.concatenate %163, %160, %166 in 1 : vector<16x2xf32>, vector<16x16xf32>, vector<16x2xf32> -> vector<16x20xf32>
    %168 = vector.extract_strided_slice %167 {offsets = [0, 0], sizes = [1, 20], strides = [1, 1]} : vector<16x20xf32> to vector<1x20xf32>
    %169 = vector.shape_cast %168 : vector<1x20xf32> to vector<1x20xf32>
    %170 = vector.broadcast %169 : vector<1x20xf32> to vector<2x20xf32>
    %171 = vector.extract_strided_slice %167 {offsets = [15, 0], sizes = [1, 20], strides = [1, 1]} : vector<16x20xf32> to vector<1x20xf32>
    %172 = vector.shape_cast %171 : vector<1x20xf32> to vector<1x20xf32>
    %173 = vector.broadcast %172 : vector<1x20xf32> to vector<2x20xf32>
    %174 = tpu.concatenate %170, %167, %173 in 0 : vector<2x20xf32>, vector<16x20xf32>, vector<2x20xf32> -> vector<20x20xf32>
    %c4_67 = arith.constant 4 : index
    %c0_68 = arith.constant 0 : index
    %c0_69 = arith.constant 0 : index
    %175 = vector.load %arg5[%c4_67, %c0_68, %c0_69] : memref<16x20x20xf32, #tpu.memory_space<vmem>>, vector<1x20x20xf32>
    %176 = vector.shape_cast %175 : vector<1x20x20xf32> to vector<20x20xf32>
    %177 = vector.shape_cast %174 : vector<20x20xf32> to vector<1x20x20xf32>
    tpu.vector_store %arg5[%c4_67, %c0_68, %c0_69], %177 {strides = array<i32>} : memref<16x20x20xf32, #tpu.memory_space<vmem>>, vector<1x20x20xf32>,
    %c5 = arith.constant 5 : index
    %c0_70 = arith.constant 0 : index
    %178 = memref.load %arg2[%c5, %c0_70] : memref<24x4xf32, #tpu.memory_space<smem>>
    %179 = vector.broadcast %178 : f32 to vector<16x16xf32>
    %180 = arith.mulf %179, %1 : vector<16x16xf32>
    %c5_71 = arith.constant 5 : index
    %c1_72 = arith.constant 1 : index
    %181 = memref.load %arg2[%c5_71, %c1_72] : memref<24x4xf32, #tpu.memory_space<smem>>
    %182 = vector.broadcast %181 : f32 to vector<16x16xf32>
    %183 = arith.mulf %182, %3 : vector<16x16xf32>
    %c5_73 = arith.constant 5 : index
    %c2_74 = arith.constant 2 : index
    %184 = memref.load %arg2[%c5_73, %c2_74] : memref<24x4xf32, #tpu.memory_space<smem>>
    %185 = vector.broadcast %184 : f32 to vector<16x16xf32>
    %186 = arith.mulf %185, %5 : vector<16x16xf32>
    %c5_75 = arith.constant 5 : index
    %c3_76 = arith.constant 3 : index
    %187 = memref.load %arg2[%c5_75, %c3_76] : memref<24x4xf32, #tpu.memory_space<smem>>
    %188 = vector.broadcast %187 : f32 to vector<16x16xf32>
    %189 = arith.mulf %188, %7 : vector<16x16xf32>
    %190 = arith.addf %180, %183 : vector<16x16xf32>
    %191 = arith.addf %186, %189 : vector<16x16xf32>
    %192 = arith.addf %190, %191 : vector<16x16xf32>
    %cst_77 = arith.constant 0.000000e+00 : f32
    %193 = vector.broadcast %cst_77 : f32 to vector<16x16xf32>
    %194 = arith.maximumf %192, %193 : vector<16x16xf32>
    %195 = vector.extract_strided_slice %194 {offsets = [0, 0], sizes = [16, 1], strides = [1, 1]} : vector<16x16xf32> to vector<16x1xf32>
    %196 = vector.shape_cast %195 : vector<16x1xf32> to vector<16x1xf32>
    %197 = vector.broadcast %196 : vector<16x1xf32> to vector<16x2xf32>
    %198 = vector.extract_strided_slice %194 {offsets = [0, 15], sizes = [16, 1], strides = [1, 1]} : vector<16x16xf32> to vector<16x1xf32>
    %199 = vector.shape_cast %198 : vector<16x1xf32> to vector<16x1xf32>
    %200 = vector.broadcast %199 : vector<16x1xf32> to vector<16x2xf32>
    %201 = tpu.concatenate %197, %194, %200 in 1 : vector<16x2xf32>, vector<16x16xf32>, vector<16x2xf32> -> vector<16x20xf32>
    %202 = vector.extract_strided_slice %201 {offsets = [0, 0], sizes = [1, 20], strides = [1, 1]} : vector<16x20xf32> to vector<1x20xf32>
    %203 = vector.shape_cast %202 : vector<1x20xf32> to vector<1x20xf32>
    %204 = vector.broadcast %203 : vector<1x20xf32> to vector<2x20xf32>
    %205 = vector.extract_strided_slice %201 {offsets = [15, 0], sizes = [1, 20], strides = [1, 1]} : vector<16x20xf32> to vector<1x20xf32>
    %206 = vector.shape_cast %205 : vector<1x20xf32> to vector<1x20xf32>
    %207 = vector.broadcast %206 : vector<1x20xf32> to vector<2x20xf32>
    %208 = tpu.concatenate %204, %201, %207 in 0 : vector<2x20xf32>, vector<16x20xf32>, vector<2x20xf32> -> vector<20x20xf32>
    %c5_78 = arith.constant 5 : index
    %c0_79 = arith.constant 0 : index
    %c0_80 = arith.constant 0 : index
    %209 = vector.load %arg5[%c5_78, %c0_79, %c0_80] : memref<16x20x20xf32, #tpu.memory_space<vmem>>, vector<1x20x20xf32>
    %210 = vector.shape_cast %209 : vector<1x20x20xf32> to vector<20x20xf32>
    %211 = vector.shape_cast %208 : vector<20x20xf32> to vector<1x20x20xf32>
    tpu.vector_store %arg5[%c5_78, %c0_79, %c0_80], %211 {strides = array<i32>} : memref<16x20x20xf32, #tpu.memory_space<vmem>>, vector<1x20x20xf32>,
    %c6 = arith.constant 6 : index
    %c0_81 = arith.constant 0 : index
    %212 = memref.load %arg2[%c6, %c0_81] : memref<24x4xf32, #tpu.memory_space<smem>>
    %213 = vector.broadcast %212 : f32 to vector<16x16xf32>
    %214 = arith.mulf %213, %1 : vector<16x16xf32>
    %c6_82 = arith.constant 6 : index
    %c1_83 = arith.constant 1 : index
    %215 = memref.load %arg2[%c6_82, %c1_83] : memref<24x4xf32, #tpu.memory_space<smem>>
    %216 = vector.broadcast %215 : f32 to vector<16x16xf32>
    %217 = arith.mulf %216, %3 : vector<16x16xf32>
    %c6_84 = arith.constant 6 : index
    %c2_85 = arith.constant 2 : index
    %218 = memref.load %arg2[%c6_84, %c2_85] : memref<24x4xf32, #tpu.memory_space<smem>>
    %219 = vector.broadcast %218 : f32 to vector<16x16xf32>
    %220 = arith.mulf %219, %5 : vector<16x16xf32>
    %c6_86 = arith.constant 6 : index
    %c3_87 = arith.constant 3 : index
    %221 = memref.load %arg2[%c6_86, %c3_87] : memref<24x4xf32, #tpu.memory_space<smem>>
    %222 = vector.broadcast %221 : f32 to vector<16x16xf32>
    %223 = arith.mulf %222, %7 : vector<16x16xf32>
    %224 = arith.addf %214, %217 : vector<16x16xf32>
    %225 = arith.addf %220, %223 : vector<16x16xf32>
    %226 = arith.addf %224, %225 : vector<16x16xf32>
    %cst_88 = arith.constant 0.000000e+00 : f32
    %227 = vector.broadcast %cst_88 : f32 to vector<16x16xf32>
    %228 = arith.maximumf %226, %227 : vector<16x16xf32>
    %229 = vector.extract_strided_slice %228 {offsets = [0, 0], sizes = [16, 1], strides = [1, 1]} : vector<16x16xf32> to vector<16x1xf32>
    %230 = vector.shape_cast %229 : vector<16x1xf32> to vector<16x1xf32>
    %231 = vector.broadcast %230 : vector<16x1xf32> to vector<16x2xf32>
    %232 = vector.extract_strided_slice %228 {offsets = [0, 15], sizes = [16, 1], strides = [1, 1]} : vector<16x16xf32> to vector<16x1xf32>
    %233 = vector.shape_cast %232 : vector<16x1xf32> to vector<16x1xf32>
    %234 = vector.broadcast %233 : vector<16x1xf32> to vector<16x2xf32>
    %235 = tpu.concatenate %231, %228, %234 in 1 : vector<16x2xf32>, vector<16x16xf32>, vector<16x2xf32> -> vector<16x20xf32>
    %236 = vector.extract_strided_slice %235 {offsets = [0, 0], sizes = [1, 20], strides = [1, 1]} : vector<16x20xf32> to vector<1x20xf32>
    %237 = vector.shape_cast %236 : vector<1x20xf32> to vector<1x20xf32>
    %238 = vector.broadcast %237 : vector<1x20xf32> to vector<2x20xf32>
    %239 = vector.extract_strided_slice %235 {offsets = [15, 0], sizes = [1, 20], strides = [1, 1]} : vector<16x20xf32> to vector<1x20xf32>
    %240 = vector.shape_cast %239 : vector<1x20xf32> to vector<1x20xf32>
    %241 = vector.broadcast %240 : vector<1x20xf32> to vector<2x20xf32>
    %242 = tpu.concatenate %238, %235, %241 in 0 : vector<2x20xf32>, vector<16x20xf32>, vector<2x20xf32> -> vector<20x20xf32>
    %c6_89 = arith.constant 6 : index
    %c0_90 = arith.constant 0 : index
    %c0_91 = arith.constant 0 : index
    %243 = vector.load %arg5[%c6_89, %c0_90, %c0_91] : memref<16x20x20xf32, #tpu.memory_space<vmem>>, vector<1x20x20xf32>
    %244 = vector.shape_cast %243 : vector<1x20x20xf32> to vector<20x20xf32>
    %245 = vector.shape_cast %242 : vector<20x20xf32> to vector<1x20x20xf32>
    tpu.vector_store %arg5[%c6_89, %c0_90, %c0_91], %245 {strides = array<i32>} : memref<16x20x20xf32, #tpu.memory_space<vmem>>, vector<1x20x20xf32>,
    %c7 = arith.constant 7 : index
    %c0_92 = arith.constant 0 : index
    %246 = memref.load %arg2[%c7, %c0_92] : memref<24x4xf32, #tpu.memory_space<smem>>
    %247 = vector.broadcast %246 : f32 to vector<16x16xf32>
    %248 = arith.mulf %247, %1 : vector<16x16xf32>
    %c7_93 = arith.constant 7 : index
    %c1_94 = arith.constant 1 : index
    %249 = memref.load %arg2[%c7_93, %c1_94] : memref<24x4xf32, #tpu.memory_space<smem>>
    %250 = vector.broadcast %249 : f32 to vector<16x16xf32>
    %251 = arith.mulf %250, %3 : vector<16x16xf32>
    %c7_95 = arith.constant 7 : index
    %c2_96 = arith.constant 2 : index
    %252 = memref.load %arg2[%c7_95, %c2_96] : memref<24x4xf32, #tpu.memory_space<smem>>
    %253 = vector.broadcast %252 : f32 to vector<16x16xf32>
    %254 = arith.mulf %253, %5 : vector<16x16xf32>
    %c7_97 = arith.constant 7 : index
    %c3_98 = arith.constant 3 : index
    %255 = memref.load %arg2[%c7_97, %c3_98] : memref<24x4xf32, #tpu.memory_space<smem>>
    %256 = vector.broadcast %255 : f32 to vector<16x16xf32>
    %257 = arith.mulf %256, %7 : vector<16x16xf32>
    %258 = arith.addf %248, %251 : vector<16x16xf32>
    %259 = arith.addf %254, %257 : vector<16x16xf32>
    %260 = arith.addf %258, %259 : vector<16x16xf32>
    %cst_99 = arith.constant 0.000000e+00 : f32
    %261 = vector.broadcast %cst_99 : f32 to vector<16x16xf32>
    %262 = arith.maximumf %260, %261 : vector<16x16xf32>
    %263 = vector.extract_strided_slice %262 {offsets = [0, 0], sizes = [16, 1], strides = [1, 1]} : vector<16x16xf32> to vector<16x1xf32>
    %264 = vector.shape_cast %263 : vector<16x1xf32> to vector<16x1xf32>
    %265 = vector.broadcast %264 : vector<16x1xf32> to vector<16x2xf32>
    %266 = vector.extract_strided_slice %262 {offsets = [0, 15], sizes = [16, 1], strides = [1, 1]} : vector<16x16xf32> to vector<16x1xf32>
    %267 = vector.shape_cast %266 : vector<16x1xf32> to vector<16x1xf32>
    %268 = vector.broadcast %267 : vector<16x1xf32> to vector<16x2xf32>
    %269 = tpu.concatenate %265, %262, %268 in 1 : vector<16x2xf32>, vector<16x16xf32>, vector<16x2xf32> -> vector<16x20xf32>
    %270 = vector.extract_strided_slice %269 {offsets = [0, 0], sizes = [1, 20], strides = [1, 1]} : vector<16x20xf32> to vector<1x20xf32>
    %271 = vector.shape_cast %270 : vector<1x20xf32> to vector<1x20xf32>
    %272 = vector.broadcast %271 : vector<1x20xf32> to vector<2x20xf32>
    %273 = vector.extract_strided_slice %269 {offsets = [15, 0], sizes = [1, 20], strides = [1, 1]} : vector<16x20xf32> to vector<1x20xf32>
    %274 = vector.shape_cast %273 : vector<1x20xf32> to vector<1x20xf32>
    %275 = vector.broadcast %274 : vector<1x20xf32> to vector<2x20xf32>
    %276 = tpu.concatenate %272, %269, %275 in 0 : vector<2x20xf32>, vector<16x20xf32>, vector<2x20xf32> -> vector<20x20xf32>
    %c7_100 = arith.constant 7 : index
    %c0_101 = arith.constant 0 : index
    %c0_102 = arith.constant 0 : index
    %277 = vector.load %arg5[%c7_100, %c0_101, %c0_102] : memref<16x20x20xf32, #tpu.memory_space<vmem>>, vector<1x20x20xf32>
    %278 = vector.shape_cast %277 : vector<1x20x20xf32> to vector<20x20xf32>
    %279 = vector.shape_cast %276 : vector<20x20xf32> to vector<1x20x20xf32>
    tpu.vector_store %arg5[%c7_100, %c0_101, %c0_102], %279 {strides = array<i32>} : memref<16x20x20xf32, #tpu.memory_space<vmem>>, vector<1x20x20xf32>,
    %c8 = arith.constant 8 : index
    %c0_103 = arith.constant 0 : index
    %280 = memref.load %arg2[%c8, %c0_103] : memref<24x4xf32, #tpu.memory_space<smem>>
    %281 = vector.broadcast %280 : f32 to vector<16x16xf32>
    %282 = arith.mulf %281, %1 : vector<16x16xf32>
    %c8_104 = arith.constant 8 : index
    %c1_105 = arith.constant 1 : index
    %283 = memref.load %arg2[%c8_104, %c1_105] : memref<24x4xf32, #tpu.memory_space<smem>>
    %284 = vector.broadcast %283 : f32 to vector<16x16xf32>
    %285 = arith.mulf %284, %3 : vector<16x16xf32>
    %c8_106 = arith.constant 8 : index
    %c2_107 = arith.constant 2 : index
    %286 = memref.load %arg2[%c8_106, %c2_107] : memref<24x4xf32, #tpu.memory_space<smem>>
    %287 = vector.broadcast %286 : f32 to vector<16x16xf32>
    %288 = arith.mulf %287, %5 : vector<16x16xf32>
    %c8_108 = arith.constant 8 : index
    %c3_109 = arith.constant 3 : index
    %289 = memref.load %arg2[%c8_108, %c3_109] : memref<24x4xf32, #tpu.memory_space<smem>>
    %290 = vector.broadcast %289 : f32 to vector<16x16xf32>
    %291 = arith.mulf %290, %7 : vector<16x16xf32>
    %292 = arith.addf %282, %285 : vector<16x16xf32>
    %293 = arith.addf %288, %291 : vector<16x16xf32>
    %294 = arith.addf %292, %293 : vector<16x16xf32>
    %cst_110 = arith.constant 0.000000e+00 : f32
    %295 = vector.broadcast %cst_110 : f32 to vector<16x16xf32>
    %296 = arith.maximumf %294, %295 : vector<16x16xf32>
    %297 = vector.extract_strided_slice %296 {offsets = [0, 0], sizes = [16, 1], strides = [1, 1]} : vector<16x16xf32> to vector<16x1xf32>
    %298 = vector.shape_cast %297 : vector<16x1xf32> to vector<16x1xf32>
    %299 = vector.broadcast %298 : vector<16x1xf32> to vector<16x2xf32>
    %300 = vector.extract_strided_slice %296 {offsets = [0, 15], sizes = [16, 1], strides = [1, 1]} : vector<16x16xf32> to vector<16x1xf32>
    %301 = vector.shape_cast %300 : vector<16x1xf32> to vector<16x1xf32>
    %302 = vector.broadcast %301 : vector<16x1xf32> to vector<16x2xf32>
    %303 = tpu.concatenate %299, %296, %302 in 1 : vector<16x2xf32>, vector<16x16xf32>, vector<16x2xf32> -> vector<16x20xf32>
    %304 = vector.extract_strided_slice %303 {offsets = [0, 0], sizes = [1, 20], strides = [1, 1]} : vector<16x20xf32> to vector<1x20xf32>
    %305 = vector.shape_cast %304 : vector<1x20xf32> to vector<1x20xf32>
    %306 = vector.broadcast %305 : vector<1x20xf32> to vector<2x20xf32>
    %307 = vector.extract_strided_slice %303 {offsets = [15, 0], sizes = [1, 20], strides = [1, 1]} : vector<16x20xf32> to vector<1x20xf32>
    %308 = vector.shape_cast %307 : vector<1x20xf32> to vector<1x20xf32>
    %309 = vector.broadcast %308 : vector<1x20xf32> to vector<2x20xf32>
    %310 = tpu.concatenate %306, %303, %309 in 0 : vector<2x20xf32>, vector<16x20xf32>, vector<2x20xf32> -> vector<20x20xf32>
    %c8_111 = arith.constant 8 : index
    %c0_112 = arith.constant 0 : index
    %c0_113 = arith.constant 0 : index
    %311 = vector.load %arg5[%c8_111, %c0_112, %c0_113] : memref<16x20x20xf32, #tpu.memory_space<vmem>>, vector<1x20x20xf32>
    %312 = vector.shape_cast %311 : vector<1x20x20xf32> to vector<20x20xf32>
    %313 = vector.shape_cast %310 : vector<20x20xf32> to vector<1x20x20xf32>
    tpu.vector_store %arg5[%c8_111, %c0_112, %c0_113], %313 {strides = array<i32>} : memref<16x20x20xf32, #tpu.memory_space<vmem>>, vector<1x20x20xf32>,
    %c9 = arith.constant 9 : index
    %c0_114 = arith.constant 0 : index
    %314 = memref.load %arg2[%c9, %c0_114] : memref<24x4xf32, #tpu.memory_space<smem>>
    %315 = vector.broadcast %314 : f32 to vector<16x16xf32>
    %316 = arith.mulf %315, %1 : vector<16x16xf32>
    %c9_115 = arith.constant 9 : index
    %c1_116 = arith.constant 1 : index
    %317 = memref.load %arg2[%c9_115, %c1_116] : memref<24x4xf32, #tpu.memory_space<smem>>
    %318 = vector.broadcast %317 : f32 to vector<16x16xf32>
    %319 = arith.mulf %318, %3 : vector<16x16xf32>
    %c9_117 = arith.constant 9 : index
    %c2_118 = arith.constant 2 : index
    %320 = memref.load %arg2[%c9_117, %c2_118] : memref<24x4xf32, #tpu.memory_space<smem>>
    %321 = vector.broadcast %320 : f32 to vector<16x16xf32>
    %322 = arith.mulf %321, %5 : vector<16x16xf32>
    %c9_119 = arith.constant 9 : index
    %c3_120 = arith.constant 3 : index
    %323 = memref.load %arg2[%c9_119, %c3_120] : memref<24x4xf32, #tpu.memory_space<smem>>
    %324 = vector.broadcast %323 : f32 to vector<16x16xf32>
    %325 = arith.mulf %324, %7 : vector<16x16xf32>
    %326 = arith.addf %316, %319 : vector<16x16xf32>
    %327 = arith.addf %322, %325 : vector<16x16xf32>
    %328 = arith.addf %326, %327 : vector<16x16xf32>
    %cst_121 = arith.constant 0.000000e+00 : f32
    %329 = vector.broadcast %cst_121 : f32 to vector<16x16xf32>
    %330 = arith.maximumf %328, %329 : vector<16x16xf32>
    %331 = vector.extract_strided_slice %330 {offsets = [0, 0], sizes = [16, 1], strides = [1, 1]} : vector<16x16xf32> to vector<16x1xf32>
    %332 = vector.shape_cast %331 : vector<16x1xf32> to vector<16x1xf32>
    %333 = vector.broadcast %332 : vector<16x1xf32> to vector<16x2xf32>
    %334 = vector.extract_strided_slice %330 {offsets = [0, 15], sizes = [16, 1], strides = [1, 1]} : vector<16x16xf32> to vector<16x1xf32>
    %335 = vector.shape_cast %334 : vector<16x1xf32> to vector<16x1xf32>
    %336 = vector.broadcast %335 : vector<16x1xf32> to vector<16x2xf32>
    %337 = tpu.concatenate %333, %330, %336 in 1 : vector<16x2xf32>, vector<16x16xf32>, vector<16x2xf32> -> vector<16x20xf32>
    %338 = vector.extract_strided_slice %337 {offsets = [0, 0], sizes = [1, 20], strides = [1, 1]} : vector<16x20xf32> to vector<1x20xf32>
    %339 = vector.shape_cast %338 : vector<1x20xf32> to vector<1x20xf32>
    %340 = vector.broadcast %339 : vector<1x20xf32> to vector<2x20xf32>
    %341 = vector.extract_strided_slice %337 {offsets = [15, 0], sizes = [1, 20], strides = [1, 1]} : vector<16x20xf32> to vector<1x20xf32>
    %342 = vector.shape_cast %341 : vector<1x20xf32> to vector<1x20xf32>
    %343 = vector.broadcast %342 : vector<1x20xf32> to vector<2x20xf32>
    %344 = tpu.concatenate %340, %337, %343 in 0 : vector<2x20xf32>, vector<16x20xf32>, vector<2x20xf32> -> vector<20x20xf32>
    %c9_122 = arith.constant 9 : index
    %c0_123 = arith.constant 0 : index
    %c0_124 = arith.constant 0 : index
    %345 = vector.load %arg5[%c9_122, %c0_123, %c0_124] : memref<16x20x20xf32, #tpu.memory_space<vmem>>, vector<1x20x20xf32>
    %346 = vector.shape_cast %345 : vector<1x20x20xf32> to vector<20x20xf32>
    %347 = vector.shape_cast %344 : vector<20x20xf32> to vector<1x20x20xf32>
    tpu.vector_store %arg5[%c9_122, %c0_123, %c0_124], %347 {strides = array<i32>} : memref<16x20x20xf32, #tpu.memory_space<vmem>>, vector<1x20x20xf32>,
    %c10 = arith.constant 10 : index
    %c0_125 = arith.constant 0 : index
    %348 = memref.load %arg2[%c10, %c0_125] : memref<24x4xf32, #tpu.memory_space<smem>>
    %349 = vector.broadcast %348 : f32 to vector<16x16xf32>
    %350 = arith.mulf %349, %1 : vector<16x16xf32>
    %c10_126 = arith.constant 10 : index
    %c1_127 = arith.constant 1 : index
    %351 = memref.load %arg2[%c10_126, %c1_127] : memref<24x4xf32, #tpu.memory_space<smem>>
    %352 = vector.broadcast %351 : f32 to vector<16x16xf32>
    %353 = arith.mulf %352, %3 : vector<16x16xf32>
    %c10_128 = arith.constant 10 : index
    %c2_129 = arith.constant 2 : index
    %354 = memref.load %arg2[%c10_128, %c2_129] : memref<24x4xf32, #tpu.memory_space<smem>>
    %355 = vector.broadcast %354 : f32 to vector<16x16xf32>
    %356 = arith.mulf %355, %5 : vector<16x16xf32>
    %c10_130 = arith.constant 10 : index
    %c3_131 = arith.constant 3 : index
    %357 = memref.load %arg2[%c10_130, %c3_131] : memref<24x4xf32, #tpu.memory_space<smem>>
    %358 = vector.broadcast %357 : f32 to vector<16x16xf32>
    %359 = arith.mulf %358, %7 : vector<16x16xf32>
    %360 = arith.addf %350, %353 : vector<16x16xf32>
    %361 = arith.addf %356, %359 : vector<16x16xf32>
    %362 = arith.addf %360, %361 : vector<16x16xf32>
    %cst_132 = arith.constant 0.000000e+00 : f32
    %363 = vector.broadcast %cst_132 : f32 to vector<16x16xf32>
    %364 = arith.maximumf %362, %363 : vector<16x16xf32>
    %365 = vector.extract_strided_slice %364 {offsets = [0, 0], sizes = [16, 1], strides = [1, 1]} : vector<16x16xf32> to vector<16x1xf32>
    %366 = vector.shape_cast %365 : vector<16x1xf32> to vector<16x1xf32>
    %367 = vector.broadcast %366 : vector<16x1xf32> to vector<16x2xf32>
    %368 = vector.extract_strided_slice %364 {offsets = [0, 15], sizes = [16, 1], strides = [1, 1]} : vector<16x16xf32> to vector<16x1xf32>
    %369 = vector.shape_cast %368 : vector<16x1xf32> to vector<16x1xf32>
    %370 = vector.broadcast %369 : vector<16x1xf32> to vector<16x2xf32>
    %371 = tpu.concatenate %367, %364, %370 in 1 : vector<16x2xf32>, vector<16x16xf32>, vector<16x2xf32> -> vector<16x20xf32>
    %372 = vector.extract_strided_slice %371 {offsets = [0, 0], sizes = [1, 20], strides = [1, 1]} : vector<16x20xf32> to vector<1x20xf32>
    %373 = vector.shape_cast %372 : vector<1x20xf32> to vector<1x20xf32>
    %374 = vector.broadcast %373 : vector<1x20xf32> to vector<2x20xf32>
    %375 = vector.extract_strided_slice %371 {offsets = [15, 0], sizes = [1, 20], strides = [1, 1]} : vector<16x20xf32> to vector<1x20xf32>
    %376 = vector.shape_cast %375 : vector<1x20xf32> to vector<1x20xf32>
    %377 = vector.broadcast %376 : vector<1x20xf32> to vector<2x20xf32>
    %378 = tpu.concatenate %374, %371, %377 in 0 : vector<2x20xf32>, vector<16x20xf32>, vector<2x20xf32> -> vector<20x20xf32>
    %c10_133 = arith.constant 10 : index
    %c0_134 = arith.constant 0 : index
    %c0_135 = arith.constant 0 : index
    %379 = vector.load %arg5[%c10_133, %c0_134, %c0_135] : memref<16x20x20xf32, #tpu.memory_space<vmem>>, vector<1x20x20xf32>
    %380 = vector.shape_cast %379 : vector<1x20x20xf32> to vector<20x20xf32>
    %381 = vector.shape_cast %378 : vector<20x20xf32> to vector<1x20x20xf32>
    tpu.vector_store %arg5[%c10_133, %c0_134, %c0_135], %381 {strides = array<i32>} : memref<16x20x20xf32, #tpu.memory_space<vmem>>, vector<1x20x20xf32>,
    %c11 = arith.constant 11 : index
    %c0_136 = arith.constant 0 : index
    %382 = memref.load %arg2[%c11, %c0_136] : memref<24x4xf32, #tpu.memory_space<smem>>
    %383 = vector.broadcast %382 : f32 to vector<16x16xf32>
    %384 = arith.mulf %383, %1 : vector<16x16xf32>
    %c11_137 = arith.constant 11 : index
    %c1_138 = arith.constant 1 : index
    %385 = memref.load %arg2[%c11_137, %c1_138] : memref<24x4xf32, #tpu.memory_space<smem>>
    %386 = vector.broadcast %385 : f32 to vector<16x16xf32>
    %387 = arith.mulf %386, %3 : vector<16x16xf32>
    %c11_139 = arith.constant 11 : index
    %c2_140 = arith.constant 2 : index
    %388 = memref.load %arg2[%c11_139, %c2_140] : memref<24x4xf32, #tpu.memory_space<smem>>
    %389 = vector.broadcast %388 : f32 to vector<16x16xf32>
    %390 = arith.mulf %389, %5 : vector<16x16xf32>
    %c11_141 = arith.constant 11 : index
    %c3_142 = arith.constant 3 : index
    %391 = memref.load %arg2[%c11_141, %c3_142] : memref<24x4xf32, #tpu.memory_space<smem>>
    %392 = vector.broadcast %391 : f32 to vector<16x16xf32>
    %393 = arith.mulf %392, %7 : vector<16x16xf32>
    %394 = arith.addf %384, %387 : vector<16x16xf32>
    %395 = arith.addf %390, %393 : vector<16x16xf32>
    %396 = arith.addf %394, %395 : vector<16x16xf32>
    %cst_143 = arith.constant 0.000000e+00 : f32
    %397 = vector.broadcast %cst_143 : f32 to vector<16x16xf32>
    %398 = arith.maximumf %396, %397 : vector<16x16xf32>
    %399 = vector.extract_strided_slice %398 {offsets = [0, 0], sizes = [16, 1], strides = [1, 1]} : vector<16x16xf32> to vector<16x1xf32>
    %400 = vector.shape_cast %399 : vector<16x1xf32> to vector<16x1xf32>
    %401 = vector.broadcast %400 : vector<16x1xf32> to vector<16x2xf32>
    %402 = vector.extract_strided_slice %398 {offsets = [0, 15], sizes = [16, 1], strides = [1, 1]} : vector<16x16xf32> to vector<16x1xf32>
    %403 = vector.shape_cast %402 : vector<16x1xf32> to vector<16x1xf32>
    %404 = vector.broadcast %403 : vector<16x1xf32> to vector<16x2xf32>
    %405 = tpu.concatenate %401, %398, %404 in 1 : vector<16x2xf32>, vector<16x16xf32>, vector<16x2xf32> -> vector<16x20xf32>
    %406 = vector.extract_strided_slice %405 {offsets = [0, 0], sizes = [1, 20], strides = [1, 1]} : vector<16x20xf32> to vector<1x20xf32>
    %407 = vector.shape_cast %406 : vector<1x20xf32> to vector<1x20xf32>
    %408 = vector.broadcast %407 : vector<1x20xf32> to vector<2x20xf32>
    %409 = vector.extract_strided_slice %405 {offsets = [15, 0], sizes = [1, 20], strides = [1, 1]} : vector<16x20xf32> to vector<1x20xf32>
    %410 = vector.shape_cast %409 : vector<1x20xf32> to vector<1x20xf32>
    %411 = vector.broadcast %410 : vector<1x20xf32> to vector<2x20xf32>
    %412 = tpu.concatenate %408, %405, %411 in 0 : vector<2x20xf32>, vector<16x20xf32>, vector<2x20xf32> -> vector<20x20xf32>
    %c11_144 = arith.constant 11 : index
    %c0_145 = arith.constant 0 : index
    %c0_146 = arith.constant 0 : index
    %413 = vector.load %arg5[%c11_144, %c0_145, %c0_146] : memref<16x20x20xf32, #tpu.memory_space<vmem>>, vector<1x20x20xf32>
    %414 = vector.shape_cast %413 : vector<1x20x20xf32> to vector<20x20xf32>
    %415 = vector.shape_cast %412 : vector<20x20xf32> to vector<1x20x20xf32>
    tpu.vector_store %arg5[%c11_144, %c0_145, %c0_146], %415 {strides = array<i32>} : memref<16x20x20xf32, #tpu.memory_space<vmem>>, vector<1x20x20xf32>,
    %c12 = arith.constant 12 : index
    %c0_147 = arith.constant 0 : index
    %416 = memref.load %arg2[%c12, %c0_147] : memref<24x4xf32, #tpu.memory_space<smem>>
    %417 = vector.broadcast %416 : f32 to vector<16x16xf32>
    %418 = arith.mulf %417, %1 : vector<16x16xf32>
    %c12_148 = arith.constant 12 : index
    %c1_149 = arith.constant 1 : index
    %419 = memref.load %arg2[%c12_148, %c1_149] : memref<24x4xf32, #tpu.memory_space<smem>>
    %420 = vector.broadcast %419 : f32 to vector<16x16xf32>
    %421 = arith.mulf %420, %3 : vector<16x16xf32>
    %c12_150 = arith.constant 12 : index
    %c2_151 = arith.constant 2 : index
    %422 = memref.load %arg2[%c12_150, %c2_151] : memref<24x4xf32, #tpu.memory_space<smem>>
    %423 = vector.broadcast %422 : f32 to vector<16x16xf32>
    %424 = arith.mulf %423, %5 : vector<16x16xf32>
    %c12_152 = arith.constant 12 : index
    %c3_153 = arith.constant 3 : index
    %425 = memref.load %arg2[%c12_152, %c3_153] : memref<24x4xf32, #tpu.memory_space<smem>>
    %426 = vector.broadcast %425 : f32 to vector<16x16xf32>
    %427 = arith.mulf %426, %7 : vector<16x16xf32>
    %428 = arith.addf %418, %421 : vector<16x16xf32>
    %429 = arith.addf %424, %427 : vector<16x16xf32>
    %430 = arith.addf %428, %429 : vector<16x16xf32>
    %cst_154 = arith.constant 0.000000e+00 : f32
    %431 = vector.broadcast %cst_154 : f32 to vector<16x16xf32>
    %432 = arith.maximumf %430, %431 : vector<16x16xf32>
    %433 = vector.extract_strided_slice %432 {offsets = [0, 0], sizes = [16, 1], strides = [1, 1]} : vector<16x16xf32> to vector<16x1xf32>
    %434 = vector.shape_cast %433 : vector<16x1xf32> to vector<16x1xf32>
    %435 = vector.broadcast %434 : vector<16x1xf32> to vector<16x2xf32>
    %436 = vector.extract_strided_slice %432 {offsets = [0, 15], sizes = [16, 1], strides = [1, 1]} : vector<16x16xf32> to vector<16x1xf32>
    %437 = vector.shape_cast %436 : vector<16x1xf32> to vector<16x1xf32>
    %438 = vector.broadcast %437 : vector<16x1xf32> to vector<16x2xf32>
    %439 = tpu.concatenate %435, %432, %438 in 1 : vector<16x2xf32>, vector<16x16xf32>, vector<16x2xf32> -> vector<16x20xf32>
    %440 = vector.extract_strided_slice %439 {offsets = [0, 0], sizes = [1, 20], strides = [1, 1]} : vector<16x20xf32> to vector<1x20xf32>
    %441 = vector.shape_cast %440 : vector<1x20xf32> to vector<1x20xf32>
    %442 = vector.broadcast %441 : vector<1x20xf32> to vector<2x20xf32>
    %443 = vector.extract_strided_slice %439 {offsets = [15, 0], sizes = [1, 20], strides = [1, 1]} : vector<16x20xf32> to vector<1x20xf32>
    %444 = vector.shape_cast %443 : vector<1x20xf32> to vector<1x20xf32>
    %445 = vector.broadcast %444 : vector<1x20xf32> to vector<2x20xf32>
    %446 = tpu.concatenate %442, %439, %445 in 0 : vector<2x20xf32>, vector<16x20xf32>, vector<2x20xf32> -> vector<20x20xf32>
    %c12_155 = arith.constant 12 : index
    %c0_156 = arith.constant 0 : index
    %c0_157 = arith.constant 0 : index
    %447 = vector.load %arg5[%c12_155, %c0_156, %c0_157] : memref<16x20x20xf32, #tpu.memory_space<vmem>>, vector<1x20x20xf32>
    %448 = vector.shape_cast %447 : vector<1x20x20xf32> to vector<20x20xf32>
    %449 = vector.shape_cast %446 : vector<20x20xf32> to vector<1x20x20xf32>
    tpu.vector_store %arg5[%c12_155, %c0_156, %c0_157], %449 {strides = array<i32>} : memref<16x20x20xf32, #tpu.memory_space<vmem>>, vector<1x20x20xf32>,
    %c13 = arith.constant 13 : index
    %c0_158 = arith.constant 0 : index
    %450 = memref.load %arg2[%c13, %c0_158] : memref<24x4xf32, #tpu.memory_space<smem>>
    %451 = vector.broadcast %450 : f32 to vector<16x16xf32>
    %452 = arith.mulf %451, %1 : vector<16x16xf32>
    %c13_159 = arith.constant 13 : index
    %c1_160 = arith.constant 1 : index
    %453 = memref.load %arg2[%c13_159, %c1_160] : memref<24x4xf32, #tpu.memory_space<smem>>
    %454 = vector.broadcast %453 : f32 to vector<16x16xf32>
    %455 = arith.mulf %454, %3 : vector<16x16xf32>
    %c13_161 = arith.constant 13 : index
    %c2_162 = arith.constant 2 : index
    %456 = memref.load %arg2[%c13_161, %c2_162] : memref<24x4xf32, #tpu.memory_space<smem>>
    %457 = vector.broadcast %456 : f32 to vector<16x16xf32>
    %458 = arith.mulf %457, %5 : vector<16x16xf32>
    %c13_163 = arith.constant 13 : index
    %c3_164 = arith.constant 3 : index
    %459 = memref.load %arg2[%c13_163, %c3_164] : memref<24x4xf32, #tpu.memory_space<smem>>
    %460 = vector.broadcast %459 : f32 to vector<16x16xf32>
    %461 = arith.mulf %460, %7 : vector<16x16xf32>
    %462 = arith.addf %452, %455 : vector<16x16xf32>
    %463 = arith.addf %458, %461 : vector<16x16xf32>
    %464 = arith.addf %462, %463 : vector<16x16xf32>
    %cst_165 = arith.constant 0.000000e+00 : f32
    %465 = vector.broadcast %cst_165 : f32 to vector<16x16xf32>
    %466 = arith.maximumf %464, %465 : vector<16x16xf32>
    %467 = vector.extract_strided_slice %466 {offsets = [0, 0], sizes = [16, 1], strides = [1, 1]} : vector<16x16xf32> to vector<16x1xf32>
    %468 = vector.shape_cast %467 : vector<16x1xf32> to vector<16x1xf32>
    %469 = vector.broadcast %468 : vector<16x1xf32> to vector<16x2xf32>
    %470 = vector.extract_strided_slice %466 {offsets = [0, 15], sizes = [16, 1], strides = [1, 1]} : vector<16x16xf32> to vector<16x1xf32>
    %471 = vector.shape_cast %470 : vector<16x1xf32> to vector<16x1xf32>
    %472 = vector.broadcast %471 : vector<16x1xf32> to vector<16x2xf32>
    %473 = tpu.concatenate %469, %466, %472 in 1 : vector<16x2xf32>, vector<16x16xf32>, vector<16x2xf32> -> vector<16x20xf32>
    %474 = vector.extract_strided_slice %473 {offsets = [0, 0], sizes = [1, 20], strides = [1, 1]} : vector<16x20xf32> to vector<1x20xf32>
    %475 = vector.shape_cast %474 : vector<1x20xf32> to vector<1x20xf32>
    %476 = vector.broadcast %475 : vector<1x20xf32> to vector<2x20xf32>
    %477 = vector.extract_strided_slice %473 {offsets = [15, 0], sizes = [1, 20], strides = [1, 1]} : vector<16x20xf32> to vector<1x20xf32>
    %478 = vector.shape_cast %477 : vector<1x20xf32> to vector<1x20xf32>
    %479 = vector.broadcast %478 : vector<1x20xf32> to vector<2x20xf32>
    %480 = tpu.concatenate %476, %473, %479 in 0 : vector<2x20xf32>, vector<16x20xf32>, vector<2x20xf32> -> vector<20x20xf32>
    %c13_166 = arith.constant 13 : index
    %c0_167 = arith.constant 0 : index
    %c0_168 = arith.constant 0 : index
    %481 = vector.load %arg5[%c13_166, %c0_167, %c0_168] : memref<16x20x20xf32, #tpu.memory_space<vmem>>, vector<1x20x20xf32>
    %482 = vector.shape_cast %481 : vector<1x20x20xf32> to vector<20x20xf32>
    %483 = vector.shape_cast %480 : vector<20x20xf32> to vector<1x20x20xf32>
    tpu.vector_store %arg5[%c13_166, %c0_167, %c0_168], %483 {strides = array<i32>} : memref<16x20x20xf32, #tpu.memory_space<vmem>>, vector<1x20x20xf32>,
    %c14 = arith.constant 14 : index
    %c0_169 = arith.constant 0 : index
    %484 = memref.load %arg2[%c14, %c0_169] : memref<24x4xf32, #tpu.memory_space<smem>>
    %485 = vector.broadcast %484 : f32 to vector<16x16xf32>
    %486 = arith.mulf %485, %1 : vector<16x16xf32>
    %c14_170 = arith.constant 14 : index
    %c1_171 = arith.constant 1 : index
    %487 = memref.load %arg2[%c14_170, %c1_171] : memref<24x4xf32, #tpu.memory_space<smem>>
    %488 = vector.broadcast %487 : f32 to vector<16x16xf32>
    %489 = arith.mulf %488, %3 : vector<16x16xf32>
    %c14_172 = arith.constant 14 : index
    %c2_173 = arith.constant 2 : index
    %490 = memref.load %arg2[%c14_172, %c2_173] : memref<24x4xf32, #tpu.memory_space<smem>>
    %491 = vector.broadcast %490 : f32 to vector<16x16xf32>
    %492 = arith.mulf %491, %5 : vector<16x16xf32>
    %c14_174 = arith.constant 14 : index
    %c3_175 = arith.constant 3 : index
    %493 = memref.load %arg2[%c14_174, %c3_175] : memref<24x4xf32, #tpu.memory_space<smem>>
    %494 = vector.broadcast %493 : f32 to vector<16x16xf32>
    %495 = arith.mulf %494, %7 : vector<16x16xf32>
    %496 = arith.addf %486, %489 : vector<16x16xf32>
    %497 = arith.addf %492, %495 : vector<16x16xf32>
    %498 = arith.addf %496, %497 : vector<16x16xf32>
    %cst_176 = arith.constant 0.000000e+00 : f32
    %499 = vector.broadcast %cst_176 : f32 to vector<16x16xf32>
    %500 = arith.maximumf %498, %499 : vector<16x16xf32>
    %501 = vector.extract_strided_slice %500 {offsets = [0, 0], sizes = [16, 1], strides = [1, 1]} : vector<16x16xf32> to vector<16x1xf32>
    %502 = vector.shape_cast %501 : vector<16x1xf32> to vector<16x1xf32>
    %503 = vector.broadcast %502 : vector<16x1xf32> to vector<16x2xf32>
    %504 = vector.extract_strided_slice %500 {offsets = [0, 15], sizes = [16, 1], strides = [1, 1]} : vector<16x16xf32> to vector<16x1xf32>
    %505 = vector.shape_cast %504 : vector<16x1xf32> to vector<16x1xf32>
    %506 = vector.broadcast %505 : vector<16x1xf32> to vector<16x2xf32>
    %507 = tpu.concatenate %503, %500, %506 in 1 : vector<16x2xf32>, vector<16x16xf32>, vector<16x2xf32> -> vector<16x20xf32>
    %508 = vector.extract_strided_slice %507 {offsets = [0, 0], sizes = [1, 20], strides = [1, 1]} : vector<16x20xf32> to vector<1x20xf32>
    %509 = vector.shape_cast %508 : vector<1x20xf32> to vector<1x20xf32>
    %510 = vector.broadcast %509 : vector<1x20xf32> to vector<2x20xf32>
    %511 = vector.extract_strided_slice %507 {offsets = [15, 0], sizes = [1, 20], strides = [1, 1]} : vector<16x20xf32> to vector<1x20xf32>
    %512 = vector.shape_cast %511 : vector<1x20xf32> to vector<1x20xf32>
    %513 = vector.broadcast %512 : vector<1x20xf32> to vector<2x20xf32>
    %514 = tpu.concatenate %510, %507, %513 in 0 : vector<2x20xf32>, vector<16x20xf32>, vector<2x20xf32> -> vector<20x20xf32>
    %c14_177 = arith.constant 14 : index
    %c0_178 = arith.constant 0 : index
    %c0_179 = arith.constant 0 : index
    %515 = vector.load %arg5[%c14_177, %c0_178, %c0_179] : memref<16x20x20xf32, #tpu.memory_space<vmem>>, vector<1x20x20xf32>
    %516 = vector.shape_cast %515 : vector<1x20x20xf32> to vector<20x20xf32>
    %517 = vector.shape_cast %514 : vector<20x20xf32> to vector<1x20x20xf32>
    tpu.vector_store %arg5[%c14_177, %c0_178, %c0_179], %517 {strides = array<i32>} : memref<16x20x20xf32, #tpu.memory_space<vmem>>, vector<1x20x20xf32>,
    %c15 = arith.constant 15 : index
    %c0_180 = arith.constant 0 : index
    %518 = memref.load %arg2[%c15, %c0_180] : memref<24x4xf32, #tpu.memory_space<smem>>
    %519 = vector.broadcast %518 : f32 to vector<16x16xf32>
    %520 = arith.mulf %519, %1 : vector<16x16xf32>
    %c15_181 = arith.constant 15 : index
    %c1_182 = arith.constant 1 : index
    %521 = memref.load %arg2[%c15_181, %c1_182] : memref<24x4xf32, #tpu.memory_space<smem>>
    %522 = vector.broadcast %521 : f32 to vector<16x16xf32>
    %523 = arith.mulf %522, %3 : vector<16x16xf32>
    %c15_183 = arith.constant 15 : index
    %c2_184 = arith.constant 2 : index
    %524 = memref.load %arg2[%c15_183, %c2_184] : memref<24x4xf32, #tpu.memory_space<smem>>
    %525 = vector.broadcast %524 : f32 to vector<16x16xf32>
    %526 = arith.mulf %525, %5 : vector<16x16xf32>
    %c15_185 = arith.constant 15 : index
    %c3_186 = arith.constant 3 : index
    %527 = memref.load %arg2[%c15_185, %c3_186] : memref<24x4xf32, #tpu.memory_space<smem>>
    %528 = vector.broadcast %527 : f32 to vector<16x16xf32>
    %529 = arith.mulf %528, %7 : vector<16x16xf32>
    %530 = arith.addf %520, %523 : vector<16x16xf32>
    %531 = arith.addf %526, %529 : vector<16x16xf32>
    %532 = arith.addf %530, %531 : vector<16x16xf32>
    %cst_187 = arith.constant 0.000000e+00 : f32
    %533 = vector.broadcast %cst_187 : f32 to vector<16x16xf32>
    %534 = arith.maximumf %532, %533 : vector<16x16xf32>
    %535 = vector.extract_strided_slice %534 {offsets = [0, 0], sizes = [16, 1], strides = [1, 1]} : vector<16x16xf32> to vector<16x1xf32>
    %536 = vector.shape_cast %535 : vector<16x1xf32> to vector<16x1xf32>
    %537 = vector.broadcast %536 : vector<16x1xf32> to vector<16x2xf32>
    %538 = vector.extract_strided_slice %534 {offsets = [0, 15], sizes = [16, 1], strides = [1, 1]} : vector<16x16xf32> to vector<16x1xf32>
    %539 = vector.shape_cast %538 : vector<16x1xf32> to vector<16x1xf32>
    %540 = vector.broadcast %539 : vector<16x1xf32> to vector<16x2xf32>
    %541 = tpu.concatenate %537, %534, %540 in 1 : vector<16x2xf32>, vector<16x16xf32>, vector<16x2xf32> -> vector<16x20xf32>
    %542 = vector.extract_strided_slice %541 {offsets = [0, 0], sizes = [1, 20], strides = [1, 1]} : vector<16x20xf32> to vector<1x20xf32>
    %543 = vector.shape_cast %542 : vector<1x20xf32> to vector<1x20xf32>
    %544 = vector.broadcast %543 : vector<1x20xf32> to vector<2x20xf32>
    %545 = vector.extract_strided_slice %541 {offsets = [15, 0], sizes = [1, 20], strides = [1, 1]} : vector<16x20xf32> to vector<1x20xf32>
    %546 = vector.shape_cast %545 : vector<1x20xf32> to vector<1x20xf32>
    %547 = vector.broadcast %546 : vector<1x20xf32> to vector<2x20xf32>
    %548 = tpu.concatenate %544, %541, %547 in 0 : vector<2x20xf32>, vector<16x20xf32>, vector<2x20xf32> -> vector<20x20xf32>
    %c15_188 = arith.constant 15 : index
    %c0_189 = arith.constant 0 : index
    %c0_190 = arith.constant 0 : index
    %549 = vector.load %arg5[%c15_188, %c0_189, %c0_190] : memref<16x20x20xf32, #tpu.memory_space<vmem>>, vector<1x20x20xf32>
    %550 = vector.shape_cast %549 : vector<1x20x20xf32> to vector<20x20xf32>
    %551 = vector.shape_cast %548 : vector<20x20xf32> to vector<1x20x20xf32>
    tpu.vector_store %arg5[%c15_188, %c0_189, %c0_190], %551 {strides = array<i32>} : memref<16x20x20xf32, #tpu.memory_space<vmem>>, vector<1x20x20xf32>,
    %c16 = arith.constant 16 : index
    %c0_191 = arith.constant 0 : index
    %552 = memref.load %arg2[%c16, %c0_191] : memref<24x4xf32, #tpu.memory_space<smem>>
    %553 = vector.broadcast %552 : f32 to vector<16x16xf32>
    %554 = arith.mulf %553, %1 : vector<16x16xf32>
    %c16_192 = arith.constant 16 : index
    %c1_193 = arith.constant 1 : index
    %555 = memref.load %arg2[%c16_192, %c1_193] : memref<24x4xf32, #tpu.memory_space<smem>>
    %556 = vector.broadcast %555 : f32 to vector<16x16xf32>
    %557 = arith.mulf %556, %3 : vector<16x16xf32>
    %c16_194 = arith.constant 16 : index
    %c2_195 = arith.constant 2 : index
    %558 = memref.load %arg2[%c16_194, %c2_195] : memref<24x4xf32, #tpu.memory_space<smem>>
    %559 = vector.broadcast %558 : f32 to vector<16x16xf32>
    %560 = arith.mulf %559, %5 : vector<16x16xf32>
    %c16_196 = arith.constant 16 : index
    %c3_197 = arith.constant 3 : index
    %561 = memref.load %arg2[%c16_196, %c3_197] : memref<24x4xf32, #tpu.memory_space<smem>>
    %562 = vector.broadcast %561 : f32 to vector<16x16xf32>
    %563 = arith.mulf %562, %7 : vector<16x16xf32>
    %564 = arith.addf %554, %557 : vector<16x16xf32>
    %565 = arith.addf %560, %563 : vector<16x16xf32>
    %566 = arith.addf %564, %565 : vector<16x16xf32>
    %cst_198 = arith.constant 0.000000e+00 : f32
    %567 = vector.broadcast %cst_198 : f32 to vector<16x16xf32>
    %568 = arith.maximumf %566, %567 : vector<16x16xf32>
    %c17 = arith.constant 17 : index
    %c0_199 = arith.constant 0 : index
    %569 = memref.load %arg2[%c17, %c0_199] : memref<24x4xf32, #tpu.memory_space<smem>>
    %570 = vector.broadcast %569 : f32 to vector<16x16xf32>
    %571 = arith.mulf %570, %1 : vector<16x16xf32>
    %c17_200 = arith.constant 17 : index
    %c1_201 = arith.constant 1 : index
    %572 = memref.load %arg2[%c17_200, %c1_201] : memref<24x4xf32, #tpu.memory_space<smem>>
    %573 = vector.broadcast %572 : f32 to vector<16x16xf32>
    %574 = arith.mulf %573, %3 : vector<16x16xf32>
    %c17_202 = arith.constant 17 : index
    %c2_203 = arith.constant 2 : index
    %575 = memref.load %arg2[%c17_202, %c2_203] : memref<24x4xf32, #tpu.memory_space<smem>>
    %576 = vector.broadcast %575 : f32 to vector<16x16xf32>
    %577 = arith.mulf %576, %5 : vector<16x16xf32>
    %c17_204 = arith.constant 17 : index
    %c3_205 = arith.constant 3 : index
    %578 = memref.load %arg2[%c17_204, %c3_205] : memref<24x4xf32, #tpu.memory_space<smem>>
    %579 = vector.broadcast %578 : f32 to vector<16x16xf32>
    %580 = arith.mulf %579, %7 : vector<16x16xf32>
    %581 = arith.addf %571, %574 : vector<16x16xf32>
    %582 = arith.addf %577, %580 : vector<16x16xf32>
    %583 = arith.addf %581, %582 : vector<16x16xf32>
    %cst_206 = arith.constant 0.000000e+00 : f32
    %584 = vector.broadcast %cst_206 : f32 to vector<16x16xf32>
    %585 = arith.maximumf %583, %584 : vector<16x16xf32>
    %c18 = arith.constant 18 : index
    %c0_207 = arith.constant 0 : index
    %586 = memref.load %arg2[%c18, %c0_207] : memref<24x4xf32, #tpu.memory_space<smem>>
    %587 = vector.broadcast %586 : f32 to vector<16x16xf32>
    %588 = arith.mulf %587, %1 : vector<16x16xf32>
    %c18_208 = arith.constant 18 : index
    %c1_209 = arith.constant 1 : index
    %589 = memref.load %arg2[%c18_208, %c1_209] : memref<24x4xf32, #tpu.memory_space<smem>>
    %590 = vector.broadcast %589 : f32 to vector<16x16xf32>
    %591 = arith.mulf %590, %3 : vector<16x16xf32>
    %c18_210 = arith.constant 18 : index
    %c2_211 = arith.constant 2 : index
    %592 = memref.load %arg2[%c18_210, %c2_211] : memref<24x4xf32, #tpu.memory_space<smem>>
    %593 = vector.broadcast %592 : f32 to vector<16x16xf32>
    %594 = arith.mulf %593, %5 : vector<16x16xf32>
    %c18_212 = arith.constant 18 : index
    %c3_213 = arith.constant 3 : index
    %595 = memref.load %arg2[%c18_212, %c3_213] : memref<24x4xf32, #tpu.memory_space<smem>>
    %596 = vector.broadcast %595 : f32 to vector<16x16xf32>
    %597 = arith.mulf %596, %7 : vector<16x16xf32>
    %598 = arith.addf %588, %591 : vector<16x16xf32>
    %599 = arith.addf %594, %597 : vector<16x16xf32>
    %600 = arith.addf %598, %599 : vector<16x16xf32>
    %cst_214 = arith.constant 0.000000e+00 : f32
    %601 = vector.broadcast %cst_214 : f32 to vector<16x16xf32>
    %602 = arith.maximumf %600, %601 : vector<16x16xf32>
    %c19 = arith.constant 19 : index
    %c0_215 = arith.constant 0 : index
    %603 = memref.load %arg2[%c19, %c0_215] : memref<24x4xf32, #tpu.memory_space<smem>>
    %604 = vector.broadcast %603 : f32 to vector<16x16xf32>
    %605 = arith.mulf %604, %1 : vector<16x16xf32>
    %c19_216 = arith.constant 19 : index
    %c1_217 = arith.constant 1 : index
    %606 = memref.load %arg2[%c19_216, %c1_217] : memref<24x4xf32, #tpu.memory_space<smem>>
    %607 = vector.broadcast %606 : f32 to vector<16x16xf32>
    %608 = arith.mulf %607, %3 : vector<16x16xf32>
    %c19_218 = arith.constant 19 : index
    %c2_219 = arith.constant 2 : index
    %609 = memref.load %arg2[%c19_218, %c2_219] : memref<24x4xf32, #tpu.memory_space<smem>>
    %610 = vector.broadcast %609 : f32 to vector<16x16xf32>
    %611 = arith.mulf %610, %5 : vector<16x16xf32>
    %c19_220 = arith.constant 19 : index
    %c3_221 = arith.constant 3 : index
    %612 = memref.load %arg2[%c19_220, %c3_221] : memref<24x4xf32, #tpu.memory_space<smem>>
    %613 = vector.broadcast %612 : f32 to vector<16x16xf32>
    %614 = arith.mulf %613, %7 : vector<16x16xf32>
    %615 = arith.addf %605, %608 : vector<16x16xf32>
    %616 = arith.addf %611, %614 : vector<16x16xf32>
    %617 = arith.addf %615, %616 : vector<16x16xf32>
    %cst_222 = arith.constant 0.000000e+00 : f32
    %618 = vector.broadcast %cst_222 : f32 to vector<16x16xf32>
    %619 = arith.maximumf %617, %618 : vector<16x16xf32>
    %c20 = arith.constant 20 : index
    %c0_223 = arith.constant 0 : index
    %620 = memref.load %arg2[%c20, %c0_223] : memref<24x4xf32, #tpu.memory_space<smem>>
    %621 = vector.broadcast %620 : f32 to vector<16x16xf32>
    %622 = arith.mulf %621, %1 : vector<16x16xf32>
    %c20_224 = arith.constant 20 : index
    %c1_225 = arith.constant 1 : index
    %623 = memref.load %arg2[%c20_224, %c1_225] : memref<24x4xf32, #tpu.memory_space<smem>>
    %624 = vector.broadcast %623 : f32 to vector<16x16xf32>
    %625 = arith.mulf %624, %3 : vector<16x16xf32>
    %c20_226 = arith.constant 20 : index
    %c2_227 = arith.constant 2 : index
    %626 = memref.load %arg2[%c20_226, %c2_227] : memref<24x4xf32, #tpu.memory_space<smem>>
    %627 = vector.broadcast %626 : f32 to vector<16x16xf32>
    %628 = arith.mulf %627, %5 : vector<16x16xf32>
    %c20_228 = arith.constant 20 : index
    %c3_229 = arith.constant 3 : index
    %629 = memref.load %arg2[%c20_228, %c3_229] : memref<24x4xf32, #tpu.memory_space<smem>>
    %630 = vector.broadcast %629 : f32 to vector<16x16xf32>
    %631 = arith.mulf %630, %7 : vector<16x16xf32>
    %632 = arith.addf %622, %625 : vector<16x16xf32>
    %633 = arith.addf %628, %631 : vector<16x16xf32>
    %634 = arith.addf %632, %633 : vector<16x16xf32>
    %cst_230 = arith.constant 0.000000e+00 : f32
    %635 = vector.broadcast %cst_230 : f32 to vector<16x16xf32>
    %636 = arith.maximumf %634, %635 : vector<16x16xf32>
    %c21 = arith.constant 21 : index
    %c0_231 = arith.constant 0 : index
    %637 = memref.load %arg2[%c21, %c0_231] : memref<24x4xf32, #tpu.memory_space<smem>>
    %638 = vector.broadcast %637 : f32 to vector<16x16xf32>
    %639 = arith.mulf %638, %1 : vector<16x16xf32>
    %c21_232 = arith.constant 21 : index
    %c1_233 = arith.constant 1 : index
    %640 = memref.load %arg2[%c21_232, %c1_233] : memref<24x4xf32, #tpu.memory_space<smem>>
    %641 = vector.broadcast %640 : f32 to vector<16x16xf32>
    %642 = arith.mulf %641, %3 : vector<16x16xf32>
    %c21_234 = arith.constant 21 : index
    %c2_235 = arith.constant 2 : index
    %643 = memref.load %arg2[%c21_234, %c2_235] : memref<24x4xf32, #tpu.memory_space<smem>>
    %644 = vector.broadcast %643 : f32 to vector<16x16xf32>
    %645 = arith.mulf %644, %5 : vector<16x16xf32>
    %c21_236 = arith.constant 21 : index
    %c3_237 = arith.constant 3 : index
    %646 = memref.load %arg2[%c21_236, %c3_237] : memref<24x4xf32, #tpu.memory_space<smem>>
    %647 = vector.broadcast %646 : f32 to vector<16x16xf32>
    %648 = arith.mulf %647, %7 : vector<16x16xf32>
    %649 = arith.addf %639, %642 : vector<16x16xf32>
    %650 = arith.addf %645, %648 : vector<16x16xf32>
    %651 = arith.addf %649, %650 : vector<16x16xf32>
    %cst_238 = arith.constant 0.000000e+00 : f32
    %652 = vector.broadcast %cst_238 : f32 to vector<16x16xf32>
    %653 = arith.maximumf %651, %652 : vector<16x16xf32>
    %c22 = arith.constant 22 : index
    %c0_239 = arith.constant 0 : index
    %654 = memref.load %arg2[%c22, %c0_239] : memref<24x4xf32, #tpu.memory_space<smem>>
    %655 = vector.broadcast %654 : f32 to vector<16x16xf32>
    %656 = arith.mulf %655, %1 : vector<16x16xf32>
    %c22_240 = arith.constant 22 : index
    %c1_241 = arith.constant 1 : index
    %657 = memref.load %arg2[%c22_240, %c1_241] : memref<24x4xf32, #tpu.memory_space<smem>>
    %658 = vector.broadcast %657 : f32 to vector<16x16xf32>
    %659 = arith.mulf %658, %3 : vector<16x16xf32>
    %c22_242 = arith.constant 22 : index
    %c2_243 = arith.constant 2 : index
    %660 = memref.load %arg2[%c22_242, %c2_243] : memref<24x4xf32, #tpu.memory_space<smem>>
    %661 = vector.broadcast %660 : f32 to vector<16x16xf32>
    %662 = arith.mulf %661, %5 : vector<16x16xf32>
    %c22_244 = arith.constant 22 : index
    %c3_245 = arith.constant 3 : index
    %663 = memref.load %arg2[%c22_244, %c3_245] : memref<24x4xf32, #tpu.memory_space<smem>>
    %664 = vector.broadcast %663 : f32 to vector<16x16xf32>
    %665 = arith.mulf %664, %7 : vector<16x16xf32>
    %666 = arith.addf %656, %659 : vector<16x16xf32>
    %667 = arith.addf %662, %665 : vector<16x16xf32>
    %668 = arith.addf %666, %667 : vector<16x16xf32>
    %cst_246 = arith.constant 0.000000e+00 : f32
    %669 = vector.broadcast %cst_246 : f32 to vector<16x16xf32>
    %670 = arith.maximumf %668, %669 : vector<16x16xf32>
    %c23 = arith.constant 23 : index
    %c0_247 = arith.constant 0 : index
    %671 = memref.load %arg2[%c23, %c0_247] : memref<24x4xf32, #tpu.memory_space<smem>>
    %672 = vector.broadcast %671 : f32 to vector<16x16xf32>
    %673 = arith.mulf %672, %1 : vector<16x16xf32>
    %c23_248 = arith.constant 23 : index
    %c1_249 = arith.constant 1 : index
    %674 = memref.load %arg2[%c23_248, %c1_249] : memref<24x4xf32, #tpu.memory_space<smem>>
    %675 = vector.broadcast %674 : f32 to vector<16x16xf32>
    %676 = arith.mulf %675, %3 : vector<16x16xf32>
    %c23_250 = arith.constant 23 : index
    %c2_251 = arith.constant 2 : index
    %677 = memref.load %arg2[%c23_250, %c2_251] : memref<24x4xf32, #tpu.memory_space<smem>>
    %678 = vector.broadcast %677 : f32 to vector<16x16xf32>
    %679 = arith.mulf %678, %5 : vector<16x16xf32>
    %c23_252 = arith.constant 23 : index
    %c3_253 = arith.constant 3 : index
    %680 = memref.load %arg2[%c23_252, %c3_253] : memref<24x4xf32, #tpu.memory_space<smem>>
    %681 = vector.broadcast %680 : f32 to vector<16x16xf32>
    %682 = arith.mulf %681, %7 : vector<16x16xf32>
    %683 = arith.addf %673, %676 : vector<16x16xf32>
    %684 = arith.addf %679, %682 : vector<16x16xf32>
    %685 = arith.addf %683, %684 : vector<16x16xf32>
    %cst_254 = arith.constant 0.000000e+00 : f32
    %686 = vector.broadcast %cst_254 : f32 to vector<16x16xf32>
    %687 = arith.maximumf %685, %686 : vector<16x16xf32>
    %c0_255 = arith.constant 0 : index
    %c0_256 = arith.constant 0 : index
    %c0_257 = arith.constant 0 : index
    %688 = vector.load %arg5[%c0_255, %c0_256, %c0_257] : memref<16x20x20xf32, #tpu.memory_space<vmem>>, vector<1x16x16xf32>
    %689 = vector.shape_cast %688 : vector<1x16x16xf32> to vector<16x16xf32>
    %690 = arith.mulf %689, %568 : vector<16x16xf32>
    %c1_258 = arith.constant 1 : index
    %c0_259 = arith.constant 0 : index
    %c0_260 = arith.constant 0 : index
    %691 = vector.load %arg5[%c1_258, %c0_259, %c0_260] : memref<16x20x20xf32, #tpu.memory_space<vmem>>, vector<1x16x16xf32>
    %692 = vector.shape_cast %691 : vector<1x16x16xf32> to vector<16x16xf32>
    %693 = arith.mulf %692, %585 : vector<16x16xf32>
    %c2_261 = arith.constant 2 : index
    %c0_262 = arith.constant 0 : index
    %c0_263 = arith.constant 0 : index
    %694 = vector.load %arg5[%c2_261, %c0_262, %c0_263] : memref<16x20x20xf32, #tpu.memory_space<vmem>>, vector<1x16x16xf32>
    %695 = vector.shape_cast %694 : vector<1x16x16xf32> to vector<16x16xf32>
    %696 = arith.mulf %695, %602 : vector<16x16xf32>
    %c3_264 = arith.constant 3 : index
    %c0_265 = arith.constant 0 : index
    %c0_266 = arith.constant 0 : index
    %697 = vector.load %arg5[%c3_264, %c0_265, %c0_266] : memref<16x20x20xf32, #tpu.memory_space<vmem>>, vector<1x16x16xf32>
    %698 = vector.shape_cast %697 : vector<1x16x16xf32> to vector<16x16xf32>
    %699 = arith.mulf %698, %619 : vector<16x16xf32>
    %c4_267 = arith.constant 4 : index
    %c0_268 = arith.constant 0 : index
    %c0_269 = arith.constant 0 : index
    %700 = vector.load %arg5[%c4_267, %c0_268, %c0_269] : memref<16x20x20xf32, #tpu.memory_space<vmem>>, vector<1x16x16xf32>
    %701 = vector.shape_cast %700 : vector<1x16x16xf32> to vector<16x16xf32>
    %702 = arith.mulf %701, %636 : vector<16x16xf32>
    %c5_270 = arith.constant 5 : index
    %c0_271 = arith.constant 0 : index
    %c0_272 = arith.constant 0 : index
    %703 = vector.load %arg5[%c5_270, %c0_271, %c0_272] : memref<16x20x20xf32, #tpu.memory_space<vmem>>, vector<1x16x16xf32>
    %704 = vector.shape_cast %703 : vector<1x16x16xf32> to vector<16x16xf32>
    %705 = arith.mulf %704, %653 : vector<16x16xf32>
    %c6_273 = arith.constant 6 : index
    %c0_274 = arith.constant 0 : index
    %c0_275 = arith.constant 0 : index
    %706 = vector.load %arg5[%c6_273, %c0_274, %c0_275] : memref<16x20x20xf32, #tpu.memory_space<vmem>>, vector<1x16x16xf32>
    %707 = vector.shape_cast %706 : vector<1x16x16xf32> to vector<16x16xf32>
    %708 = arith.mulf %707, %670 : vector<16x16xf32>
    %c7_276 = arith.constant 7 : index
    %c0_277 = arith.constant 0 : index
    %c0_278 = arith.constant 0 : index
    %709 = vector.load %arg5[%c7_276, %c0_277, %c0_278] : memref<16x20x20xf32, #tpu.memory_space<vmem>>, vector<1x16x16xf32>
    %710 = vector.shape_cast %709 : vector<1x16x16xf32> to vector<16x16xf32>
    %711 = arith.mulf %710, %687 : vector<16x16xf32>
    %712 = arith.addf %690, %693 : vector<16x16xf32>
    %713 = arith.addf %696, %699 : vector<16x16xf32>
    %714 = arith.addf %702, %705 : vector<16x16xf32>
    %715 = arith.addf %708, %711 : vector<16x16xf32>
    %716 = arith.addf %712, %713 : vector<16x16xf32>
    %717 = arith.addf %714, %715 : vector<16x16xf32>
    %718 = arith.addf %716, %717 : vector<16x16xf32>
    %c0_279 = arith.constant 0 : index
    %c0_280 = arith.constant 0 : index
    %c2_281 = arith.constant 2 : index
    %719 = vector.load %arg5[%c0_279, %c0_280, %c2_281] : memref<16x20x20xf32, #tpu.memory_space<vmem>>, vector<1x16x16xf32>
    %720 = vector.shape_cast %719 : vector<1x16x16xf32> to vector<16x16xf32>
    %721 = arith.mulf %720, %568 : vector<16x16xf32>
    %c1_282 = arith.constant 1 : index
    %c0_283 = arith.constant 0 : index
    %c2_284 = arith.constant 2 : index
    %722 = vector.load %arg5[%c1_282, %c0_283, %c2_284] : memref<16x20x20xf32, #tpu.memory_space<vmem>>, vector<1x16x16xf32>
    %723 = vector.shape_cast %722 : vector<1x16x16xf32> to vector<16x16xf32>
    %724 = arith.mulf %723, %585 : vector<16x16xf32>
    %c2_285 = arith.constant 2 : index
    %c0_286 = arith.constant 0 : index
    %c2_287 = arith.constant 2 : index
    %725 = vector.load %arg5[%c2_285, %c0_286, %c2_287] : memref<16x20x20xf32, #tpu.memory_space<vmem>>, vector<1x16x16xf32>
    %726 = vector.shape_cast %725 : vector<1x16x16xf32> to vector<16x16xf32>
    %727 = arith.mulf %726, %602 : vector<16x16xf32>
    %c3_288 = arith.constant 3 : index
    %c0_289 = arith.constant 0 : index
    %c2_290 = arith.constant 2 : index
    %728 = vector.load %arg5[%c3_288, %c0_289, %c2_290] : memref<16x20x20xf32, #tpu.memory_space<vmem>>, vector<1x16x16xf32>
    %729 = vector.shape_cast %728 : vector<1x16x16xf32> to vector<16x16xf32>
    %730 = arith.mulf %729, %619 : vector<16x16xf32>
    %c4_291 = arith.constant 4 : index
    %c0_292 = arith.constant 0 : index
    %c2_293 = arith.constant 2 : index
    %731 = vector.load %arg5[%c4_291, %c0_292, %c2_293] : memref<16x20x20xf32, #tpu.memory_space<vmem>>, vector<1x16x16xf32>
    %732 = vector.shape_cast %731 : vector<1x16x16xf32> to vector<16x16xf32>
    %733 = arith.mulf %732, %636 : vector<16x16xf32>
    %c5_294 = arith.constant 5 : index
    %c0_295 = arith.constant 0 : index
    %c2_296 = arith.constant 2 : index
    %734 = vector.load %arg5[%c5_294, %c0_295, %c2_296] : memref<16x20x20xf32, #tpu.memory_space<vmem>>, vector<1x16x16xf32>
    %735 = vector.shape_cast %734 : vector<1x16x16xf32> to vector<16x16xf32>
    %736 = arith.mulf %735, %653 : vector<16x16xf32>
    %c6_297 = arith.constant 6 : index
    %c0_298 = arith.constant 0 : index
    %c2_299 = arith.constant 2 : index
    %737 = vector.load %arg5[%c6_297, %c0_298, %c2_299] : memref<16x20x20xf32, #tpu.memory_space<vmem>>, vector<1x16x16xf32>
    %738 = vector.shape_cast %737 : vector<1x16x16xf32> to vector<16x16xf32>
    %739 = arith.mulf %738, %670 : vector<16x16xf32>
    %c7_300 = arith.constant 7 : index
    %c0_301 = arith.constant 0 : index
    %c2_302 = arith.constant 2 : index
    %740 = vector.load %arg5[%c7_300, %c0_301, %c2_302] : memref<16x20x20xf32, #tpu.memory_space<vmem>>, vector<1x16x16xf32>
    %741 = vector.shape_cast %740 : vector<1x16x16xf32> to vector<16x16xf32>
    %742 = arith.mulf %741, %687 : vector<16x16xf32>
    %743 = arith.addf %721, %724 : vector<16x16xf32>
    %744 = arith.addf %727, %730 : vector<16x16xf32>
    %745 = arith.addf %733, %736 : vector<16x16xf32>
    %746 = arith.addf %739, %742 : vector<16x16xf32>
    %747 = arith.addf %743, %744 : vector<16x16xf32>
    %748 = arith.addf %745, %746 : vector<16x16xf32>
    %749 = arith.addf %747, %748 : vector<16x16xf32>
    %c0_303 = arith.constant 0 : index
    %c0_304 = arith.constant 0 : index
    %c4_305 = arith.constant 4 : index
    %750 = vector.load %arg5[%c0_303, %c0_304, %c4_305] : memref<16x20x20xf32, #tpu.memory_space<vmem>>, vector<1x16x16xf32>
    %751 = vector.shape_cast %750 : vector<1x16x16xf32> to vector<16x16xf32>
    %752 = arith.mulf %751, %568 : vector<16x16xf32>
    %c1_306 = arith.constant 1 : index
    %c0_307 = arith.constant 0 : index
    %c4_308 = arith.constant 4 : index
    %753 = vector.load %arg5[%c1_306, %c0_307, %c4_308] : memref<16x20x20xf32, #tpu.memory_space<vmem>>, vector<1x16x16xf32>
    %754 = vector.shape_cast %753 : vector<1x16x16xf32> to vector<16x16xf32>
    %755 = arith.mulf %754, %585 : vector<16x16xf32>
    %c2_309 = arith.constant 2 : index
    %c0_310 = arith.constant 0 : index
    %c4_311 = arith.constant 4 : index
    %756 = vector.load %arg5[%c2_309, %c0_310, %c4_311] : memref<16x20x20xf32, #tpu.memory_space<vmem>>, vector<1x16x16xf32>
    %757 = vector.shape_cast %756 : vector<1x16x16xf32> to vector<16x16xf32>
    %758 = arith.mulf %757, %602 : vector<16x16xf32>
    %c3_312 = arith.constant 3 : index
    %c0_313 = arith.constant 0 : index
    %c4_314 = arith.constant 4 : index
    %759 = vector.load %arg5[%c3_312, %c0_313, %c4_314] : memref<16x20x20xf32, #tpu.memory_space<vmem>>, vector<1x16x16xf32>
    %760 = vector.shape_cast %759 : vector<1x16x16xf32> to vector<16x16xf32>
    %761 = arith.mulf %760, %619 : vector<16x16xf32>
    %c4_315 = arith.constant 4 : index
    %c0_316 = arith.constant 0 : index
    %c4_317 = arith.constant 4 : index
    %762 = vector.load %arg5[%c4_315, %c0_316, %c4_317] : memref<16x20x20xf32, #tpu.memory_space<vmem>>, vector<1x16x16xf32>
    %763 = vector.shape_cast %762 : vector<1x16x16xf32> to vector<16x16xf32>
    %764 = arith.mulf %763, %636 : vector<16x16xf32>
    %c5_318 = arith.constant 5 : index
    %c0_319 = arith.constant 0 : index
    %c4_320 = arith.constant 4 : index
    %765 = vector.load %arg5[%c5_318, %c0_319, %c4_320] : memref<16x20x20xf32, #tpu.memory_space<vmem>>, vector<1x16x16xf32>
    %766 = vector.shape_cast %765 : vector<1x16x16xf32> to vector<16x16xf32>
    %767 = arith.mulf %766, %653 : vector<16x16xf32>
    %c6_321 = arith.constant 6 : index
    %c0_322 = arith.constant 0 : index
    %c4_323 = arith.constant 4 : index
    %768 = vector.load %arg5[%c6_321, %c0_322, %c4_323] : memref<16x20x20xf32, #tpu.memory_space<vmem>>, vector<1x16x16xf32>
    %769 = vector.shape_cast %768 : vector<1x16x16xf32> to vector<16x16xf32>
    %770 = arith.mulf %769, %670 : vector<16x16xf32>
    %c7_324 = arith.constant 7 : index
    %c0_325 = arith.constant 0 : index
    %c4_326 = arith.constant 4 : index
    %771 = vector.load %arg5[%c7_324, %c0_325, %c4_326] : memref<16x20x20xf32, #tpu.memory_space<vmem>>, vector<1x16x16xf32>
    %772 = vector.shape_cast %771 : vector<1x16x16xf32> to vector<16x16xf32>
    %773 = arith.mulf %772, %687 : vector<16x16xf32>
    %774 = arith.addf %752, %755 : vector<16x16xf32>
    %775 = arith.addf %758, %761 : vector<16x16xf32>
    %776 = arith.addf %764, %767 : vector<16x16xf32>
    %777 = arith.addf %770, %773 : vector<16x16xf32>
    %778 = arith.addf %774, %775 : vector<16x16xf32>
    %779 = arith.addf %776, %777 : vector<16x16xf32>
    %780 = arith.addf %778, %779 : vector<16x16xf32>
    %c0_327 = arith.constant 0 : index
    %c2_328 = arith.constant 2 : index
    %c0_329 = arith.constant 0 : index
    %781 = vector.load %arg5[%c0_327, %c2_328, %c0_329] : memref<16x20x20xf32, #tpu.memory_space<vmem>>, vector<1x16x16xf32>
    %782 = vector.shape_cast %781 : vector<1x16x16xf32> to vector<16x16xf32>
    %783 = arith.mulf %782, %568 : vector<16x16xf32>
    %c1_330 = arith.constant 1 : index
    %c2_331 = arith.constant 2 : index
    %c0_332 = arith.constant 0 : index
    %784 = vector.load %arg5[%c1_330, %c2_331, %c0_332] : memref<16x20x20xf32, #tpu.memory_space<vmem>>, vector<1x16x16xf32>
    %785 = vector.shape_cast %784 : vector<1x16x16xf32> to vector<16x16xf32>
    %786 = arith.mulf %785, %585 : vector<16x16xf32>
    %c2_333 = arith.constant 2 : index
    %c2_334 = arith.constant 2 : index
    %c0_335 = arith.constant 0 : index
    %787 = vector.load %arg5[%c2_333, %c2_334, %c0_335] : memref<16x20x20xf32, #tpu.memory_space<vmem>>, vector<1x16x16xf32>
    %788 = vector.shape_cast %787 : vector<1x16x16xf32> to vector<16x16xf32>
    %789 = arith.mulf %788, %602 : vector<16x16xf32>
    %c3_336 = arith.constant 3 : index
    %c2_337 = arith.constant 2 : index
    %c0_338 = arith.constant 0 : index
    %790 = vector.load %arg5[%c3_336, %c2_337, %c0_338] : memref<16x20x20xf32, #tpu.memory_space<vmem>>, vector<1x16x16xf32>
    %791 = vector.shape_cast %790 : vector<1x16x16xf32> to vector<16x16xf32>
    %792 = arith.mulf %791, %619 : vector<16x16xf32>
    %c4_339 = arith.constant 4 : index
    %c2_340 = arith.constant 2 : index
    %c0_341 = arith.constant 0 : index
    %793 = vector.load %arg5[%c4_339, %c2_340, %c0_341] : memref<16x20x20xf32, #tpu.memory_space<vmem>>, vector<1x16x16xf32>
    %794 = vector.shape_cast %793 : vector<1x16x16xf32> to vector<16x16xf32>
    %795 = arith.mulf %794, %636 : vector<16x16xf32>
    %c5_342 = arith.constant 5 : index
    %c2_343 = arith.constant 2 : index
    %c0_344 = arith.constant 0 : index
    %796 = vector.load %arg5[%c5_342, %c2_343, %c0_344] : memref<16x20x20xf32, #tpu.memory_space<vmem>>, vector<1x16x16xf32>
    %797 = vector.shape_cast %796 : vector<1x16x16xf32> to vector<16x16xf32>
    %798 = arith.mulf %797, %653 : vector<16x16xf32>
    %c6_345 = arith.constant 6 : index
    %c2_346 = arith.constant 2 : index
    %c0_347 = arith.constant 0 : index
    %799 = vector.load %arg5[%c6_345, %c2_346, %c0_347] : memref<16x20x20xf32, #tpu.memory_space<vmem>>, vector<1x16x16xf32>
    %800 = vector.shape_cast %799 : vector<1x16x16xf32> to vector<16x16xf32>
    %801 = arith.mulf %800, %670 : vector<16x16xf32>
    %c7_348 = arith.constant 7 : index
    %c2_349 = arith.constant 2 : index
    %c0_350 = arith.constant 0 : index
    %802 = vector.load %arg5[%c7_348, %c2_349, %c0_350] : memref<16x20x20xf32, #tpu.memory_space<vmem>>, vector<1x16x16xf32>
    %803 = vector.shape_cast %802 : vector<1x16x16xf32> to vector<16x16xf32>
    %804 = arith.mulf %803, %687 : vector<16x16xf32>
    %805 = arith.addf %783, %786 : vector<16x16xf32>
    %806 = arith.addf %789, %792 : vector<16x16xf32>
    %807 = arith.addf %795, %798 : vector<16x16xf32>
    %808 = arith.addf %801, %804 : vector<16x16xf32>
    %809 = arith.addf %805, %806 : vector<16x16xf32>
    %810 = arith.addf %807, %808 : vector<16x16xf32>
    %811 = arith.addf %809, %810 : vector<16x16xf32>
    %c0_351 = arith.constant 0 : index
    %c2_352 = arith.constant 2 : index
    %c2_353 = arith.constant 2 : index
    %812 = vector.load %arg5[%c0_351, %c2_352, %c2_353] : memref<16x20x20xf32, #tpu.memory_space<vmem>>, vector<1x16x16xf32>
    %813 = vector.shape_cast %812 : vector<1x16x16xf32> to vector<16x16xf32>
    %814 = arith.mulf %813, %568 : vector<16x16xf32>
    %c1_354 = arith.constant 1 : index
    %c2_355 = arith.constant 2 : index
    %c2_356 = arith.constant 2 : index
    %815 = vector.load %arg5[%c1_354, %c2_355, %c2_356] : memref<16x20x20xf32, #tpu.memory_space<vmem>>, vector<1x16x16xf32>
    %816 = vector.shape_cast %815 : vector<1x16x16xf32> to vector<16x16xf32>
    %817 = arith.mulf %816, %585 : vector<16x16xf32>
    %c2_357 = arith.constant 2 : index
    %c2_358 = arith.constant 2 : index
    %c2_359 = arith.constant 2 : index
    %818 = vector.load %arg5[%c2_357, %c2_358, %c2_359] : memref<16x20x20xf32, #tpu.memory_space<vmem>>, vector<1x16x16xf32>
    %819 = vector.shape_cast %818 : vector<1x16x16xf32> to vector<16x16xf32>
    %820 = arith.mulf %819, %602 : vector<16x16xf32>
    %c3_360 = arith.constant 3 : index
    %c2_361 = arith.constant 2 : index
    %c2_362 = arith.constant 2 : index
    %821 = vector.load %arg5[%c3_360, %c2_361, %c2_362] : memref<16x20x20xf32, #tpu.memory_space<vmem>>, vector<1x16x16xf32>
    %822 = vector.shape_cast %821 : vector<1x16x16xf32> to vector<16x16xf32>
    %823 = arith.mulf %822, %619 : vector<16x16xf32>
    %c4_363 = arith.constant 4 : index
    %c2_364 = arith.constant 2 : index
    %c2_365 = arith.constant 2 : index
    %824 = vector.load %arg5[%c4_363, %c2_364, %c2_365] : memref<16x20x20xf32, #tpu.memory_space<vmem>>, vector<1x16x16xf32>
    %825 = vector.shape_cast %824 : vector<1x16x16xf32> to vector<16x16xf32>
    %826 = arith.mulf %825, %636 : vector<16x16xf32>
    %c5_366 = arith.constant 5 : index
    %c2_367 = arith.constant 2 : index
    %c2_368 = arith.constant 2 : index
    %827 = vector.load %arg5[%c5_366, %c2_367, %c2_368] : memref<16x20x20xf32, #tpu.memory_space<vmem>>, vector<1x16x16xf32>
    %828 = vector.shape_cast %827 : vector<1x16x16xf32> to vector<16x16xf32>
    %829 = arith.mulf %828, %653 : vector<16x16xf32>
    %c6_369 = arith.constant 6 : index
    %c2_370 = arith.constant 2 : index
    %c2_371 = arith.constant 2 : index
    %830 = vector.load %arg5[%c6_369, %c2_370, %c2_371] : memref<16x20x20xf32, #tpu.memory_space<vmem>>, vector<1x16x16xf32>
    %831 = vector.shape_cast %830 : vector<1x16x16xf32> to vector<16x16xf32>
    %832 = arith.mulf %831, %670 : vector<16x16xf32>
    %c7_372 = arith.constant 7 : index
    %c2_373 = arith.constant 2 : index
    %c2_374 = arith.constant 2 : index
    %833 = vector.load %arg5[%c7_372, %c2_373, %c2_374] : memref<16x20x20xf32, #tpu.memory_space<vmem>>, vector<1x16x16xf32>
    %834 = vector.shape_cast %833 : vector<1x16x16xf32> to vector<16x16xf32>
    %835 = arith.mulf %834, %687 : vector<16x16xf32>
    %836 = arith.addf %814, %817 : vector<16x16xf32>
    %837 = arith.addf %820, %823 : vector<16x16xf32>
    %838 = arith.addf %826, %829 : vector<16x16xf32>
    %839 = arith.addf %832, %835 : vector<16x16xf32>
    %840 = arith.addf %836, %837 : vector<16x16xf32>
    %841 = arith.addf %838, %839 : vector<16x16xf32>
    %842 = arith.addf %840, %841 : vector<16x16xf32>
    %c0_375 = arith.constant 0 : index
    %c2_376 = arith.constant 2 : index
    %c4_377 = arith.constant 4 : index
    %843 = vector.load %arg5[%c0_375, %c2_376, %c4_377] : memref<16x20x20xf32, #tpu.memory_space<vmem>>, vector<1x16x16xf32>
    %844 = vector.shape_cast %843 : vector<1x16x16xf32> to vector<16x16xf32>
    %845 = arith.mulf %844, %568 : vector<16x16xf32>
    %c1_378 = arith.constant 1 : index
    %c2_379 = arith.constant 2 : index
    %c4_380 = arith.constant 4 : index
    %846 = vector.load %arg5[%c1_378, %c2_379, %c4_380] : memref<16x20x20xf32, #tpu.memory_space<vmem>>, vector<1x16x16xf32>
    %847 = vector.shape_cast %846 : vector<1x16x16xf32> to vector<16x16xf32>
    %848 = arith.mulf %847, %585 : vector<16x16xf32>
    %c2_381 = arith.constant 2 : index
    %c2_382 = arith.constant 2 : index
    %c4_383 = arith.constant 4 : index
    %849 = vector.load %arg5[%c2_381, %c2_382, %c4_383] : memref<16x20x20xf32, #tpu.memory_space<vmem>>, vector<1x16x16xf32>
    %850 = vector.shape_cast %849 : vector<1x16x16xf32> to vector<16x16xf32>
    %851 = arith.mulf %850, %602 : vector<16x16xf32>
    %c3_384 = arith.constant 3 : index
    %c2_385 = arith.constant 2 : index
    %c4_386 = arith.constant 4 : index
    %852 = vector.load %arg5[%c3_384, %c2_385, %c4_386] : memref<16x20x20xf32, #tpu.memory_space<vmem>>, vector<1x16x16xf32>
    %853 = vector.shape_cast %852 : vector<1x16x16xf32> to vector<16x16xf32>
    %854 = arith.mulf %853, %619 : vector<16x16xf32>
    %c4_387 = arith.constant 4 : index
    %c2_388 = arith.constant 2 : index
    %c4_389 = arith.constant 4 : index
    %855 = vector.load %arg5[%c4_387, %c2_388, %c4_389] : memref<16x20x20xf32, #tpu.memory_space<vmem>>, vector<1x16x16xf32>
    %856 = vector.shape_cast %855 : vector<1x16x16xf32> to vector<16x16xf32>
    %857 = arith.mulf %856, %636 : vector<16x16xf32>
    %c5_390 = arith.constant 5 : index
    %c2_391 = arith.constant 2 : index
    %c4_392 = arith.constant 4 : index
    %858 = vector.load %arg5[%c5_390, %c2_391, %c4_392] : memref<16x20x20xf32, #tpu.memory_space<vmem>>, vector<1x16x16xf32>
    %859 = vector.shape_cast %858 : vector<1x16x16xf32> to vector<16x16xf32>
    %860 = arith.mulf %859, %653 : vector<16x16xf32>
    %c6_393 = arith.constant 6 : index
    %c2_394 = arith.constant 2 : index
    %c4_395 = arith.constant 4 : index
    %861 = vector.load %arg5[%c6_393, %c2_394, %c4_395] : memref<16x20x20xf32, #tpu.memory_space<vmem>>, vector<1x16x16xf32>
    %862 = vector.shape_cast %861 : vector<1x16x16xf32> to vector<16x16xf32>
    %863 = arith.mulf %862, %670 : vector<16x16xf32>
    %c7_396 = arith.constant 7 : index
    %c2_397 = arith.constant 2 : index
    %c4_398 = arith.constant 4 : index
    %864 = vector.load %arg5[%c7_396, %c2_397, %c4_398] : memref<16x20x20xf32, #tpu.memory_space<vmem>>, vector<1x16x16xf32>
    %865 = vector.shape_cast %864 : vector<1x16x16xf32> to vector<16x16xf32>
    %866 = arith.mulf %865, %687 : vector<16x16xf32>
    %867 = arith.addf %845, %848 : vector<16x16xf32>
    %868 = arith.addf %851, %854 : vector<16x16xf32>
    %869 = arith.addf %857, %860 : vector<16x16xf32>
    %870 = arith.addf %863, %866 : vector<16x16xf32>
    %871 = arith.addf %867, %868 : vector<16x16xf32>
    %872 = arith.addf %869, %870 : vector<16x16xf32>
    %873 = arith.addf %871, %872 : vector<16x16xf32>
    %c0_399 = arith.constant 0 : index
    %c4_400 = arith.constant 4 : index
    %c0_401 = arith.constant 0 : index
    %874 = vector.load %arg5[%c0_399, %c4_400, %c0_401] : memref<16x20x20xf32, #tpu.memory_space<vmem>>, vector<1x16x16xf32>
    %875 = vector.shape_cast %874 : vector<1x16x16xf32> to vector<16x16xf32>
    %876 = arith.mulf %875, %568 : vector<16x16xf32>
    %c1_402 = arith.constant 1 : index
    %c4_403 = arith.constant 4 : index
    %c0_404 = arith.constant 0 : index
    %877 = vector.load %arg5[%c1_402, %c4_403, %c0_404] : memref<16x20x20xf32, #tpu.memory_space<vmem>>, vector<1x16x16xf32>
    %878 = vector.shape_cast %877 : vector<1x16x16xf32> to vector<16x16xf32>
    %879 = arith.mulf %878, %585 : vector<16x16xf32>
    %c2_405 = arith.constant 2 : index
    %c4_406 = arith.constant 4 : index
    %c0_407 = arith.constant 0 : index
    %880 = vector.load %arg5[%c2_405, %c4_406, %c0_407] : memref<16x20x20xf32, #tpu.memory_space<vmem>>, vector<1x16x16xf32>
    %881 = vector.shape_cast %880 : vector<1x16x16xf32> to vector<16x16xf32>
    %882 = arith.mulf %881, %602 : vector<16x16xf32>
    %c3_408 = arith.constant 3 : index
    %c4_409 = arith.constant 4 : index
    %c0_410 = arith.constant 0 : index
    %883 = vector.load %arg5[%c3_408, %c4_409, %c0_410] : memref<16x20x20xf32, #tpu.memory_space<vmem>>, vector<1x16x16xf32>
    %884 = vector.shape_cast %883 : vector<1x16x16xf32> to vector<16x16xf32>
    %885 = arith.mulf %884, %619 : vector<16x16xf32>
    %c4_411 = arith.constant 4 : index
    %c4_412 = arith.constant 4 : index
    %c0_413 = arith.constant 0 : index
    %886 = vector.load %arg5[%c4_411, %c4_412, %c0_413] : memref<16x20x20xf32, #tpu.memory_space<vmem>>, vector<1x16x16xf32>
    %887 = vector.shape_cast %886 : vector<1x16x16xf32> to vector<16x16xf32>
    %888 = arith.mulf %887, %636 : vector<16x16xf32>
    %c5_414 = arith.constant 5 : index
    %c4_415 = arith.constant 4 : index
    %c0_416 = arith.constant 0 : index
    %889 = vector.load %arg5[%c5_414, %c4_415, %c0_416] : memref<16x20x20xf32, #tpu.memory_space<vmem>>, vector<1x16x16xf32>
    %890 = vector.shape_cast %889 : vector<1x16x16xf32> to vector<16x16xf32>
    %891 = arith.mulf %890, %653 : vector<16x16xf32>
    %c6_417 = arith.constant 6 : index
    %c4_418 = arith.constant 4 : index
    %c0_419 = arith.constant 0 : index
    %892 = vector.load %arg5[%c6_417, %c4_418, %c0_419] : memref<16x20x20xf32, #tpu.memory_space<vmem>>, vector<1x16x16xf32>
    %893 = vector.shape_cast %892 : vector<1x16x16xf32> to vector<16x16xf32>
    %894 = arith.mulf %893, %670 : vector<16x16xf32>
    %c7_420 = arith.constant 7 : index
    %c4_421 = arith.constant 4 : index
    %c0_422 = arith.constant 0 : index
    %895 = vector.load %arg5[%c7_420, %c4_421, %c0_422] : memref<16x20x20xf32, #tpu.memory_space<vmem>>, vector<1x16x16xf32>
    %896 = vector.shape_cast %895 : vector<1x16x16xf32> to vector<16x16xf32>
    %897 = arith.mulf %896, %687 : vector<16x16xf32>
    %898 = arith.addf %876, %879 : vector<16x16xf32>
    %899 = arith.addf %882, %885 : vector<16x16xf32>
    %900 = arith.addf %888, %891 : vector<16x16xf32>
    %901 = arith.addf %894, %897 : vector<16x16xf32>
    %902 = arith.addf %898, %899 : vector<16x16xf32>
    %903 = arith.addf %900, %901 : vector<16x16xf32>
    %904 = arith.addf %902, %903 : vector<16x16xf32>
    %c0_423 = arith.constant 0 : index
    %c4_424 = arith.constant 4 : index
    %c2_425 = arith.constant 2 : index
    %905 = vector.load %arg5[%c0_423, %c4_424, %c2_425] : memref<16x20x20xf32, #tpu.memory_space<vmem>>, vector<1x16x16xf32>
    %906 = vector.shape_cast %905 : vector<1x16x16xf32> to vector<16x16xf32>
    %907 = arith.mulf %906, %568 : vector<16x16xf32>
    %c1_426 = arith.constant 1 : index
    %c4_427 = arith.constant 4 : index
    %c2_428 = arith.constant 2 : index
    %908 = vector.load %arg5[%c1_426, %c4_427, %c2_428] : memref<16x20x20xf32, #tpu.memory_space<vmem>>, vector<1x16x16xf32>
    %909 = vector.shape_cast %908 : vector<1x16x16xf32> to vector<16x16xf32>
    %910 = arith.mulf %909, %585 : vector<16x16xf32>
    %c2_429 = arith.constant 2 : index
    %c4_430 = arith.constant 4 : index
    %c2_431 = arith.constant 2 : index
    %911 = vector.load %arg5[%c2_429, %c4_430, %c2_431] : memref<16x20x20xf32, #tpu.memory_space<vmem>>, vector<1x16x16xf32>
    %912 = vector.shape_cast %911 : vector<1x16x16xf32> to vector<16x16xf32>
    %913 = arith.mulf %912, %602 : vector<16x16xf32>
    %c3_432 = arith.constant 3 : index
    %c4_433 = arith.constant 4 : index
    %c2_434 = arith.constant 2 : index
    %914 = vector.load %arg5[%c3_432, %c4_433, %c2_434] : memref<16x20x20xf32, #tpu.memory_space<vmem>>, vector<1x16x16xf32>
    %915 = vector.shape_cast %914 : vector<1x16x16xf32> to vector<16x16xf32>
    %916 = arith.mulf %915, %619 : vector<16x16xf32>
    %c4_435 = arith.constant 4 : index
    %c4_436 = arith.constant 4 : index
    %c2_437 = arith.constant 2 : index
    %917 = vector.load %arg5[%c4_435, %c4_436, %c2_437] : memref<16x20x20xf32, #tpu.memory_space<vmem>>, vector<1x16x16xf32>
    %918 = vector.shape_cast %917 : vector<1x16x16xf32> to vector<16x16xf32>
    %919 = arith.mulf %918, %636 : vector<16x16xf32>
    %c5_438 = arith.constant 5 : index
    %c4_439 = arith.constant 4 : index
    %c2_440 = arith.constant 2 : index
    %920 = vector.load %arg5[%c5_438, %c4_439, %c2_440] : memref<16x20x20xf32, #tpu.memory_space<vmem>>, vector<1x16x16xf32>
    %921 = vector.shape_cast %920 : vector<1x16x16xf32> to vector<16x16xf32>
    %922 = arith.mulf %921, %653 : vector<16x16xf32>
    %c6_441 = arith.constant 6 : index
    %c4_442 = arith.constant 4 : index
    %c2_443 = arith.constant 2 : index
    %923 = vector.load %arg5[%c6_441, %c4_442, %c2_443] : memref<16x20x20xf32, #tpu.memory_space<vmem>>, vector<1x16x16xf32>
    %924 = vector.shape_cast %923 : vector<1x16x16xf32> to vector<16x16xf32>
    %925 = arith.mulf %924, %670 : vector<16x16xf32>
    %c7_444 = arith.constant 7 : index
    %c4_445 = arith.constant 4 : index
    %c2_446 = arith.constant 2 : index
    %926 = vector.load %arg5[%c7_444, %c4_445, %c2_446] : memref<16x20x20xf32, #tpu.memory_space<vmem>>, vector<1x16x16xf32>
    %927 = vector.shape_cast %926 : vector<1x16x16xf32> to vector<16x16xf32>
    %928 = arith.mulf %927, %687 : vector<16x16xf32>
    %929 = arith.addf %907, %910 : vector<16x16xf32>
    %930 = arith.addf %913, %916 : vector<16x16xf32>
    %931 = arith.addf %919, %922 : vector<16x16xf32>
    %932 = arith.addf %925, %928 : vector<16x16xf32>
    %933 = arith.addf %929, %930 : vector<16x16xf32>
    %934 = arith.addf %931, %932 : vector<16x16xf32>
    %935 = arith.addf %933, %934 : vector<16x16xf32>
    %c0_447 = arith.constant 0 : index
    %c4_448 = arith.constant 4 : index
    %c4_449 = arith.constant 4 : index
    %936 = vector.load %arg5[%c0_447, %c4_448, %c4_449] : memref<16x20x20xf32, #tpu.memory_space<vmem>>, vector<1x16x16xf32>
    %937 = vector.shape_cast %936 : vector<1x16x16xf32> to vector<16x16xf32>
    %938 = arith.mulf %937, %568 : vector<16x16xf32>
    %c1_450 = arith.constant 1 : index
    %c4_451 = arith.constant 4 : index
    %c4_452 = arith.constant 4 : index
    %939 = vector.load %arg5[%c1_450, %c4_451, %c4_452] : memref<16x20x20xf32, #tpu.memory_space<vmem>>, vector<1x16x16xf32>
    %940 = vector.shape_cast %939 : vector<1x16x16xf32> to vector<16x16xf32>
    %941 = arith.mulf %940, %585 : vector<16x16xf32>
    %c2_453 = arith.constant 2 : index
    %c4_454 = arith.constant 4 : index
    %c4_455 = arith.constant 4 : index
    %942 = vector.load %arg5[%c2_453, %c4_454, %c4_455] : memref<16x20x20xf32, #tpu.memory_space<vmem>>, vector<1x16x16xf32>
    %943 = vector.shape_cast %942 : vector<1x16x16xf32> to vector<16x16xf32>
    %944 = arith.mulf %943, %602 : vector<16x16xf32>
    %c3_456 = arith.constant 3 : index
    %c4_457 = arith.constant 4 : index
    %c4_458 = arith.constant 4 : index
    %945 = vector.load %arg5[%c3_456, %c4_457, %c4_458] : memref<16x20x20xf32, #tpu.memory_space<vmem>>, vector<1x16x16xf32>
    %946 = vector.shape_cast %945 : vector<1x16x16xf32> to vector<16x16xf32>
    %947 = arith.mulf %946, %619 : vector<16x16xf32>
    %c4_459 = arith.constant 4 : index
    %c4_460 = arith.constant 4 : index
    %c4_461 = arith.constant 4 : index
    %948 = vector.load %arg5[%c4_459, %c4_460, %c4_461] : memref<16x20x20xf32, #tpu.memory_space<vmem>>, vector<1x16x16xf32>
    %949 = vector.shape_cast %948 : vector<1x16x16xf32> to vector<16x16xf32>
    %950 = arith.mulf %949, %636 : vector<16x16xf32>
    %c5_462 = arith.constant 5 : index
    %c4_463 = arith.constant 4 : index
    %c4_464 = arith.constant 4 : index
    %951 = vector.load %arg5[%c5_462, %c4_463, %c4_464] : memref<16x20x20xf32, #tpu.memory_space<vmem>>, vector<1x16x16xf32>
    %952 = vector.shape_cast %951 : vector<1x16x16xf32> to vector<16x16xf32>
    %953 = arith.mulf %952, %653 : vector<16x16xf32>
    %c6_465 = arith.constant 6 : index
    %c4_466 = arith.constant 4 : index
    %c4_467 = arith.constant 4 : index
    %954 = vector.load %arg5[%c6_465, %c4_466, %c4_467] : memref<16x20x20xf32, #tpu.memory_space<vmem>>, vector<1x16x16xf32>
    %955 = vector.shape_cast %954 : vector<1x16x16xf32> to vector<16x16xf32>
    %956 = arith.mulf %955, %670 : vector<16x16xf32>
    %c7_468 = arith.constant 7 : index
    %c4_469 = arith.constant 4 : index
    %c4_470 = arith.constant 4 : index
    %957 = vector.load %arg5[%c7_468, %c4_469, %c4_470] : memref<16x20x20xf32, #tpu.memory_space<vmem>>, vector<1x16x16xf32>
    %958 = vector.shape_cast %957 : vector<1x16x16xf32> to vector<16x16xf32>
    %959 = arith.mulf %958, %687 : vector<16x16xf32>
    %960 = arith.addf %938, %941 : vector<16x16xf32>
    %961 = arith.addf %944, %947 : vector<16x16xf32>
    %962 = arith.addf %950, %953 : vector<16x16xf32>
    %963 = arith.addf %956, %959 : vector<16x16xf32>
    %964 = arith.addf %960, %961 : vector<16x16xf32>
    %965 = arith.addf %962, %963 : vector<16x16xf32>
    %966 = arith.addf %964, %965 : vector<16x16xf32>
    %967 = arith.maximumf %718, %749 : vector<16x16xf32>
    %968 = arith.maximumf %780, %811 : vector<16x16xf32>
    %969 = arith.maximumf %842, %873 : vector<16x16xf32>
    %970 = arith.maximumf %904, %935 : vector<16x16xf32>
    %971 = arith.maximumf %967, %968 : vector<16x16xf32>
    %972 = arith.maximumf %969, %970 : vector<16x16xf32>
    %973 = arith.maximumf %971, %972 : vector<16x16xf32>
    %974 = arith.maximumf %973, %966 : vector<16x16xf32>
    %975 = arith.subf %718, %974 : vector<16x16xf32>
    %976 = math.exp %975 : vector<16x16xf32>
    %977 = arith.subf %749, %974 : vector<16x16xf32>
    %978 = math.exp %977 : vector<16x16xf32>
    %979 = arith.subf %780, %974 : vector<16x16xf32>
    %980 = math.exp %979 : vector<16x16xf32>
    %981 = arith.subf %811, %974 : vector<16x16xf32>
    %982 = math.exp %981 : vector<16x16xf32>
    %983 = arith.subf %842, %974 : vector<16x16xf32>
    %984 = math.exp %983 : vector<16x16xf32>
    %985 = arith.subf %873, %974 : vector<16x16xf32>
    %986 = math.exp %985 : vector<16x16xf32>
    %987 = arith.subf %904, %974 : vector<16x16xf32>
    %988 = math.exp %987 : vector<16x16xf32>
    %989 = arith.subf %935, %974 : vector<16x16xf32>
    %990 = math.exp %989 : vector<16x16xf32>
    %991 = arith.subf %966, %974 : vector<16x16xf32>
    %992 = math.exp %991 : vector<16x16xf32>
    %993 = arith.addf %976, %978 : vector<16x16xf32>
    %994 = arith.addf %980, %982 : vector<16x16xf32>
    %995 = arith.addf %984, %986 : vector<16x16xf32>
    %996 = arith.addf %988, %990 : vector<16x16xf32>
    %997 = arith.addf %993, %994 : vector<16x16xf32>
    %998 = arith.addf %995, %996 : vector<16x16xf32>
    %999 = arith.addf %997, %998 : vector<16x16xf32>
    %1000 = arith.addf %999, %992 : vector<16x16xf32>
    %1001 = tpu.reciprocal %1000 {approx = true} : vector<16x16xf32> -> vector<16x16xf32>
    %1002 = arith.mulf %976, %1001 : vector<16x16xf32>
    %1003 = arith.mulf %978, %1001 : vector<16x16xf32>
    %1004 = arith.mulf %980, %1001 : vector<16x16xf32>
    %1005 = arith.mulf %982, %1001 : vector<16x16xf32>
    %1006 = arith.mulf %984, %1001 : vector<16x16xf32>
    %1007 = arith.mulf %986, %1001 : vector<16x16xf32>
    %1008 = arith.mulf %988, %1001 : vector<16x16xf32>
    %1009 = arith.mulf %990, %1001 : vector<16x16xf32>
    %1010 = arith.mulf %992, %1001 : vector<16x16xf32>
    %c8_471 = arith.constant 8 : index
    %c0_472 = arith.constant 0 : index
    %c0_473 = arith.constant 0 : index
    %1011 = vector.load %arg5[%c8_471, %c0_472, %c0_473] : memref<16x20x20xf32, #tpu.memory_space<vmem>>, vector<1x16x16xf32>
    %1012 = vector.shape_cast %1011 : vector<1x16x16xf32> to vector<16x16xf32>
    %1013 = arith.mulf %1012, %1002 : vector<16x16xf32>
    %c8_474 = arith.constant 8 : index
    %c0_475 = arith.constant 0 : index
    %c2_476 = arith.constant 2 : index
    %1014 = vector.load %arg5[%c8_474, %c0_475, %c2_476] : memref<16x20x20xf32, #tpu.memory_space<vmem>>, vector<1x16x16xf32>
    %1015 = vector.shape_cast %1014 : vector<1x16x16xf32> to vector<16x16xf32>
    %1016 = arith.mulf %1015, %1003 : vector<16x16xf32>
    %c8_477 = arith.constant 8 : index
    %c0_478 = arith.constant 0 : index
    %c4_479 = arith.constant 4 : index
    %1017 = vector.load %arg5[%c8_477, %c0_478, %c4_479] : memref<16x20x20xf32, #tpu.memory_space<vmem>>, vector<1x16x16xf32>
    %1018 = vector.shape_cast %1017 : vector<1x16x16xf32> to vector<16x16xf32>
    %1019 = arith.mulf %1018, %1004 : vector<16x16xf32>
    %c8_480 = arith.constant 8 : index
    %c2_481 = arith.constant 2 : index
    %c0_482 = arith.constant 0 : index
    %1020 = vector.load %arg5[%c8_480, %c2_481, %c0_482] : memref<16x20x20xf32, #tpu.memory_space<vmem>>, vector<1x16x16xf32>
    %1021 = vector.shape_cast %1020 : vector<1x16x16xf32> to vector<16x16xf32>
    %1022 = arith.mulf %1021, %1005 : vector<16x16xf32>
    %c8_483 = arith.constant 8 : index
    %c2_484 = arith.constant 2 : index
    %c2_485 = arith.constant 2 : index
    %1023 = vector.load %arg5[%c8_483, %c2_484, %c2_485] : memref<16x20x20xf32, #tpu.memory_space<vmem>>, vector<1x16x16xf32>
    %1024 = vector.shape_cast %1023 : vector<1x16x16xf32> to vector<16x16xf32>
    %1025 = arith.mulf %1024, %1006 : vector<16x16xf32>
    %c8_486 = arith.constant 8 : index
    %c2_487 = arith.constant 2 : index
    %c4_488 = arith.constant 4 : index
    %1026 = vector.load %arg5[%c8_486, %c2_487, %c4_488] : memref<16x20x20xf32, #tpu.memory_space<vmem>>, vector<1x16x16xf32>
    %1027 = vector.shape_cast %1026 : vector<1x16x16xf32> to vector<16x16xf32>
    %1028 = arith.mulf %1027, %1007 : vector<16x16xf32>
    %c8_489 = arith.constant 8 : index
    %c4_490 = arith.constant 4 : index
    %c0_491 = arith.constant 0 : index
    %1029 = vector.load %arg5[%c8_489, %c4_490, %c0_491] : memref<16x20x20xf32, #tpu.memory_space<vmem>>, vector<1x16x16xf32>
    %1030 = vector.shape_cast %1029 : vector<1x16x16xf32> to vector<16x16xf32>
    %1031 = arith.mulf %1030, %1008 : vector<16x16xf32>
    %c8_492 = arith.constant 8 : index
    %c4_493 = arith.constant 4 : index
    %c2_494 = arith.constant 2 : index
    %1032 = vector.load %arg5[%c8_492, %c4_493, %c2_494] : memref<16x20x20xf32, #tpu.memory_space<vmem>>, vector<1x16x16xf32>
    %1033 = vector.shape_cast %1032 : vector<1x16x16xf32> to vector<16x16xf32>
    %1034 = arith.mulf %1033, %1009 : vector<16x16xf32>
    %c8_495 = arith.constant 8 : index
    %c4_496 = arith.constant 4 : index
    %c4_497 = arith.constant 4 : index
    %1035 = vector.load %arg5[%c8_495, %c4_496, %c4_497] : memref<16x20x20xf32, #tpu.memory_space<vmem>>, vector<1x16x16xf32>
    %1036 = vector.shape_cast %1035 : vector<1x16x16xf32> to vector<16x16xf32>
    %1037 = arith.mulf %1036, %1010 : vector<16x16xf32>
    %1038 = arith.addf %1013, %1016 : vector<16x16xf32>
    %1039 = arith.addf %1019, %1022 : vector<16x16xf32>
    %1040 = arith.addf %1025, %1028 : vector<16x16xf32>
    %1041 = arith.addf %1031, %1034 : vector<16x16xf32>
    %1042 = arith.addf %1038, %1039 : vector<16x16xf32>
    %1043 = arith.addf %1040, %1041 : vector<16x16xf32>
    %1044 = arith.addf %1042, %1043 : vector<16x16xf32>
    %1045 = arith.addf %1044, %1037 : vector<16x16xf32>
    %c9_498 = arith.constant 9 : index
    %c0_499 = arith.constant 0 : index
    %c0_500 = arith.constant 0 : index
    %1046 = vector.load %arg5[%c9_498, %c0_499, %c0_500] : memref<16x20x20xf32, #tpu.memory_space<vmem>>, vector<1x16x16xf32>
    %1047 = vector.shape_cast %1046 : vector<1x16x16xf32> to vector<16x16xf32>
    %1048 = arith.mulf %1047, %1002 : vector<16x16xf32>
    %c9_501 = arith.constant 9 : index
    %c0_502 = arith.constant 0 : index
    %c2_503 = arith.constant 2 : index
    %1049 = vector.load %arg5[%c9_501, %c0_502, %c2_503] : memref<16x20x20xf32, #tpu.memory_space<vmem>>, vector<1x16x16xf32>
    %1050 = vector.shape_cast %1049 : vector<1x16x16xf32> to vector<16x16xf32>
    %1051 = arith.mulf %1050, %1003 : vector<16x16xf32>
    %c9_504 = arith.constant 9 : index
    %c0_505 = arith.constant 0 : index
    %c4_506 = arith.constant 4 : index
    %1052 = vector.load %arg5[%c9_504, %c0_505, %c4_506] : memref<16x20x20xf32, #tpu.memory_space<vmem>>, vector<1x16x16xf32>
    %1053 = vector.shape_cast %1052 : vector<1x16x16xf32> to vector<16x16xf32>
    %1054 = arith.mulf %1053, %1004 : vector<16x16xf32>
    %c9_507 = arith.constant 9 : index
    %c2_508 = arith.constant 2 : index
    %c0_509 = arith.constant 0 : index
    %1055 = vector.load %arg5[%c9_507, %c2_508, %c0_509] : memref<16x20x20xf32, #tpu.memory_space<vmem>>, vector<1x16x16xf32>
    %1056 = vector.shape_cast %1055 : vector<1x16x16xf32> to vector<16x16xf32>
    %1057 = arith.mulf %1056, %1005 : vector<16x16xf32>
    %c9_510 = arith.constant 9 : index
    %c2_511 = arith.constant 2 : index
    %c2_512 = arith.constant 2 : index
    %1058 = vector.load %arg5[%c9_510, %c2_511, %c2_512] : memref<16x20x20xf32, #tpu.memory_space<vmem>>, vector<1x16x16xf32>
    %1059 = vector.shape_cast %1058 : vector<1x16x16xf32> to vector<16x16xf32>
    %1060 = arith.mulf %1059, %1006 : vector<16x16xf32>
    %c9_513 = arith.constant 9 : index
    %c2_514 = arith.constant 2 : index
    %c4_515 = arith.constant 4 : index
    %1061 = vector.load %arg5[%c9_513, %c2_514, %c4_515] : memref<16x20x20xf32, #tpu.memory_space<vmem>>, vector<1x16x16xf32>
    %1062 = vector.shape_cast %1061 : vector<1x16x16xf32> to vector<16x16xf32>
    %1063 = arith.mulf %1062, %1007 : vector<16x16xf32>
    %c9_516 = arith.constant 9 : index
    %c4_517 = arith.constant 4 : index
    %c0_518 = arith.constant 0 : index
    %1064 = vector.load %arg5[%c9_516, %c4_517, %c0_518] : memref<16x20x20xf32, #tpu.memory_space<vmem>>, vector<1x16x16xf32>
    %1065 = vector.shape_cast %1064 : vector<1x16x16xf32> to vector<16x16xf32>
    %1066 = arith.mulf %1065, %1008 : vector<16x16xf32>
    %c9_519 = arith.constant 9 : index
    %c4_520 = arith.constant 4 : index
    %c2_521 = arith.constant 2 : index
    %1067 = vector.load %arg5[%c9_519, %c4_520, %c2_521] : memref<16x20x20xf32, #tpu.memory_space<vmem>>, vector<1x16x16xf32>
    %1068 = vector.shape_cast %1067 : vector<1x16x16xf32> to vector<16x16xf32>
    %1069 = arith.mulf %1068, %1009 : vector<16x16xf32>
    %c9_522 = arith.constant 9 : index
    %c4_523 = arith.constant 4 : index
    %c4_524 = arith.constant 4 : index
    %1070 = vector.load %arg5[%c9_522, %c4_523, %c4_524] : memref<16x20x20xf32, #tpu.memory_space<vmem>>, vector<1x16x16xf32>
    %1071 = vector.shape_cast %1070 : vector<1x16x16xf32> to vector<16x16xf32>
    %1072 = arith.mulf %1071, %1010 : vector<16x16xf32>
    %1073 = arith.addf %1048, %1051 : vector<16x16xf32>
    %1074 = arith.addf %1054, %1057 : vector<16x16xf32>
    %1075 = arith.addf %1060, %1063 : vector<16x16xf32>
    %1076 = arith.addf %1066, %1069 : vector<16x16xf32>
    %1077 = arith.addf %1073, %1074 : vector<16x16xf32>
    %1078 = arith.addf %1075, %1076 : vector<16x16xf32>
    %1079 = arith.addf %1077, %1078 : vector<16x16xf32>
    %1080 = arith.addf %1079, %1072 : vector<16x16xf32>
    %c10_525 = arith.constant 10 : index
    %c0_526 = arith.constant 0 : index
    %c0_527 = arith.constant 0 : index
    %1081 = vector.load %arg5[%c10_525, %c0_526, %c0_527] : memref<16x20x20xf32, #tpu.memory_space<vmem>>, vector<1x16x16xf32>
    %1082 = vector.shape_cast %1081 : vector<1x16x16xf32> to vector<16x16xf32>
    %1083 = arith.mulf %1082, %1002 : vector<16x16xf32>
    %c10_528 = arith.constant 10 : index
    %c0_529 = arith.constant 0 : index
    %c2_530 = arith.constant 2 : index
    %1084 = vector.load %arg5[%c10_528, %c0_529, %c2_530] : memref<16x20x20xf32, #tpu.memory_space<vmem>>, vector<1x16x16xf32>
    %1085 = vector.shape_cast %1084 : vector<1x16x16xf32> to vector<16x16xf32>
    %1086 = arith.mulf %1085, %1003 : vector<16x16xf32>
    %c10_531 = arith.constant 10 : index
    %c0_532 = arith.constant 0 : index
    %c4_533 = arith.constant 4 : index
    %1087 = vector.load %arg5[%c10_531, %c0_532, %c4_533] : memref<16x20x20xf32, #tpu.memory_space<vmem>>, vector<1x16x16xf32>
    %1088 = vector.shape_cast %1087 : vector<1x16x16xf32> to vector<16x16xf32>
    %1089 = arith.mulf %1088, %1004 : vector<16x16xf32>
    %c10_534 = arith.constant 10 : index
    %c2_535 = arith.constant 2 : index
    %c0_536 = arith.constant 0 : index
    %1090 = vector.load %arg5[%c10_534, %c2_535, %c0_536] : memref<16x20x20xf32, #tpu.memory_space<vmem>>, vector<1x16x16xf32>
    %1091 = vector.shape_cast %1090 : vector<1x16x16xf32> to vector<16x16xf32>
    %1092 = arith.mulf %1091, %1005 : vector<16x16xf32>
    %c10_537 = arith.constant 10 : index
    %c2_538 = arith.constant 2 : index
    %c2_539 = arith.constant 2 : index
    %1093 = vector.load %arg5[%c10_537, %c2_538, %c2_539] : memref<16x20x20xf32, #tpu.memory_space<vmem>>, vector<1x16x16xf32>
    %1094 = vector.shape_cast %1093 : vector<1x16x16xf32> to vector<16x16xf32>
    %1095 = arith.mulf %1094, %1006 : vector<16x16xf32>
    %c10_540 = arith.constant 10 : index
    %c2_541 = arith.constant 2 : index
    %c4_542 = arith.constant 4 : index
    %1096 = vector.load %arg5[%c10_540, %c2_541, %c4_542] : memref<16x20x20xf32, #tpu.memory_space<vmem>>, vector<1x16x16xf32>
    %1097 = vector.shape_cast %1096 : vector<1x16x16xf32> to vector<16x16xf32>
    %1098 = arith.mulf %1097, %1007 : vector<16x16xf32>
    %c10_543 = arith.constant 10 : index
    %c4_544 = arith.constant 4 : index
    %c0_545 = arith.constant 0 : index
    %1099 = vector.load %arg5[%c10_543, %c4_544, %c0_545] : memref<16x20x20xf32, #tpu.memory_space<vmem>>, vector<1x16x16xf32>
    %1100 = vector.shape_cast %1099 : vector<1x16x16xf32> to vector<16x16xf32>
    %1101 = arith.mulf %1100, %1008 : vector<16x16xf32>
    %c10_546 = arith.constant 10 : index
    %c4_547 = arith.constant 4 : index
    %c2_548 = arith.constant 2 : index
    %1102 = vector.load %arg5[%c10_546, %c4_547, %c2_548] : memref<16x20x20xf32, #tpu.memory_space<vmem>>, vector<1x16x16xf32>
    %1103 = vector.shape_cast %1102 : vector<1x16x16xf32> to vector<16x16xf32>
    %1104 = arith.mulf %1103, %1009 : vector<16x16xf32>
    %c10_549 = arith.constant 10 : index
    %c4_550 = arith.constant 4 : index
    %c4_551 = arith.constant 4 : index
    %1105 = vector.load %arg5[%c10_549, %c4_550, %c4_551] : memref<16x20x20xf32, #tpu.memory_space<vmem>>, vector<1x16x16xf32>
    %1106 = vector.shape_cast %1105 : vector<1x16x16xf32> to vector<16x16xf32>
    %1107 = arith.mulf %1106, %1010 : vector<16x16xf32>
    %1108 = arith.addf %1083, %1086 : vector<16x16xf32>
    %1109 = arith.addf %1089, %1092 : vector<16x16xf32>
    %1110 = arith.addf %1095, %1098 : vector<16x16xf32>
    %1111 = arith.addf %1101, %1104 : vector<16x16xf32>
    %1112 = arith.addf %1108, %1109 : vector<16x16xf32>
    %1113 = arith.addf %1110, %1111 : vector<16x16xf32>
    %1114 = arith.addf %1112, %1113 : vector<16x16xf32>
    %1115 = arith.addf %1114, %1107 : vector<16x16xf32>
    %c11_552 = arith.constant 11 : index
    %c0_553 = arith.constant 0 : index
    %c0_554 = arith.constant 0 : index
    %1116 = vector.load %arg5[%c11_552, %c0_553, %c0_554] : memref<16x20x20xf32, #tpu.memory_space<vmem>>, vector<1x16x16xf32>
    %1117 = vector.shape_cast %1116 : vector<1x16x16xf32> to vector<16x16xf32>
    %1118 = arith.mulf %1117, %1002 : vector<16x16xf32>
    %c11_555 = arith.constant 11 : index
    %c0_556 = arith.constant 0 : index
    %c2_557 = arith.constant 2 : index
    %1119 = vector.load %arg5[%c11_555, %c0_556, %c2_557] : memref<16x20x20xf32, #tpu.memory_space<vmem>>, vector<1x16x16xf32>
    %1120 = vector.shape_cast %1119 : vector<1x16x16xf32> to vector<16x16xf32>
    %1121 = arith.mulf %1120, %1003 : vector<16x16xf32>
    %c11_558 = arith.constant 11 : index
    %c0_559 = arith.constant 0 : index
    %c4_560 = arith.constant 4 : index
    %1122 = vector.load %arg5[%c11_558, %c0_559, %c4_560] : memref<16x20x20xf32, #tpu.memory_space<vmem>>, vector<1x16x16xf32>
    %1123 = vector.shape_cast %1122 : vector<1x16x16xf32> to vector<16x16xf32>
    %1124 = arith.mulf %1123, %1004 : vector<16x16xf32>
    %c11_561 = arith.constant 11 : index
    %c2_562 = arith.constant 2 : index
    %c0_563 = arith.constant 0 : index
    %1125 = vector.load %arg5[%c11_561, %c2_562, %c0_563] : memref<16x20x20xf32, #tpu.memory_space<vmem>>, vector<1x16x16xf32>
    %1126 = vector.shape_cast %1125 : vector<1x16x16xf32> to vector<16x16xf32>
    %1127 = arith.mulf %1126, %1005 : vector<16x16xf32>
    %c11_564 = arith.constant 11 : index
    %c2_565 = arith.constant 2 : index
    %c2_566 = arith.constant 2 : index
    %1128 = vector.load %arg5[%c11_564, %c2_565, %c2_566] : memref<16x20x20xf32, #tpu.memory_space<vmem>>, vector<1x16x16xf32>
    %1129 = vector.shape_cast %1128 : vector<1x16x16xf32> to vector<16x16xf32>
    %1130 = arith.mulf %1129, %1006 : vector<16x16xf32>
    %c11_567 = arith.constant 11 : index
    %c2_568 = arith.constant 2 : index
    %c4_569 = arith.constant 4 : index
    %1131 = vector.load %arg5[%c11_567, %c2_568, %c4_569] : memref<16x20x20xf32, #tpu.memory_space<vmem>>, vector<1x16x16xf32>
    %1132 = vector.shape_cast %1131 : vector<1x16x16xf32> to vector<16x16xf32>
    %1133 = arith.mulf %1132, %1007 : vector<16x16xf32>
    %c11_570 = arith.constant 11 : index
    %c4_571 = arith.constant 4 : index
    %c0_572 = arith.constant 0 : index
    %1134 = vector.load %arg5[%c11_570, %c4_571, %c0_572] : memref<16x20x20xf32, #tpu.memory_space<vmem>>, vector<1x16x16xf32>
    %1135 = vector.shape_cast %1134 : vector<1x16x16xf32> to vector<16x16xf32>
    %1136 = arith.mulf %1135, %1008 : vector<16x16xf32>
    %c11_573 = arith.constant 11 : index
    %c4_574 = arith.constant 4 : index
    %c2_575 = arith.constant 2 : index
    %1137 = vector.load %arg5[%c11_573, %c4_574, %c2_575] : memref<16x20x20xf32, #tpu.memory_space<vmem>>, vector<1x16x16xf32>
    %1138 = vector.shape_cast %1137 : vector<1x16x16xf32> to vector<16x16xf32>
    %1139 = arith.mulf %1138, %1009 : vector<16x16xf32>
    %c11_576 = arith.constant 11 : index
    %c4_577 = arith.constant 4 : index
    %c4_578 = arith.constant 4 : index
    %1140 = vector.load %arg5[%c11_576, %c4_577, %c4_578] : memref<16x20x20xf32, #tpu.memory_space<vmem>>, vector<1x16x16xf32>
    %1141 = vector.shape_cast %1140 : vector<1x16x16xf32> to vector<16x16xf32>
    %1142 = arith.mulf %1141, %1010 : vector<16x16xf32>
    %1143 = arith.addf %1118, %1121 : vector<16x16xf32>
    %1144 = arith.addf %1124, %1127 : vector<16x16xf32>
    %1145 = arith.addf %1130, %1133 : vector<16x16xf32>
    %1146 = arith.addf %1136, %1139 : vector<16x16xf32>
    %1147 = arith.addf %1143, %1144 : vector<16x16xf32>
    %1148 = arith.addf %1145, %1146 : vector<16x16xf32>
    %1149 = arith.addf %1147, %1148 : vector<16x16xf32>
    %1150 = arith.addf %1149, %1142 : vector<16x16xf32>
    %c12_579 = arith.constant 12 : index
    %c0_580 = arith.constant 0 : index
    %c0_581 = arith.constant 0 : index
    %1151 = vector.load %arg5[%c12_579, %c0_580, %c0_581] : memref<16x20x20xf32, #tpu.memory_space<vmem>>, vector<1x16x16xf32>
    %1152 = vector.shape_cast %1151 : vector<1x16x16xf32> to vector<16x16xf32>
    %1153 = arith.mulf %1152, %1002 : vector<16x16xf32>
    %c12_582 = arith.constant 12 : index
    %c0_583 = arith.constant 0 : index
    %c2_584 = arith.constant 2 : index
    %1154 = vector.load %arg5[%c12_582, %c0_583, %c2_584] : memref<16x20x20xf32, #tpu.memory_space<vmem>>, vector<1x16x16xf32>
    %1155 = vector.shape_cast %1154 : vector<1x16x16xf32> to vector<16x16xf32>
    %1156 = arith.mulf %1155, %1003 : vector<16x16xf32>
    %c12_585 = arith.constant 12 : index
    %c0_586 = arith.constant 0 : index
    %c4_587 = arith.constant 4 : index
    %1157 = vector.load %arg5[%c12_585, %c0_586, %c4_587] : memref<16x20x20xf32, #tpu.memory_space<vmem>>, vector<1x16x16xf32>
    %1158 = vector.shape_cast %1157 : vector<1x16x16xf32> to vector<16x16xf32>
    %1159 = arith.mulf %1158, %1004 : vector<16x16xf32>
    %c12_588 = arith.constant 12 : index
    %c2_589 = arith.constant 2 : index
    %c0_590 = arith.constant 0 : index
    %1160 = vector.load %arg5[%c12_588, %c2_589, %c0_590] : memref<16x20x20xf32, #tpu.memory_space<vmem>>, vector<1x16x16xf32>
    %1161 = vector.shape_cast %1160 : vector<1x16x16xf32> to vector<16x16xf32>
    %1162 = arith.mulf %1161, %1005 : vector<16x16xf32>
    %c12_591 = arith.constant 12 : index
    %c2_592 = arith.constant 2 : index
    %c2_593 = arith.constant 2 : index
    %1163 = vector.load %arg5[%c12_591, %c2_592, %c2_593] : memref<16x20x20xf32, #tpu.memory_space<vmem>>, vector<1x16x16xf32>
    %1164 = vector.shape_cast %1163 : vector<1x16x16xf32> to vector<16x16xf32>
    %1165 = arith.mulf %1164, %1006 : vector<16x16xf32>
    %c12_594 = arith.constant 12 : index
    %c2_595 = arith.constant 2 : index
    %c4_596 = arith.constant 4 : index
    %1166 = vector.load %arg5[%c12_594, %c2_595, %c4_596] : memref<16x20x20xf32, #tpu.memory_space<vmem>>, vector<1x16x16xf32>
    %1167 = vector.shape_cast %1166 : vector<1x16x16xf32> to vector<16x16xf32>
    %1168 = arith.mulf %1167, %1007 : vector<16x16xf32>
    %c12_597 = arith.constant 12 : index
    %c4_598 = arith.constant 4 : index
    %c0_599 = arith.constant 0 : index
    %1169 = vector.load %arg5[%c12_597, %c4_598, %c0_599] : memref<16x20x20xf32, #tpu.memory_space<vmem>>, vector<1x16x16xf32>
    %1170 = vector.shape_cast %1169 : vector<1x16x16xf32> to vector<16x16xf32>
    %1171 = arith.mulf %1170, %1008 : vector<16x16xf32>
    %c12_600 = arith.constant 12 : index
    %c4_601 = arith.constant 4 : index
    %c2_602 = arith.constant 2 : index
    %1172 = vector.load %arg5[%c12_600, %c4_601, %c2_602] : memref<16x20x20xf32, #tpu.memory_space<vmem>>, vector<1x16x16xf32>
    %1173 = vector.shape_cast %1172 : vector<1x16x16xf32> to vector<16x16xf32>
    %1174 = arith.mulf %1173, %1009 : vector<16x16xf32>
    %c12_603 = arith.constant 12 : index
    %c4_604 = arith.constant 4 : index
    %c4_605 = arith.constant 4 : index
    %1175 = vector.load %arg5[%c12_603, %c4_604, %c4_605] : memref<16x20x20xf32, #tpu.memory_space<vmem>>, vector<1x16x16xf32>
    %1176 = vector.shape_cast %1175 : vector<1x16x16xf32> to vector<16x16xf32>
    %1177 = arith.mulf %1176, %1010 : vector<16x16xf32>
    %1178 = arith.addf %1153, %1156 : vector<16x16xf32>
    %1179 = arith.addf %1159, %1162 : vector<16x16xf32>
    %1180 = arith.addf %1165, %1168 : vector<16x16xf32>
    %1181 = arith.addf %1171, %1174 : vector<16x16xf32>
    %1182 = arith.addf %1178, %1179 : vector<16x16xf32>
    %1183 = arith.addf %1180, %1181 : vector<16x16xf32>
    %1184 = arith.addf %1182, %1183 : vector<16x16xf32>
    %1185 = arith.addf %1184, %1177 : vector<16x16xf32>
    %c13_606 = arith.constant 13 : index
    %c0_607 = arith.constant 0 : index
    %c0_608 = arith.constant 0 : index
    %1186 = vector.load %arg5[%c13_606, %c0_607, %c0_608] : memref<16x20x20xf32, #tpu.memory_space<vmem>>, vector<1x16x16xf32>
    %1187 = vector.shape_cast %1186 : vector<1x16x16xf32> to vector<16x16xf32>
    %1188 = arith.mulf %1187, %1002 : vector<16x16xf32>
    %c13_609 = arith.constant 13 : index
    %c0_610 = arith.constant 0 : index
    %c2_611 = arith.constant 2 : index
    %1189 = vector.load %arg5[%c13_609, %c0_610, %c2_611] : memref<16x20x20xf32, #tpu.memory_space<vmem>>, vector<1x16x16xf32>
    %1190 = vector.shape_cast %1189 : vector<1x16x16xf32> to vector<16x16xf32>
    %1191 = arith.mulf %1190, %1003 : vector<16x16xf32>
    %c13_612 = arith.constant 13 : index
    %c0_613 = arith.constant 0 : index
    %c4_614 = arith.constant 4 : index
    %1192 = vector.load %arg5[%c13_612, %c0_613, %c4_614] : memref<16x20x20xf32, #tpu.memory_space<vmem>>, vector<1x16x16xf32>
    %1193 = vector.shape_cast %1192 : vector<1x16x16xf32> to vector<16x16xf32>
    %1194 = arith.mulf %1193, %1004 : vector<16x16xf32>
    %c13_615 = arith.constant 13 : index
    %c2_616 = arith.constant 2 : index
    %c0_617 = arith.constant 0 : index
    %1195 = vector.load %arg5[%c13_615, %c2_616, %c0_617] : memref<16x20x20xf32, #tpu.memory_space<vmem>>, vector<1x16x16xf32>
    %1196 = vector.shape_cast %1195 : vector<1x16x16xf32> to vector<16x16xf32>
    %1197 = arith.mulf %1196, %1005 : vector<16x16xf32>
    %c13_618 = arith.constant 13 : index
    %c2_619 = arith.constant 2 : index
    %c2_620 = arith.constant 2 : index
    %1198 = vector.load %arg5[%c13_618, %c2_619, %c2_620] : memref<16x20x20xf32, #tpu.memory_space<vmem>>, vector<1x16x16xf32>
    %1199 = vector.shape_cast %1198 : vector<1x16x16xf32> to vector<16x16xf32>
    %1200 = arith.mulf %1199, %1006 : vector<16x16xf32>
    %c13_621 = arith.constant 13 : index
    %c2_622 = arith.constant 2 : index
    %c4_623 = arith.constant 4 : index
    %1201 = vector.load %arg5[%c13_621, %c2_622, %c4_623] : memref<16x20x20xf32, #tpu.memory_space<vmem>>, vector<1x16x16xf32>
    %1202 = vector.shape_cast %1201 : vector<1x16x16xf32> to vector<16x16xf32>
    %1203 = arith.mulf %1202, %1007 : vector<16x16xf32>
    %c13_624 = arith.constant 13 : index
    %c4_625 = arith.constant 4 : index
    %c0_626 = arith.constant 0 : index
    %1204 = vector.load %arg5[%c13_624, %c4_625, %c0_626] : memref<16x20x20xf32, #tpu.memory_space<vmem>>, vector<1x16x16xf32>
    %1205 = vector.shape_cast %1204 : vector<1x16x16xf32> to vector<16x16xf32>
    %1206 = arith.mulf %1205, %1008 : vector<16x16xf32>
    %c13_627 = arith.constant 13 : index
    %c4_628 = arith.constant 4 : index
    %c2_629 = arith.constant 2 : index
    %1207 = vector.load %arg5[%c13_627, %c4_628, %c2_629] : memref<16x20x20xf32, #tpu.memory_space<vmem>>, vector<1x16x16xf32>
    %1208 = vector.shape_cast %1207 : vector<1x16x16xf32> to vector<16x16xf32>
    %1209 = arith.mulf %1208, %1009 : vector<16x16xf32>
    %c13_630 = arith.constant 13 : index
    %c4_631 = arith.constant 4 : index
    %c4_632 = arith.constant 4 : index
    %1210 = vector.load %arg5[%c13_630, %c4_631, %c4_632] : memref<16x20x20xf32, #tpu.memory_space<vmem>>, vector<1x16x16xf32>
    %1211 = vector.shape_cast %1210 : vector<1x16x16xf32> to vector<16x16xf32>
    %1212 = arith.mulf %1211, %1010 : vector<16x16xf32>
    %1213 = arith.addf %1188, %1191 : vector<16x16xf32>
    %1214 = arith.addf %1194, %1197 : vector<16x16xf32>
    %1215 = arith.addf %1200, %1203 : vector<16x16xf32>
    %1216 = arith.addf %1206, %1209 : vector<16x16xf32>
    %1217 = arith.addf %1213, %1214 : vector<16x16xf32>
    %1218 = arith.addf %1215, %1216 : vector<16x16xf32>
    %1219 = arith.addf %1217, %1218 : vector<16x16xf32>
    %1220 = arith.addf %1219, %1212 : vector<16x16xf32>
    %c14_633 = arith.constant 14 : index
    %c0_634 = arith.constant 0 : index
    %c0_635 = arith.constant 0 : index
    %1221 = vector.load %arg5[%c14_633, %c0_634, %c0_635] : memref<16x20x20xf32, #tpu.memory_space<vmem>>, vector<1x16x16xf32>
    %1222 = vector.shape_cast %1221 : vector<1x16x16xf32> to vector<16x16xf32>
    %1223 = arith.mulf %1222, %1002 : vector<16x16xf32>
    %c14_636 = arith.constant 14 : index
    %c0_637 = arith.constant 0 : index
    %c2_638 = arith.constant 2 : index
    %1224 = vector.load %arg5[%c14_636, %c0_637, %c2_638] : memref<16x20x20xf32, #tpu.memory_space<vmem>>, vector<1x16x16xf32>
    %1225 = vector.shape_cast %1224 : vector<1x16x16xf32> to vector<16x16xf32>
    %1226 = arith.mulf %1225, %1003 : vector<16x16xf32>
    %c14_639 = arith.constant 14 : index
    %c0_640 = arith.constant 0 : index
    %c4_641 = arith.constant 4 : index
    %1227 = vector.load %arg5[%c14_639, %c0_640, %c4_641] : memref<16x20x20xf32, #tpu.memory_space<vmem>>, vector<1x16x16xf32>
    %1228 = vector.shape_cast %1227 : vector<1x16x16xf32> to vector<16x16xf32>
    %1229 = arith.mulf %1228, %1004 : vector<16x16xf32>
    %c14_642 = arith.constant 14 : index
    %c2_643 = arith.constant 2 : index
    %c0_644 = arith.constant 0 : index
    %1230 = vector.load %arg5[%c14_642, %c2_643, %c0_644] : memref<16x20x20xf32, #tpu.memory_space<vmem>>, vector<1x16x16xf32>
    %1231 = vector.shape_cast %1230 : vector<1x16x16xf32> to vector<16x16xf32>
    %1232 = arith.mulf %1231, %1005 : vector<16x16xf32>
    %c14_645 = arith.constant 14 : index
    %c2_646 = arith.constant 2 : index
    %c2_647 = arith.constant 2 : index
    %1233 = vector.load %arg5[%c14_645, %c2_646, %c2_647] : memref<16x20x20xf32, #tpu.memory_space<vmem>>, vector<1x16x16xf32>
    %1234 = vector.shape_cast %1233 : vector<1x16x16xf32> to vector<16x16xf32>
    %1235 = arith.mulf %1234, %1006 : vector<16x16xf32>
    %c14_648 = arith.constant 14 : index
    %c2_649 = arith.constant 2 : index
    %c4_650 = arith.constant 4 : index
    %1236 = vector.load %arg5[%c14_648, %c2_649, %c4_650] : memref<16x20x20xf32, #tpu.memory_space<vmem>>, vector<1x16x16xf32>
    %1237 = vector.shape_cast %1236 : vector<1x16x16xf32> to vector<16x16xf32>
    %1238 = arith.mulf %1237, %1007 : vector<16x16xf32>
    %c14_651 = arith.constant 14 : index
    %c4_652 = arith.constant 4 : index
    %c0_653 = arith.constant 0 : index
    %1239 = vector.load %arg5[%c14_651, %c4_652, %c0_653] : memref<16x20x20xf32, #tpu.memory_space<vmem>>, vector<1x16x16xf32>
    %1240 = vector.shape_cast %1239 : vector<1x16x16xf32> to vector<16x16xf32>
    %1241 = arith.mulf %1240, %1008 : vector<16x16xf32>
    %c14_654 = arith.constant 14 : index
    %c4_655 = arith.constant 4 : index
    %c2_656 = arith.constant 2 : index
    %1242 = vector.load %arg5[%c14_654, %c4_655, %c2_656] : memref<16x20x20xf32, #tpu.memory_space<vmem>>, vector<1x16x16xf32>
    %1243 = vector.shape_cast %1242 : vector<1x16x16xf32> to vector<16x16xf32>
    %1244 = arith.mulf %1243, %1009 : vector<16x16xf32>
    %c14_657 = arith.constant 14 : index
    %c4_658 = arith.constant 4 : index
    %c4_659 = arith.constant 4 : index
    %1245 = vector.load %arg5[%c14_657, %c4_658, %c4_659] : memref<16x20x20xf32, #tpu.memory_space<vmem>>, vector<1x16x16xf32>
    %1246 = vector.shape_cast %1245 : vector<1x16x16xf32> to vector<16x16xf32>
    %1247 = arith.mulf %1246, %1010 : vector<16x16xf32>
    %1248 = arith.addf %1223, %1226 : vector<16x16xf32>
    %1249 = arith.addf %1229, %1232 : vector<16x16xf32>
    %1250 = arith.addf %1235, %1238 : vector<16x16xf32>
    %1251 = arith.addf %1241, %1244 : vector<16x16xf32>
    %1252 = arith.addf %1248, %1249 : vector<16x16xf32>
    %1253 = arith.addf %1250, %1251 : vector<16x16xf32>
    %1254 = arith.addf %1252, %1253 : vector<16x16xf32>
    %1255 = arith.addf %1254, %1247 : vector<16x16xf32>
    %c15_660 = arith.constant 15 : index
    %c0_661 = arith.constant 0 : index
    %c0_662 = arith.constant 0 : index
    %1256 = vector.load %arg5[%c15_660, %c0_661, %c0_662] : memref<16x20x20xf32, #tpu.memory_space<vmem>>, vector<1x16x16xf32>
    %1257 = vector.shape_cast %1256 : vector<1x16x16xf32> to vector<16x16xf32>
    %1258 = arith.mulf %1257, %1002 : vector<16x16xf32>
    %c15_663 = arith.constant 15 : index
    %c0_664 = arith.constant 0 : index
    %c2_665 = arith.constant 2 : index
    %1259 = vector.load %arg5[%c15_663, %c0_664, %c2_665] : memref<16x20x20xf32, #tpu.memory_space<vmem>>, vector<1x16x16xf32>
    %1260 = vector.shape_cast %1259 : vector<1x16x16xf32> to vector<16x16xf32>
    %1261 = arith.mulf %1260, %1003 : vector<16x16xf32>
    %c15_666 = arith.constant 15 : index
    %c0_667 = arith.constant 0 : index
    %c4_668 = arith.constant 4 : index
    %1262 = vector.load %arg5[%c15_666, %c0_667, %c4_668] : memref<16x20x20xf32, #tpu.memory_space<vmem>>, vector<1x16x16xf32>
    %1263 = vector.shape_cast %1262 : vector<1x16x16xf32> to vector<16x16xf32>
    %1264 = arith.mulf %1263, %1004 : vector<16x16xf32>
    %c15_669 = arith.constant 15 : index
    %c2_670 = arith.constant 2 : index
    %c0_671 = arith.constant 0 : index
    %1265 = vector.load %arg5[%c15_669, %c2_670, %c0_671] : memref<16x20x20xf32, #tpu.memory_space<vmem>>, vector<1x16x16xf32>
    %1266 = vector.shape_cast %1265 : vector<1x16x16xf32> to vector<16x16xf32>
    %1267 = arith.mulf %1266, %1005 : vector<16x16xf32>
    %c15_672 = arith.constant 15 : index
    %c2_673 = arith.constant 2 : index
    %c2_674 = arith.constant 2 : index
    %1268 = vector.load %arg5[%c15_672, %c2_673, %c2_674] : memref<16x20x20xf32, #tpu.memory_space<vmem>>, vector<1x16x16xf32>
    %1269 = vector.shape_cast %1268 : vector<1x16x16xf32> to vector<16x16xf32>
    %1270 = arith.mulf %1269, %1006 : vector<16x16xf32>
    %c15_675 = arith.constant 15 : index
    %c2_676 = arith.constant 2 : index
    %c4_677 = arith.constant 4 : index
    %1271 = vector.load %arg5[%c15_675, %c2_676, %c4_677] : memref<16x20x20xf32, #tpu.memory_space<vmem>>, vector<1x16x16xf32>
    %1272 = vector.shape_cast %1271 : vector<1x16x16xf32> to vector<16x16xf32>
    %1273 = arith.mulf %1272, %1007 : vector<16x16xf32>
    %c15_678 = arith.constant 15 : index
    %c4_679 = arith.constant 4 : index
    %c0_680 = arith.constant 0 : index
    %1274 = vector.load %arg5[%c15_678, %c4_679, %c0_680] : memref<16x20x20xf32, #tpu.memory_space<vmem>>, vector<1x16x16xf32>
    %1275 = vector.shape_cast %1274 : vector<1x16x16xf32> to vector<16x16xf32>
    %1276 = arith.mulf %1275, %1008 : vector<16x16xf32>
    %c15_681 = arith.constant 15 : index
    %c4_682 = arith.constant 4 : index
    %c2_683 = arith.constant 2 : index
    %1277 = vector.load %arg5[%c15_681, %c4_682, %c2_683] : memref<16x20x20xf32, #tpu.memory_space<vmem>>, vector<1x16x16xf32>
    %1278 = vector.shape_cast %1277 : vector<1x16x16xf32> to vector<16x16xf32>
    %1279 = arith.mulf %1278, %1009 : vector<16x16xf32>
    %c15_684 = arith.constant 15 : index
    %c4_685 = arith.constant 4 : index
    %c4_686 = arith.constant 4 : index
    %1280 = vector.load %arg5[%c15_684, %c4_685, %c4_686] : memref<16x20x20xf32, #tpu.memory_space<vmem>>, vector<1x16x16xf32>
    %1281 = vector.shape_cast %1280 : vector<1x16x16xf32> to vector<16x16xf32>
    %1282 = arith.mulf %1281, %1010 : vector<16x16xf32>
    %1283 = arith.addf %1258, %1261 : vector<16x16xf32>
    %1284 = arith.addf %1264, %1267 : vector<16x16xf32>
    %1285 = arith.addf %1270, %1273 : vector<16x16xf32>
    %1286 = arith.addf %1276, %1279 : vector<16x16xf32>
    %1287 = arith.addf %1283, %1284 : vector<16x16xf32>
    %1288 = arith.addf %1285, %1286 : vector<16x16xf32>
    %1289 = arith.addf %1287, %1288 : vector<16x16xf32>
    %1290 = arith.addf %1289, %1282 : vector<16x16xf32>
    %c0_687 = arith.constant 0 : index
    %c0_688 = arith.constant 0 : index
    %1291 = memref.load %arg3[%c0_687, %c0_688] : memref<8x4xf32, #tpu.memory_space<smem>>
    %1292 = vector.broadcast %1291 : f32 to vector<16x16xf32>
    %1293 = arith.mulf %1292, %1045 : vector<16x16xf32>
    %c1_689 = arith.constant 1 : index
    %c0_690 = arith.constant 0 : index
    %1294 = memref.load %arg3[%c1_689, %c0_690] : memref<8x4xf32, #tpu.memory_space<smem>>
    %1295 = vector.broadcast %1294 : f32 to vector<16x16xf32>
    %1296 = arith.mulf %1295, %1080 : vector<16x16xf32>
    %c2_691 = arith.constant 2 : index
    %c0_692 = arith.constant 0 : index
    %1297 = memref.load %arg3[%c2_691, %c0_692] : memref<8x4xf32, #tpu.memory_space<smem>>
    %1298 = vector.broadcast %1297 : f32 to vector<16x16xf32>
    %1299 = arith.mulf %1298, %1115 : vector<16x16xf32>
    %c3_693 = arith.constant 3 : index
    %c0_694 = arith.constant 0 : index
    %1300 = memref.load %arg3[%c3_693, %c0_694] : memref<8x4xf32, #tpu.memory_space<smem>>
    %1301 = vector.broadcast %1300 : f32 to vector<16x16xf32>
    %1302 = arith.mulf %1301, %1150 : vector<16x16xf32>
    %c4_695 = arith.constant 4 : index
    %c0_696 = arith.constant 0 : index
    %1303 = memref.load %arg3[%c4_695, %c0_696] : memref<8x4xf32, #tpu.memory_space<smem>>
    %1304 = vector.broadcast %1303 : f32 to vector<16x16xf32>
    %1305 = arith.mulf %1304, %1185 : vector<16x16xf32>
    %c5_697 = arith.constant 5 : index
    %c0_698 = arith.constant 0 : index
    %1306 = memref.load %arg3[%c5_697, %c0_698] : memref<8x4xf32, #tpu.memory_space<smem>>
    %1307 = vector.broadcast %1306 : f32 to vector<16x16xf32>
    %1308 = arith.mulf %1307, %1220 : vector<16x16xf32>
    %c6_699 = arith.constant 6 : index
    %c0_700 = arith.constant 0 : index
    %1309 = memref.load %arg3[%c6_699, %c0_700] : memref<8x4xf32, #tpu.memory_space<smem>>
    %1310 = vector.broadcast %1309 : f32 to vector<16x16xf32>
    %1311 = arith.mulf %1310, %1255 : vector<16x16xf32>
    %c7_701 = arith.constant 7 : index
    %c0_702 = arith.constant 0 : index
    %1312 = memref.load %arg3[%c7_701, %c0_702] : memref<8x4xf32, #tpu.memory_space<smem>>
    %1313 = vector.broadcast %1312 : f32 to vector<16x16xf32>
    %1314 = arith.mulf %1313, %1290 : vector<16x16xf32>
    %1315 = arith.addf %1293, %1296 : vector<16x16xf32>
    %1316 = arith.addf %1299, %1302 : vector<16x16xf32>
    %1317 = arith.addf %1305, %1308 : vector<16x16xf32>
    %1318 = arith.addf %1311, %1314 : vector<16x16xf32>
    %1319 = arith.addf %1315, %1316 : vector<16x16xf32>
    %1320 = arith.addf %1317, %1318 : vector<16x16xf32>
    %1321 = arith.addf %1319, %1320 : vector<16x16xf32>
    %c0_703 = arith.constant 0 : index
    %c0_704 = arith.constant 0 : index
    %c0_705 = arith.constant 0 : index
    %c0_706 = arith.constant 0 : index
    %1322 = vector.load %arg1[%c0_703, %c0_704, %c0_705, %c0_706] : memref<1x4x16x16xf32, #tpu.memory_space<vmem>>, vector<1x1x16x16xf32>
    %1323 = vector.shape_cast %1322 : vector<1x1x16x16xf32> to vector<16x16xf32>
    %1324 = arith.addf %1321, %1323 : vector<16x16xf32>
    %c0_707 = arith.constant 0 : index
    %c0_708 = arith.constant 0 : index
    %c0_709 = arith.constant 0 : index
    %c0_710 = arith.constant 0 : index
    %1325 = vector.load %arg4[%c0_707, %c0_708, %c0_709, %c0_710] : memref<1x4x16x16xf32, #tpu.memory_space<vmem>>, vector<1x1x16x16xf32>
    %1326 = vector.shape_cast %1325 : vector<1x1x16x16xf32> to vector<16x16xf32>
    %1327 = vector.shape_cast %1324 : vector<16x16xf32> to vector<1x1x16x16xf32>
    tpu.vector_store %arg4[%c0_707, %c0_708, %c0_709, %c0_710], %1327 {strides = array<i32>} : memref<1x4x16x16xf32, #tpu.memory_space<vmem>>, vector<1x1x16x16xf32>,
    %c0_711 = arith.constant 0 : index
    %c1_712 = arith.constant 1 : index
    %1328 = memref.load %arg3[%c0_711, %c1_712] : memref<8x4xf32, #tpu.memory_space<smem>>
    %1329 = vector.broadcast %1328 : f32 to vector<16x16xf32>
    %1330 = arith.mulf %1329, %1045 : vector<16x16xf32>
    %c1_713 = arith.constant 1 : index
    %c1_714 = arith.constant 1 : index
    %1331 = memref.load %arg3[%c1_713, %c1_714] : memref<8x4xf32, #tpu.memory_space<smem>>
    %1332 = vector.broadcast %1331 : f32 to vector<16x16xf32>
    %1333 = arith.mulf %1332, %1080 : vector<16x16xf32>
    %c2_715 = arith.constant 2 : index
    %c1_716 = arith.constant 1 : index
    %1334 = memref.load %arg3[%c2_715, %c1_716] : memref<8x4xf32, #tpu.memory_space<smem>>
    %1335 = vector.broadcast %1334 : f32 to vector<16x16xf32>
    %1336 = arith.mulf %1335, %1115 : vector<16x16xf32>
    %c3_717 = arith.constant 3 : index
    %c1_718 = arith.constant 1 : index
    %1337 = memref.load %arg3[%c3_717, %c1_718] : memref<8x4xf32, #tpu.memory_space<smem>>
    %1338 = vector.broadcast %1337 : f32 to vector<16x16xf32>
    %1339 = arith.mulf %1338, %1150 : vector<16x16xf32>
    %c4_719 = arith.constant 4 : index
    %c1_720 = arith.constant 1 : index
    %1340 = memref.load %arg3[%c4_719, %c1_720] : memref<8x4xf32, #tpu.memory_space<smem>>
    %1341 = vector.broadcast %1340 : f32 to vector<16x16xf32>
    %1342 = arith.mulf %1341, %1185 : vector<16x16xf32>
    %c5_721 = arith.constant 5 : index
    %c1_722 = arith.constant 1 : index
    %1343 = memref.load %arg3[%c5_721, %c1_722] : memref<8x4xf32, #tpu.memory_space<smem>>
    %1344 = vector.broadcast %1343 : f32 to vector<16x16xf32>
    %1345 = arith.mulf %1344, %1220 : vector<16x16xf32>
    %c6_723 = arith.constant 6 : index
    %c1_724 = arith.constant 1 : index
    %1346 = memref.load %arg3[%c6_723, %c1_724] : memref<8x4xf32, #tpu.memory_space<smem>>
    %1347 = vector.broadcast %1346 : f32 to vector<16x16xf32>
    %1348 = arith.mulf %1347, %1255 : vector<16x16xf32>
    %c7_725 = arith.constant 7 : index
    %c1_726 = arith.constant 1 : index
    %1349 = memref.load %arg3[%c7_725, %c1_726] : memref<8x4xf32, #tpu.memory_space<smem>>
    %1350 = vector.broadcast %1349 : f32 to vector<16x16xf32>
    %1351 = arith.mulf %1350, %1290 : vector<16x16xf32>
    %1352 = arith.addf %1330, %1333 : vector<16x16xf32>
    %1353 = arith.addf %1336, %1339 : vector<16x16xf32>
    %1354 = arith.addf %1342, %1345 : vector<16x16xf32>
    %1355 = arith.addf %1348, %1351 : vector<16x16xf32>
    %1356 = arith.addf %1352, %1353 : vector<16x16xf32>
    %1357 = arith.addf %1354, %1355 : vector<16x16xf32>
    %1358 = arith.addf %1356, %1357 : vector<16x16xf32>
    %c0_727 = arith.constant 0 : index
    %c1_728 = arith.constant 1 : index
    %c0_729 = arith.constant 0 : index
    %c0_730 = arith.constant 0 : index
    %1359 = vector.load %arg1[%c0_727, %c1_728, %c0_729, %c0_730] : memref<1x4x16x16xf32, #tpu.memory_space<vmem>>, vector<1x1x16x16xf32>
    %1360 = vector.shape_cast %1359 : vector<1x1x16x16xf32> to vector<16x16xf32>
    %1361 = arith.addf %1358, %1360 : vector<16x16xf32>
    %c0_731 = arith.constant 0 : index
    %c1_732 = arith.constant 1 : index
    %c0_733 = arith.constant 0 : index
    %c0_734 = arith.constant 0 : index
    %1362 = vector.load %arg4[%c0_731, %c1_732, %c0_733, %c0_734] : memref<1x4x16x16xf32, #tpu.memory_space<vmem>>, vector<1x1x16x16xf32>
    %1363 = vector.shape_cast %1362 : vector<1x1x16x16xf32> to vector<16x16xf32>
    %1364 = vector.shape_cast %1361 : vector<16x16xf32> to vector<1x1x16x16xf32>
    tpu.vector_store %arg4[%c0_731, %c1_732, %c0_733, %c0_734], %1364 {strides = array<i32>} : memref<1x4x16x16xf32, #tpu.memory_space<vmem>>, vector<1x1x16x16xf32>,
    %c0_735 = arith.constant 0 : index
    %c2_736 = arith.constant 2 : index
    %1365 = memref.load %arg3[%c0_735, %c2_736] : memref<8x4xf32, #tpu.memory_space<smem>>
    %1366 = vector.broadcast %1365 : f32 to vector<16x16xf32>
    %1367 = arith.mulf %1366, %1045 : vector<16x16xf32>
    %c1_737 = arith.constant 1 : index
    %c2_738 = arith.constant 2 : index
    %1368 = memref.load %arg3[%c1_737, %c2_738] : memref<8x4xf32, #tpu.memory_space<smem>>
    %1369 = vector.broadcast %1368 : f32 to vector<16x16xf32>
    %1370 = arith.mulf %1369, %1080 : vector<16x16xf32>
    %c2_739 = arith.constant 2 : index
    %c2_740 = arith.constant 2 : index
    %1371 = memref.load %arg3[%c2_739, %c2_740] : memref<8x4xf32, #tpu.memory_space<smem>>
    %1372 = vector.broadcast %1371 : f32 to vector<16x16xf32>
    %1373 = arith.mulf %1372, %1115 : vector<16x16xf32>
    %c3_741 = arith.constant 3 : index
    %c2_742 = arith.constant 2 : index
    %1374 = memref.load %arg3[%c3_741, %c2_742] : memref<8x4xf32, #tpu.memory_space<smem>>
    %1375 = vector.broadcast %1374 : f32 to vector<16x16xf32>
    %1376 = arith.mulf %1375, %1150 : vector<16x16xf32>
    %c4_743 = arith.constant 4 : index
    %c2_744 = arith.constant 2 : index
    %1377 = memref.load %arg3[%c4_743, %c2_744] : memref<8x4xf32, #tpu.memory_space<smem>>
    %1378 = vector.broadcast %1377 : f32 to vector<16x16xf32>
    %1379 = arith.mulf %1378, %1185 : vector<16x16xf32>
    %c5_745 = arith.constant 5 : index
    %c2_746 = arith.constant 2 : index
    %1380 = memref.load %arg3[%c5_745, %c2_746] : memref<8x4xf32, #tpu.memory_space<smem>>
    %1381 = vector.broadcast %1380 : f32 to vector<16x16xf32>
    %1382 = arith.mulf %1381, %1220 : vector<16x16xf32>
    %c6_747 = arith.constant 6 : index
    %c2_748 = arith.constant 2 : index
    %1383 = memref.load %arg3[%c6_747, %c2_748] : memref<8x4xf32, #tpu.memory_space<smem>>
    %1384 = vector.broadcast %1383 : f32 to vector<16x16xf32>
    %1385 = arith.mulf %1384, %1255 : vector<16x16xf32>
    %c7_749 = arith.constant 7 : index
    %c2_750 = arith.constant 2 : index
    %1386 = memref.load %arg3[%c7_749, %c2_750] : memref<8x4xf32, #tpu.memory_space<smem>>
    %1387 = vector.broadcast %1386 : f32 to vector<16x16xf32>
    %1388 = arith.mulf %1387, %1290 : vector<16x16xf32>
    %1389 = arith.addf %1367, %1370 : vector<16x16xf32>
    %1390 = arith.addf %1373, %1376 : vector<16x16xf32>
    %1391 = arith.addf %1379, %1382 : vector<16x16xf32>
    %1392 = arith.addf %1385, %1388 : vector<16x16xf32>
    %1393 = arith.addf %1389, %1390 : vector<16x16xf32>
    %1394 = arith.addf %1391, %1392 : vector<16x16xf32>
    %1395 = arith.addf %1393, %1394 : vector<16x16xf32>
    %c0_751 = arith.constant 0 : index
    %c2_752 = arith.constant 2 : index
    %c0_753 = arith.constant 0 : index
    %c0_754 = arith.constant 0 : index
    %1396 = vector.load %arg1[%c0_751, %c2_752, %c0_753, %c0_754] : memref<1x4x16x16xf32, #tpu.memory_space<vmem>>, vector<1x1x16x16xf32>
    %1397 = vector.shape_cast %1396 : vector<1x1x16x16xf32> to vector<16x16xf32>
    %1398 = arith.addf %1395, %1397 : vector<16x16xf32>
    %c0_755 = arith.constant 0 : index
    %c2_756 = arith.constant 2 : index
    %c0_757 = arith.constant 0 : index
    %c0_758 = arith.constant 0 : index
    %1399 = vector.load %arg4[%c0_755, %c2_756, %c0_757, %c0_758] : memref<1x4x16x16xf32, #tpu.memory_space<vmem>>, vector<1x1x16x16xf32>
    %1400 = vector.shape_cast %1399 : vector<1x1x16x16xf32> to vector<16x16xf32>
    %1401 = vector.shape_cast %1398 : vector<16x16xf32> to vector<1x1x16x16xf32>
    tpu.vector_store %arg4[%c0_755, %c2_756, %c0_757, %c0_758], %1401 {strides = array<i32>} : memref<1x4x16x16xf32, #tpu.memory_space<vmem>>, vector<1x1x16x16xf32>,
    %c0_759 = arith.constant 0 : index
    %c3_760 = arith.constant 3 : index
    %1402 = memref.load %arg3[%c0_759, %c3_760] : memref<8x4xf32, #tpu.memory_space<smem>>
    %1403 = vector.broadcast %1402 : f32 to vector<16x16xf32>
    %1404 = arith.mulf %1403, %1045 : vector<16x16xf32>
    %c1_761 = arith.constant 1 : index
    %c3_762 = arith.constant 3 : index
    %1405 = memref.load %arg3[%c1_761, %c3_762] : memref<8x4xf32, #tpu.memory_space<smem>>
    %1406 = vector.broadcast %1405 : f32 to vector<16x16xf32>
    %1407 = arith.mulf %1406, %1080 : vector<16x16xf32>
    %c2_763 = arith.constant 2 : index
    %c3_764 = arith.constant 3 : index
    %1408 = memref.load %arg3[%c2_763, %c3_764] : memref<8x4xf32, #tpu.memory_space<smem>>
    %1409 = vector.broadcast %1408 : f32 to vector<16x16xf32>
    %1410 = arith.mulf %1409, %1115 : vector<16x16xf32>
    %c3_765 = arith.constant 3 : index
    %c3_766 = arith.constant 3 : index
    %1411 = memref.load %arg3[%c3_765, %c3_766] : memref<8x4xf32, #tpu.memory_space<smem>>
    %1412 = vector.broadcast %1411 : f32 to vector<16x16xf32>
    %1413 = arith.mulf %1412, %1150 : vector<16x16xf32>
    %c4_767 = arith.constant 4 : index
    %c3_768 = arith.constant 3 : index
    %1414 = memref.load %arg3[%c4_767, %c3_768] : memref<8x4xf32, #tpu.memory_space<smem>>
    %1415 = vector.broadcast %1414 : f32 to vector<16x16xf32>
    %1416 = arith.mulf %1415, %1185 : vector<16x16xf32>
    %c5_769 = arith.constant 5 : index
    %c3_770 = arith.constant 3 : index
    %1417 = memref.load %arg3[%c5_769, %c3_770] : memref<8x4xf32, #tpu.memory_space<smem>>
    %1418 = vector.broadcast %1417 : f32 to vector<16x16xf32>
    %1419 = arith.mulf %1418, %1220 : vector<16x16xf32>
    %c6_771 = arith.constant 6 : index
    %c3_772 = arith.constant 3 : index
    %1420 = memref.load %arg3[%c6_771, %c3_772] : memref<8x4xf32, #tpu.memory_space<smem>>
    %1421 = vector.broadcast %1420 : f32 to vector<16x16xf32>
    %1422 = arith.mulf %1421, %1255 : vector<16x16xf32>
    %c7_773 = arith.constant 7 : index
    %c3_774 = arith.constant 3 : index
    %1423 = memref.load %arg3[%c7_773, %c3_774] : memref<8x4xf32, #tpu.memory_space<smem>>
    %1424 = vector.broadcast %1423 : f32 to vector<16x16xf32>
    %1425 = arith.mulf %1424, %1290 : vector<16x16xf32>
    %1426 = arith.addf %1404, %1407 : vector<16x16xf32>
    %1427 = arith.addf %1410, %1413 : vector<16x16xf32>
    %1428 = arith.addf %1416, %1419 : vector<16x16xf32>
    %1429 = arith.addf %1422, %1425 : vector<16x16xf32>
    %1430 = arith.addf %1426, %1427 : vector<16x16xf32>
    %1431 = arith.addf %1428, %1429 : vector<16x16xf32>
    %1432 = arith.addf %1430, %1431 : vector<16x16xf32>
    %c0_775 = arith.constant 0 : index
    %c3_776 = arith.constant 3 : index
    %c0_777 = arith.constant 0 : index
    %c0_778 = arith.constant 0 : index
    %1433 = vector.load %arg1[%c0_775, %c3_776, %c0_777, %c0_778] : memref<1x4x16x16xf32, #tpu.memory_space<vmem>>, vector<1x1x16x16xf32>
    %1434 = vector.shape_cast %1433 : vector<1x1x16x16xf32> to vector<16x16xf32>
    %1435 = arith.addf %1432, %1434 : vector<16x16xf32>
    %c0_779 = arith.constant 0 : index
    %c3_780 = arith.constant 3 : index
    %c0_781 = arith.constant 0 : index
    %c0_782 = arith.constant 0 : index
    %1436 = vector.load %arg4[%c0_779, %c3_780, %c0_781, %c0_782] : memref<1x4x16x16xf32, #tpu.memory_space<vmem>>, vector<1x1x16x16xf32>
    %1437 = vector.shape_cast %1436 : vector<1x1x16x16xf32> to vector<16x16xf32>
    %1438 = vector.shape_cast %1435 : vector<16x16xf32> to vector<1x1x16x16xf32>
    tpu.vector_store %arg4[%c0_779, %c3_780, %c0_781, %c0_782], %1438 {strides = array<i32>} : memref<1x4x16x16xf32, #tpu.memory_space<vmem>>, vector<1x1x16x16xf32>,
    return
  }
  func.func @transform_0(%arg0: i32) -> (i32, i32, i32, i32) {
    %c0_i32 = arith.constant 0 : i32
    %c0_i32_0 = arith.constant 0 : i32
    %c0_i32_1 = arith.constant 0 : i32
    %c0_i32_2 = arith.constant 0 : i32
    return %arg0, %c0_i32, %c0_i32_0, %c0_i32_1 : i32, i32, i32, i32
  }
  func.func @transform_1(%arg0: i32) -> (i32, i32) {
    %c0_i32 = arith.constant 0 : i32
    %c0_i32_0 = arith.constant 0 : i32
    %c0_i32_1 = arith.constant 0 : i32
    return %c0_i32, %c0_i32_0 : i32, i32
  }
  func.func @transform_2(%arg0: i32) -> (i32, i32) {
    %c0_i32 = arith.constant 0 : i32
    %c0_i32_0 = arith.constant 0 : i32
    %c0_i32_1 = arith.constant 0 : i32
    return %c0_i32, %c0_i32_0 : i32, i32
  }
  func.func @transform_3(%arg0: i32) -> (i32, i32, i32, i32) {
    %c0_i32 = arith.constant 0 : i32
    %c0_i32_0 = arith.constant 0 : i32
    %c0_i32_1 = arith.constant 0 : i32
    %c0_i32_2 = arith.constant 0 : i32
    return %arg0, %c0_i32, %c0_i32_0, %c0_i32_1 : i32, i32, i32, i32
  }
}

</mosaic_0001>

<llo_original>
// kernel: nonlocal_dilation_pallas.1
$region0: #{nonlocal_dilation_pallas.1}
  #allocation0 [shape = 'u32[]', space=smem, size = 0x4, offset = 0x4, fixed_abs, tag = 'smem constant byte address 0x4 - core index']
  #allocation1 [shape = 'u32[144,128]{1,0:T(1,128)}', space=vmem, size = 0x12000, scoped, tag = 'internal scratch']
  #allocation2 [shape = 'f32[16,20,20]{2,1,0:T(8,128)}', space=vmem, size = 0x30000, scoped, tag = 'scratch operand']
  %s0 = inlined_call_operand.hbm [shape: f32[2,4,16,16], index: 0, kind: input, shape index: {}]
  %s1 = inlined_call_operand.vmem [shape: f32[24,4], index: 1, kind: input, shape index: {}]
  %s2 = inlined_call_operand.vmem [shape: f32[8,4], index: 2, kind: input, shape index: {}]
  %s3 = inlined_call_operand.hbm [shape: f32[2,4,16,16], index: 3, kind: output, shape index: {}]
  %s4 = sld [smem:[#allocation0]]
  $region57: #{nonlocal_dilation_pallas.1} parent=0
    _
  %s6 = ssub.s32 1, %s4
  %s7 = scalar_select 0, %s6, %s4
  $region1: #{nonlocal_dilation_pallas.1} parent=0
    #allocation3 [shape = 'u8[65536]{0}', space=vmem, size = 0x10000, scoped, tag = 'input window, operand 0']
    #allocation4 [shape = 's32[2]{0}', space=sflag, size = 0x8, scoped, tag = 'scoped memory for nonlocal_dilation_pallas.1']
    #allocation5 [shape = 's32[2]{0}', space=sflag, size = 0x8, scoped, tag = 'scoped memory for nonlocal_dilation_pallas.1']
    #allocation6 [shape = 's32[2]{0}', space=sflag, size = 0x8, scoped, tag = 'scoped memory for nonlocal_dilation_pallas.1']
    #allocation7 [shape = 'u8[12288]{0}', space=smem, size = 0x3000, scoped, tag = 'input window, operand 1, single buffered']
    #allocation8 [shape = 'u8[4096]{0}', space=smem, size = 0x1000, scoped, tag = 'input window, operand 2, single buffered']
    #allocation9 [shape = 's32[1]{0}', space=sflag, size = 0x4, scoped, tag = 'scoped memory for nonlocal_dilation_pallas.1']
    #allocation10 [shape = 'u8[65536]{0}', space=vmem, size = 0x10000, scoped, tag = 'output window, operand 0']
    %8 = vsyncpa [#allocation4], 0
    %s9 = scalar_lea.sflag [#allocation4], 1
    %10 = vsyncpa %s9, 0
    %11 = vsyncpa [#allocation6], 0
    %12 = vsyncpa [#allocation9], 0
    %13 = vsyncpa [#allocation5], 0
    %s14 = scalar_lea.sflag [#allocation5], 1
    %15 = vsyncpa %s14, 0
    loop: start=0, step=1, limit=4
    $region2: #{nonlocal_dilation_pallas.1} parent=1 // loop_pre_header
      _
    $region3: #{nonlocal_dilation_pallas.1} parent=1 // loop_header
      %s17 = sphi 0, %s21
      %p18 = scmp.ge.s32.totalorder %s17, 4
      %s27 = sphi 0, %s29
      %s30 = sphi 0, %s27
      %s31 = sphi 0, %s30
      %s47 = sphi 0, %s31
      %s51 = sphi 0, %s51
      %s53 = sphi 0, %s51
      %s54 = sphi 0, %s53
      %s68 = sphi 0, %s54
      %s72 = sphi 0, %s72
      %s74 = sphi 0, %s72
      %s75 = sphi 0, %s74
      %s89 = sphi 0, %s75
      %s95 = sphi 0, %s97
      %s98 = sphi 0, %s95
      %s99 = sphi 0, %s98
      %s115 = sphi 0, %s99
    $region4: #{nonlocal_dilation_pallas.1} parent=1 // loop_header_branch
      %20 = sbr.rel (%p18) target = $region8
    $region5: #{nonlocal_dilation_pallas.1} parent=1 // loop_body
      %s22 = ssub.s32 %s17, 1
      %s23 = ssub.s32 %s17, 2
      %s24 = sadd.s32 %s17, 1
      %s25 = ssub.s32 %s17, %s24
      %p26 = scmp.eq.s32.totalorder %s25, 0
      %s28 = sadd.s32 %s27, 1
      %s29 = scalar_select %p26, %s27, %s28
      %p32 = pneg %p26
      %p33 = scmp.eq.s32.totalorder %s17, 1
      %p34 = por %p32, %p33
      %p35 = scmp.ne.s32.totalorder %s27, %s30
      %p36 = scmp.eq.s32.totalorder %s17, 0
      %p37 = por %p35, %p36
      %p38 = scmp.ne.s32.totalorder %s27, %s30
      %p39 = scmp.eq.s32.totalorder %s22, 1
      %p40 = por %p38, %p39
      %p41 = scmp.ne.s32.totalorder %s30, %s31
      %p42 = scmp.eq.s32.totalorder %s22, 0
      %p43 = por %p41, %p42
      %p44 = scmp.ne.s32.totalorder %s30, %s31
      %p45 = scmp.eq.s32.totalorder %s23, 1
      %p46 = por %p44, %p45
      %p48 = scmp.ne.s32.totalorder %s31, %s47
      %p49 = scmp.eq.s32.totalorder %s23, 0
      %p50 = por %p48, %p49
      %s52 = sadd.s32 %s51, 1
      %p55 = scmp.eq.s32.totalorder %s17, 1
      %p56 = scmp.ne.s32.totalorder %s51, %s53
      %p57 = scmp.eq.s32.totalorder %s17, 0
      %p58 = por %p56, %p57
      %p59 = scmp.ne.s32.totalorder %s51, %s53
      %p60 = scmp.eq.s32.totalorder %s22, 1
      %p61 = por %p59, %p60
      %p62 = scmp.ne.s32.totalorder %s53, %s54
      %p63 = scmp.eq.s32.totalorder %s22, 0
      %p64 = por %p62, %p63
      %p65 = scmp.ne.s32.totalorder %s53, %s54
      %p66 = scmp.eq.s32.totalorder %s23, 1
      %p67 = por %p65, %p66
      %p69 = scmp.ne.s32.totalorder %s54, %s68
      %p70 = scmp.eq.s32.totalorder %s23, 0
      %p71 = por %p69, %p70
      %s73 = sadd.s32 %s72, 1
      %p76 = scmp.eq.s32.totalorder %s17, 1
      %p77 = scmp.ne.s32.totalorder %s72, %s74
      %p78 = scmp.eq.s32.totalorder %s17, 0
      %p79 = por %p77, %p78
      %p80 = scmp.ne.s32.totalorder %s72, %s74
      %p81 = scmp.eq.s32.totalorder %s22, 1
      %p82 = por %p80, %p81
      %p83 = scmp.ne.s32.totalorder %s74, %s75
      %p84 = scmp.eq.s32.totalorder %s22, 0
      %p85 = por %p83, %p84
      %p86 = scmp.ne.s32.totalorder %s74, %s75
      %p87 = scmp.eq.s32.totalorder %s23, 1
      %p88 = por %p86, %p87
      %p90 = scmp.ne.s32.totalorder %s75, %s89
      %p91 = scmp.eq.s32.totalorder %s23, 0
      %p92 = por %p90, %p91
      %s93 = ssub.s32 %s17, %s24
      %p94 = scmp.eq.s32.totalorder %s93, 0
      %s96 = sadd.s32 %s95, 1
      %s97 = scalar_select %p94, %s95, %s96
      %p100 = pneg %p94
      %p101 = scmp.eq.s32.totalorder %s17, 1
      %p102 = por %p100, %p101
      %p103 = scmp.ne.s32.totalorder %s95, %s98
      %p104 = scmp.eq.s32.totalorder %s17, 0
      %p105 = por %p103, %p104
      %p106 = scmp.ne.s32.totalorder %s95, %s98
      %p107 = scmp.eq.s32.totalorder %s22, 1
      %p108 = por %p106, %p107
      %p109 = scmp.ne.s32.totalorder %s98, %s99
      %p110 = scmp.eq.s32.totalorder %s22, 0
      %p111 = por %p109, %p110
      %p112 = scmp.ne.s32.totalorder %s98, %s99
      %p113 = scmp.eq.s32.totalorder %s23, 1
      %p114 = por %p112, %p113
      %p116 = scmp.ne.s32.totalorder %s99, %s115
      %p117 = scmp.eq.s32.totalorder %s23, 0
      %p118 = por %p116, %p117
      %p119 = scmp.le.s32.totalorder 1, %s17
      %p120 = scmp.lt.s32.totalorder %s17, 3
      %p121 = pnand %p119, %p120
      %p122 = pneg %p121
      // Predicated region
      $region9: #{nonlocal_dilation_pallas.1} parent=5 // pred_check
        _
      $region10: #{nonlocal_dilation_pallas.1} parent=5 // pred_check_branch
        %124 = sbr.rel (%p121) target = $region12
      $region11: #{nonlocal_dilation_pallas.1} parent=5 // pred_region
        %s125 = ssub.s32 %s17, 1
        // Predicated region
        $region13: #{nonlocal_dilation_pallas.1} parent=11 // pred_check
          %p126 = pneg %p64
        $region14: #{nonlocal_dilation_pallas.1} parent=11 // pred_check_branch
          %128 = sbr.rel (%p126) target = $region16
        $region15: #{nonlocal_dilation_pallas.1} parent=11 // pred_region
          %s130 = ssub.s32 384, 384
          %131 = vsyncadd [#allocation6], %s130
          %s132 = sshll.u32 %s1, 4
          %s133 = int_to_ptr.vmem [resolvable:$true] %s132
          %138 = dma.vmem_to_smem %s133, 384, [#allocation7], [#allocation6], 128, 128, 8
        $region16: #{nonlocal_dilation_pallas.1} parent=11 // pred_fallthru
          _
        // Predicated region
        $region17: #{nonlocal_dilation_pallas.1} parent=11 // pred_check
          %p139 = pneg %p85
        $region18: #{nonlocal_dilation_pallas.1} parent=11 // pred_check_branch
          %141 = sbr.rel (%p139) target = $region20
        $region19: #{nonlocal_dilation_pallas.1} parent=11 // pred_region
          %s143 = ssub.s32 128, 128
          %144 = vsyncadd [#allocation9], %s143
          %s146 = sshll.u32 %s2, 4
          %s147 = int_to_ptr.vmem [resolvable:$true] %s146
          %149 = dma.vmem_to_smem %s147, 128, [#allocation8], [#allocation9]
        $region20: #{nonlocal_dilation_pallas.1} parent=11 // pred_fallthru
          _
      $region12: #{nonlocal_dilation_pallas.1} parent=5 // pred_fallthru
        _
      %p150 = scmp.lt.s32.totalorder %s17, 2
      // Predicated region
      $region21: #{nonlocal_dilation_pallas.1} parent=5 // pred_check
        %p151 = pneg %p150
      $region22: #{nonlocal_dilation_pallas.1} parent=5 // pred_check_branch
        %153 = sbr.rel (%p151) target = $region24
      $region23: #{nonlocal_dilation_pallas.1} parent=5 // pred_region
        // Predicated region
        $region25: #{nonlocal_dilation_pallas.1} parent=23 // pred_check
          %p154 = pneg %p37
        $region26: #{nonlocal_dilation_pallas.1} parent=23 // pred_check_branch
          %156 = sbr.rel (%p154) target = $region28
        $region27: #{nonlocal_dilation_pallas.1} parent=23 // pred_region
          %s157 = sand.u32 %s27, 1
          %s158 = scalar_lea.sflag [#allocation4], %s157
          %s159 = sand.u32 %s27, 1
          %s160 = smul.addr %s159, 64
          %s161 = scalar_lea.vmem [#allocation3], %s160
          %s163 = ssub.s32 1024, 1024
          %164 = vsyncadd %s158, %s163
          %s165 = smul.addr %s17, 8
          %s166 = smul.addr %s165, 128
          %s167 = scalar_lea.hbm %s0, %s166
          %s168 = sshll.u32 %s161, 4
          %s169 = int_to_ptr.vmem [resolvable:$true] %s168
          %174 = dma.hbm_to_vmem [thread:$0]  %s167, 1024, %s169, %s158, 128, 128, 8
        $region28: #{nonlocal_dilation_pallas.1} parent=23 // pred_fallthru
          _
      $region24: #{nonlocal_dilation_pallas.1} parent=5 // pred_fallthru
        _
      %p175 = scmp.le.s32.totalorder 1, %s17
      %p176 = scmp.lt.s32.totalorder %s17, 3
      %p177 = pnand %p175, %p176
      %p178 = pneg %p177
      // Predicated region
      $region29: #{nonlocal_dilation_pallas.1} parent=5 // pred_check
        _
      $region30: #{nonlocal_dilation_pallas.1} parent=5 // pred_check_branch
        %180 = sbr.rel (%p177) target = $region32
      $region31: #{nonlocal_dilation_pallas.1} parent=5 // pred_region
        %s181 = ssub.s32 %s17, 1
        %s182 = sand.u32 %s30, 1
        %s183 = scalar_lea.sflag [#allocation4], %s182
        %s184 = sand.u32 %s30, 1
        %s185 = smul.addr %s184, 64
        %s186 = scalar_lea.vmem [#allocation3], %s185
        // Predicated region
        $region33: #{nonlocal_dilation_pallas.1} parent=31 // pred_check
          %p187 = pneg %p43
        $region34: #{nonlocal_dilation_pallas.1} parent=31 // pred_check_branch
          %189 = sbr.rel (%p187) target = $region36
        $region35: #{nonlocal_dilation_pallas.1} parent=31 // pred_region
          %190 = dma.done %s183, 1024
        $region36: #{nonlocal_dilation_pallas.1} parent=31 // pred_fallthru
          _
        // Predicated region
        $region37: #{nonlocal_dilation_pallas.1} parent=31 // pred_check
          %p191 = pneg %p64
        $region38: #{nonlocal_dilation_pallas.1} parent=31 // pred_check_branch
          %193 = sbr.rel (%p191) target = $region40
        $region39: #{nonlocal_dilation_pallas.1} parent=31 // pred_region
          %194 = dma.done [#allocation6], 384
        $region40: #{nonlocal_dilation_pallas.1} parent=31 // pred_fallthru
          _
        // Predicated region
        $region41: #{nonlocal_dilation_pallas.1} parent=31 // pred_check
          %p195 = pneg %p85
        $region42: #{nonlocal_dilation_pallas.1} parent=31 // pred_check_branch
          %197 = sbr.rel (%p195) target = $region44
        $region43: #{nonlocal_dilation_pallas.1} parent=31 // pred_region
          %198 = dma.done [#allocation9], 128
        $region44: #{nonlocal_dilation_pallas.1} parent=31 // pred_fallthru
          _
        %199 = sfence
        %s200 = sand.u32 %s30, 1
        %s201 = scalar_lea.sflag [#allocation4], %s200
        %s202 = sand.u32 %s30, 1
        %s203 = smul.addr %s202, 64
        %s204 = scalar_lea.vmem [#allocation3], %s203
        %p205 = pneg %p43
        %p206 = pneg %p40
        %p207 = pneg %p64
        %p208 = pneg %p61
        %p209 = pneg %p85
        %p210 = pneg %p82
        %p211 = pneg %p111
        %p212 = pneg %p108
        %s213 = sand.u32 %s98, 1
        %s214 = scalar_lea.sflag [#allocation5], %s213
        %s215 = sand.u32 %s98, 1
        %s216 = smul.addr %s215, 64
        %s217 = scalar_lea.vmem [#allocation10], %s216
        %v218 = vld [vmem:[%s186] sm:$0xff]
        %v219 = vld [vmem:[%s186 + $0x8] sm:$0xff]
        %s220 = scalar_lea.vmem %s186, 16 [#allocation3]
        %v221 = vld [vmem:[%s220] sm:$0xff]
        %v222 = vld [vmem:[%s220 + $0x8] sm:$0xff]
        %s223 = scalar_lea.vmem %s186, 32 [#allocation3]
        %v224 = vld [vmem:[%s223] sm:$0xff]
        %v225 = vld [vmem:[%s223 + $0x8] sm:$0xff]
        %s226 = scalar_lea.vmem %s186, 48 [#allocation3]
        %v227 = vld [vmem:[%s226] sm:$0xff]
        %v228 = vld [vmem:[%s226 + $0x8] sm:$0xff]
        %s229 = sld [smem:[#allocation7]]
        %v230 = vstv %s229
        %v231 = vmul.f32 %v230, %v218
        %v232 = vmul.f32 %v230, %v219
        %s233 = sld [smem:[#allocation7 + $0x1]]
        %v234 = vstv %s233
        %v235 = vmul.f32 %v234, %v221
        %v236 = vmul.f32 %v234, %v222
        %s237 = sld [smem:[#allocation7 + $0x2]]
        %v238 = vstv %s237
        %v239 = vmul.f32 %v238, %v224
        %v240 = vmul.f32 %v238, %v225
        %s241 = sld [smem:[#allocation7 + $0x3]]
        %v242 = vstv %s241
        %v243 = vmul.f32 %v242, %v227
        %v244 = vmul.f32 %v242, %v228
        %v245 = vadd.f32 %v231, %v235
        %v246 = vadd.f32 %v232, %v236
        %v247 = vadd.f32 %v239, %v243
        %v248 = vadd.f32 %v240, %v244
        %v249 = vadd.f32 %v245, %v247
        %v250 = vadd.f32 %v246, %v248
        %v251 = vmax.f32 %v249, 0.0
        %v252 = vmax.f32 %v250, 0.0
        %254 = vset.pattern.permute.xlu0 0
        %255 = vperm.xlu0 %254, %v251
        %v256 = vpop.permute.xlu0 %255
        %259 = vset.pattern.permute.xlu0 0
        %260 = vperm.xlu0 %259, %v252
        %v261 = vpop.permute.xlu0 %260
        %263 = vset.pattern.permute.xlu0 15
        %264 = vperm.xlu0 %263, %v251
        %v265 = vpop.permute.xlu0 %264
        %267 = vset.pattern.permute.xlu0 15
        %268 = vperm.xlu0 %267, %v252
        %v269 = vpop.permute.xlu0 %268
        %271 = vrot.lane.b32.xlu0 %v251, 2
        %v272 = vpop.permute.xlu0 %271
        %273 = vrot.lane.b32.xlu0 %v252, 2
        %v274 = vpop.permute.xlu0 %273
        %vm277 = vcmask 15360
        %v278 = vsel %vm277, %v256, %v272
        %v279 = vsel %vm277, %v261, %v274
        %vm280 = vcmask 146432
        %v281 = vsel %vm280, %v278, %v265
        %v282 = vsel %vm280, %v279, %v269
        %v283 = vlaneseq
        %v284 = vshrl.u32 %v283, 7
        %v285 = vsub.s32 0, %v284
        %v286 = vrot.slane %v281, %v285
        %v287 = vlaneseq
        %v288 = vshrl.u32 %v287, 7
        %v289 = vsub.s32 7, %v288
        %v290 = vrot.slane %v282, %v289
        %vm293 = vcmask 1041408
        %v294 = vrot.slane %v281, 6
        %v295 = vrot.slane %v282, 6
        %v296 = vsel %vm293, %v294, %v295
        %v300 = vsel %vm293, %v286, %v294
        %v301 = vsel %vm293, %v295, %v290
        %vm302 = vcmask 162816
        %303 = vst.msk [vmem:[#allocation2] sm:$0xff] %vm302, %v300
        %304 = vst.msk [vmem:[#allocation2 + $0x8] sm:$0xff] %vm302, %v296
        %vm305 = vcmask 158720
        %306 = vst.msk [vmem:[#allocation2 + $0x10] sm:$0xf] %vm305, %v301
        %s307 = sld [smem:[#allocation7 + $0x80]]
        %v308 = vstv %s307
        %v309 = vmul.f32 %v308, %v218
        %v310 = vmul.f32 %v308, %v219
        %s311 = sld [smem:[#allocation7 + $0x81]]
        %v312 = vstv %s311
        %v313 = vmul.f32 %v312, %v221
        %v314 = vmul.f32 %v312, %v222
        %s315 = sld [smem:[#allocation7 + $0x82]]
        %v316 = vstv %s315
        %v317 = vmul.f32 %v316, %v224
        %v318 = vmul.f32 %v316, %v225
        %s319 = sld [smem:[#allocation7 + $0x83]]
        %v320 = vstv %s319
        %v321 = vmul.f32 %v320, %v227
        %v322 = vmul.f32 %v320, %v228
        %v323 = vadd.f32 %v309, %v313
        %v324 = vadd.f32 %v310, %v314
        %v325 = vadd.f32 %v317, %v321
        %v326 = vadd.f32 %v318, %v322
        %v327 = vadd.f32 %v323, %v325
        %v328 = vadd.f32 %v324, %v326
        %v329 = vmax.f32 %v327, 0.0
        %v330 = vmax.f32 %v328, 0.0
        %332 = vset.pattern.permute.xlu0 0
        %333 = vperm.xlu0 %332, %v329
        %v334 = vpop.permute.xlu0 %333
        %337 = vset.pattern.permute.xlu0 0
        %338 = vperm.xlu0 %337, %v330
        %v339 = vpop.permute.xlu0 %338
        %341 = vset.pattern.permute.xlu0 15
        %342 = vperm.xlu0 %341, %v329
        %v343 = vpop.permute.xlu0 %342
        %345 = vset.pattern.permute.xlu0 15
        %346 = vperm.xlu0 %345, %v330
        %v347 = vpop.permute.xlu0 %346
        %349 = vrot.lane.b32.xlu0 %v329, 2
        %v350 = vpop.permute.xlu0 %349
        %351 = vrot.lane.b32.xlu0 %v330, 2
        %v352 = vpop.permute.xlu0 %351
        %v355 = vsel %vm277, %v334, %v350
        %v356 = vsel %vm277, %v339, %v352
        %v357 = vsel %vm280, %v355, %v343
        %v358 = vsel %vm280, %v356, %v347
        %v359 = vlaneseq
        %v360 = vshrl.u32 %v359, 7
        %v361 = vsub.s32 0, %v360
        %v362 = vrot.slane %v357, %v361
        %v363 = vlaneseq
        %v364 = vshrl.u32 %v363, 7
        %v365 = vsub.s32 7, %v364
        %v366 = vrot.slane %v358, %v365
        %v369 = vrot.slane %v357, 6
        %v370 = vrot.slane %v358, 6
        %v371 = vsel %vm293, %v369, %v370
        %v375 = vsel %vm293, %v362, %v369
        %v376 = vsel %vm293, %v370, %v366
        %s377 = scalar_lea.vmem [#allocation2], 24
        %378 = vst.msk [vmem:[%s377] sm:$0xff] %vm302, %v375
        %379 = vst.msk [vmem:[%s377 + $0x8] sm:$0xff] %vm302, %v371
        %380 = vst.msk [vmem:[%s377 + $0x10] sm:$0xf] %vm305, %v376
        %s381 = sld [smem:[#allocation7 + $0x100]]
        %v382 = vstv %s381
        %v383 = vmul.f32 %v382, %v218
        %v384 = vmul.f32 %v382, %v219
        %s385 = sld [smem:[#allocation7 + $0x101]]
        %v386 = vstv %s385
        %v387 = vmul.f32 %v386, %v221
        %v388 = vmul.f32 %v386, %v222
        %s389 = sld [smem:[#allocation7 + $0x102]]
        %v390 = vstv %s389
        %v391 = vmul.f32 %v390, %v224
        %v392 = vmul.f32 %v390, %v225
        %s393 = sld [smem:[#allocation7 + $0x103]]
        %v394 = vstv %s393
        %v395 = vmul.f32 %v394, %v227
        %v396 = vmul.f32 %v394, %v228
        %v397 = vadd.f32 %v383, %v387
        %v398 = vadd.f32 %v384, %v388
        %v399 = vadd.f32 %v391, %v395
        %v400 = vadd.f32 %v392, %v396
        %v401 = vadd.f32 %v397, %v399
        %v402 = vadd.f32 %v398, %v400
        %v403 = vmax.f32 %v401, 0.0
        %v404 = vmax.f32 %v402, 0.0
        %406 = vset.pattern.permute.xlu0 0
        %407 = vperm.xlu0 %406, %v403
        %v408 = vpop.permute.xlu0 %407
        %411 = vset.pattern.permute.xlu0 0
        %412 = vperm.xlu0 %411, %v404
        %v413 = vpop.permute.xlu0 %412
        %415 = vset.pattern.permute.xlu0 15
        %416 = vperm.xlu0 %415, %v403
        %v417 = vpop.permute.xlu0 %416
        %419 = vset.pattern.permute.xlu0 15
        %420 = vperm.xlu0 %419, %v404
        %v421 = vpop.permute.xlu0 %420
        %423 = vrot.lane.b32.xlu0 %v403, 2
        %v424 = vpop.permute.xlu0 %423
        %425 = vrot.lane.b32.xlu0 %v404, 2
        %v426 = vpop.permute.xlu0 %425
        %v429 = vsel %vm277, %v408, %v424
        %v430 = vsel %vm277, %v413, %v426
        %v431 = vsel %vm280, %v429, %v417
        %v432 = vsel %vm280, %v430, %v421
        %v433 = vlaneseq
        %v434 = vshrl.u32 %v433, 7
        %v435 = vsub.s32 0, %v434
        %v436 = vrot.slane %v431, %v435
        %v437 = vlaneseq
        %v438 = vshrl.u32 %v437, 7
        %v439 = vsub.s32 7, %v438
        %v440 = vrot.slane %v432, %v439
        %v443 = vrot.slane %v431, 6
        %v444 = vrot.slane %v432, 6
        %v445 = vsel %vm293, %v443, %v444
        %v449 = vsel %vm293, %v436, %v443
        %v450 = vsel %vm293, %v444, %v440
        %s451 = scalar_lea.vmem [#allocation2], 48
        %452 = vst.msk [vmem:[%s451] sm:$0xff] %vm302, %v449
        %453 = vst.msk [vmem:[%s451 + $0x8] sm:$0xff] %vm302, %v445
        %454 = vst.msk [vmem:[%s451 + $0x10] sm:$0xf] %vm305, %v450
        %s455 = sld [smem:[#allocation7 + $0x180]]
        %v456 = vstv %s455
        %v457 = vmul.f32 %v456, %v218
        %v458 = vmul.f32 %v456, %v219
        %s459 = sld [smem:[#allocation7 + $0x181]]
        %v460 = vstv %s459
        %v461 = vmul.f32 %v460, %v221
        %v462 = vmul.f32 %v460, %v222
        %s463 = sld [smem:[#allocation7 + $0x182]]
        %v464 = vstv %s463
        %v465 = vmul.f32 %v464, %v224
        %v466 = vmul.f32 %v464, %v225
        %s467 = sld [smem:[#allocation7 + $0x183]]
        %v468 = vstv %s467
        %v469 = vmul.f32 %v468, %v227
        %v470 = vmul.f32 %v468, %v228
        %v471 = vadd.f32 %v457, %v461
        %v472 = vadd.f32 %v458, %v462
        %v473 = vadd.f32 %v465, %v469
        %v474 = vadd.f32 %v466, %v470
        %v475 = vadd.f32 %v471, %v473
        %v476 = vadd.f32 %v472, %v474
        %v477 = vmax.f32 %v475, 0.0
        %v478 = vmax.f32 %v476, 0.0
        %480 = vset.pattern.permute.xlu0 0
        %481 = vperm.xlu0 %480, %v477
        %v482 = vpop.permute.xlu0 %481
        %485 = vset.pattern.permute.xlu0 0
        %486 = vperm.xlu0 %485, %v478
        %v487 = vpop.permute.xlu0 %486
        %489 = vset.pattern.permute.xlu0 15
        %490 = vperm.xlu0 %489, %v477
        %v491 = vpop.permute.xlu0 %490
        %493 = vset.pattern.permute.xlu0 15
        %494 = vperm.xlu0 %493, %v478
        %v495 = vpop.permute.xlu0 %494
        %497 = vrot.lane.b32.xlu0 %v477, 2
        %v498 = vpop.permute.xlu0 %497
        %499 = vrot.lane.b32.xlu0 %v478, 2
        %v500 = vpop.permute.xlu0 %499
        %v503 = vsel %vm277, %v482, %v498
        %v504 = vsel %vm277, %v487, %v500
        %v505 = vsel %vm280, %v503, %v491
        %v506 = vsel %vm280, %v504, %v495
        %v507 = vlaneseq
        %v508 = vshrl.u32 %v507, 7
        %v509 = vsub.s32 0, %v508
        %v510 = vrot.slane %v505, %v509
        %v511 = vlaneseq
        %v512 = vshrl.u32 %v511, 7
        %v513 = vsub.s32 7, %v512
        %v514 = vrot.slane %v506, %v513
        %v517 = vrot.slane %v505, 6
        %v518 = vrot.slane %v506, 6
        %v519 = vsel %vm293, %v517, %v518
        %v523 = vsel %vm293, %v510, %v517
        %v524 = vsel %vm293, %v518, %v514
        %s525 = scalar_lea.vmem [#allocation2], 72
        %526 = vst.msk [vmem:[%s525] sm:$0xff] %vm302, %v523
        %527 = vst.msk [vmem:[%s525 + $0x8] sm:$0xff] %vm302, %v519
        %528 = vst.msk [vmem:[%s525 + $0x10] sm:$0xf] %vm305, %v524
        %s529 = sld [smem:[#allocation7 + $0x200]]
        %v530 = vstv %s529
        %v531 = vmul.f32 %v530, %v218
        %v532 = vmul.f32 %v530, %v219
        %s533 = sld [smem:[#allocation7 + $0x201]]
        %v534 = vstv %s533
        %v535 = vmul.f32 %v534, %v221
        %v536 = vmul.f32 %v534, %v222
        %s537 = sld [smem:[#allocation7 + $0x202]]
        %v538 = vstv %s537
        %v539 = vmul.f32 %v538, %v224
        %v540 = vmul.f32 %v538, %v225
        %s541 = sld [smem:[#allocation7 + $0x203]]
        %v542 = vstv %s541
        %v543 = vmul.f32 %v542, %v227
        %v544 = vmul.f32 %v542, %v228
        %v545 = vadd.f32 %v531, %v535
        %v546 = vadd.f32 %v532, %v536
        %v547 = vadd.f32 %v539, %v543
        %v548 = vadd.f32 %v540, %v544
        %v549 = vadd.f32 %v545, %v547
        %v550 = vadd.f32 %v546, %v548
        %v551 = vmax.f32 %v549, 0.0
        %v552 = vmax.f32 %v550, 0.0
        %554 = vset.pattern.permute.xlu0 0
        %555 = vperm.xlu0 %554, %v551
        %v556 = vpop.permute.xlu0 %555
        %559 = vset.pattern.permute.xlu0 0
        %560 = vperm.xlu0 %559, %v552
        %v561 = vpop.permute.xlu0 %560
        %563 = vset.pattern.permute.xlu0 15
        %564 = vperm.xlu0 %563, %v551
        %v565 = vpop.permute.xlu0 %564
        %567 = vset.pattern.permute.xlu0 15
        %568 = vperm.xlu0 %567, %v552
        %v569 = vpop.permute.xlu0 %568
        %571 = vrot.lane.b32.xlu0 %v551, 2
        %v572 = vpop.permute.xlu0 %571
        %573 = vrot.lane.b32.xlu0 %v552, 2
        %v574 = vpop.permute.xlu0 %573
        %v577 = vsel %vm277, %v556, %v572
        %v578 = vsel %vm277, %v561, %v574
        %v579 = vsel %vm280, %v577, %v565
        %v580 = vsel %vm280, %v578, %v569
        %v581 = vlaneseq
        %v582 = vshrl.u32 %v581, 7
        %v583 = vsub.s32 0, %v582
        %v584 = vrot.slane %v579, %v583
        %v585 = vlaneseq
        %v586 = vshrl.u32 %v585, 7
        %v587 = vsub.s32 7, %v586
        %v588 = vrot.slane %v580, %v587
        %v591 = vrot.slane %v579, 6
        %v592 = vrot.slane %v580, 6
        %v593 = vsel %vm293, %v591, %v592
        %v597 = vsel %vm293, %v584, %v591
        %v598 = vsel %vm293, %v592, %v588
        %s599 = scalar_lea.vmem [#allocation2], 96
        %600 = vst.msk [vmem:[%s599] sm:$0xff] %vm302, %v597
        %601 = vst.msk [vmem:[%s599 + $0x8] sm:$0xff] %vm302, %v593
        %602 = vst.msk [vmem:[%s599 + $0x10] sm:$0xf] %vm305, %v598
        %s603 = sld [smem:[#allocation7 + $0x280]]
        %v604 = vstv %s603
        %v605 = vmul.f32 %v604, %v218
        %v606 = vmul.f32 %v604, %v219
        %s607 = sld [smem:[#allocation7 + $0x281]]
        %v608 = vstv %s607
        %v609 = vmul.f32 %v608, %v221
        %v610 = vmul.f32 %v608, %v222
        %s611 = sld [smem:[#allocation7 + $0x282]]
        %v612 = vstv %s611
        %v613 = vmul.f32 %v612, %v224
        %v614 = vmul.f32 %v612, %v225
        %s615 = sld [smem:[#allocation7 + $0x283]]
        %v616 = vstv %s615
        %v617 = vmul.f32 %v616, %v227
        %v618 = vmul.f32 %v616, %v228
        %v619 = vadd.f32 %v605, %v609
        %v620 = vadd.f32 %v606, %v610
        %v621 = vadd.f32 %v613, %v617
        %v622 = vadd.f32 %v614, %v618
        %v623 = vadd.f32 %v619, %v621
        %v624 = vadd.f32 %v620, %v622
        %v625 = vmax.f32 %v623, 0.0
        %v626 = vmax.f32 %v624, 0.0
        %628 = vset.pattern.permute.xlu0 0
        %629 = vperm.xlu0 %628, %v625
        %v630 = vpop.permute.xlu0 %629
        %633 = vset.pattern.permute.xlu0 0
        %634 = vperm.xlu0 %633, %v626
        %v635 = vpop.permute.xlu0 %634
        %637 = vset.pattern.permute.xlu0 15
        %638 = vperm.xlu0 %637, %v625
        %v639 = vpop.permute.xlu0 %638
        %641 = vset.pattern.permute.xlu0 15
        %642 = vperm.xlu0 %641, %v626
        %v643 = vpop.permute.xlu0 %642
        %645 = vrot.lane.b32.xlu0 %v625, 2
        %v646 = vpop.permute.xlu0 %645
        %647 = vrot.lane.b32.xlu0 %v626, 2
        %v648 = vpop.permute.xlu0 %647
        %v651 = vsel %vm277, %v630, %v646
        %v652 = vsel %vm277, %v635, %v648
        %v653 = vsel %vm280, %v651, %v639
        %v654 = vsel %vm280, %v652, %v643
        %v655 = vlaneseq
        %v656 = vshrl.u32 %v655, 7
        %v657 = vsub.s32 0, %v656
        %v658 = vrot.slane %v653, %v657
        %v659 = vlaneseq
        %v660 = vshrl.u32 %v659, 7
        %v661 = vsub.s32 7, %v660
        %v662 = vrot.slane %v654, %v661
        %v665 = vrot.slane %v653, 6
        %v666 = vrot.slane %v654, 6
        %v667 = vsel %vm293, %v665, %v666
        %v671 = vsel %vm293, %v658, %v665
        %v672 = vsel %vm293, %v666, %v662
        %s673 = scalar_lea.vmem [#allocation2], 120
        %674 = vst.msk [vmem:[%s673] sm:$0xff] %vm302, %v671
        %675 = vst.msk [vmem:[%s673 + $0x8] sm:$0xff] %vm302, %v667
        %676 = vst.msk [vmem:[%s673 + $0x10] sm:$0xf] %vm305, %v672
        %s677 = sld [smem:[#allocation7 + $0x300]]
        %v678 = vstv %s677
        %v679 = vmul.f32 %v678, %v218
        %v680 = vmul.f32 %v678, %v219
        %s681 = sld [smem:[#allocation7 + $0x301]]
        %v682 = vstv %s681
        %v683 = vmul.f32 %v682, %v221
        %v684 = vmul.f32 %v682, %v222
        %s685 = sld [smem:[#allocation7 + $0x302]]
        %v686 = vstv %s685
        %v687 = vmul.f32 %v686, %v224
        %v688 = vmul.f32 %v686, %v225
        %s689 = sld [smem:[#allocation7 + $0x303]]
        %v690 = vstv %s689
        %v691 = vmul.f32 %v690, %v227
        %v692 = vmul.f32 %v690, %v228
        %v693 = vadd.f32 %v679, %v683
        %v694 = vadd.f32 %v680, %v684
        %v695 = vadd.f32 %v687, %v691
        %v696 = vadd.f32 %v688, %v692
        %v697 = vadd.f32 %v693, %v695
        %v698 = vadd.f32 %v694, %v696
        %v699 = vmax.f32 %v697, 0.0
        %v700 = vmax.f32 %v698, 0.0
        %702 = vset.pattern.permute.xlu0 0
        %703 = vperm.xlu0 %702, %v699
        %v704 = vpop.permute.xlu0 %703
        %707 = vset.pattern.permute.xlu0 0
        %708 = vperm.xlu0 %707, %v700
        %v709 = vpop.permute.xlu0 %708
        %711 = vset.pattern.permute.xlu0 15
        %712 = vperm.xlu0 %711, %v699
        %v713 = vpop.permute.xlu0 %712
        %715 = vset.pattern.permute.xlu0 15
        %716 = vperm.xlu0 %715, %v700
        %v717 = vpop.permute.xlu0 %716
        %719 = vrot.lane.b32.xlu0 %v699, 2
        %v720 = vpop.permute.xlu0 %719
        %721 = vrot.lane.b32.xlu0 %v700, 2
        %v722 = vpop.permute.xlu0 %721
        %v725 = vsel %vm277, %v704, %v720
        %v726 = vsel %vm277, %v709, %v722
        %v727 = vsel %vm280, %v725, %v713
        %v728 = vsel %vm280, %v726, %v717
        %v729 = vlaneseq
        %v730 = vshrl.u32 %v729, 7
        %v731 = vsub.s32 0, %v730
        %v732 = vrot.slane %v727, %v731
        %v733 = vlaneseq
        %v734 = vshrl.u32 %v733, 7
        %v735 = vsub.s32 7, %v734
        %v736 = vrot.slane %v728, %v735
        %v739 = vrot.slane %v727, 6
        %v740 = vrot.slane %v728, 6
        %v741 = vsel %vm293, %v739, %v740
        %v745 = vsel %vm293, %v732, %v739
        %v746 = vsel %vm293, %v740, %v736
        %s747 = scalar_lea.vmem [#allocation2], 144
        %748 = vst.msk [vmem:[%s747] sm:$0xff] %vm302, %v745
        %749 = vst.msk [vmem:[%s747 + $0x8] sm:$0xff] %vm302, %v741
        %750 = vst.msk [vmem:[%s747 + $0x10] sm:$0xf] %vm305, %v746
        %s751 = sld [smem:[#allocation7 + $0x380]]
        %v752 = vstv %s751
        %v753 = vmul.f32 %v752, %v218
        %v754 = vmul.f32 %v752, %v219
        %s755 = sld [smem:[#allocation7 + $0x381]]
        %v756 = vstv %s755
        %v757 = vmul.f32 %v756, %v221
        %v758 = vmul.f32 %v756, %v222
        %s759 = sld [smem:[#allocation7 + $0x382]]
        %v760 = vstv %s759
        %v761 = vmul.f32 %v760, %v224
        %v762 = vmul.f32 %v760, %v225
        %s763 = sld [smem:[#allocation7 + $0x383]]
        %v764 = vstv %s763
        %v765 = vmul.f32 %v764, %v227
        %v766 = vmul.f32 %v764, %v228
        %v767 = vadd.f32 %v753, %v757
        %v768 = vadd.f32 %v754, %v758
        %v769 = vadd.f32 %v761, %v765
        %v770 = vadd.f32 %v762, %v766
        %v771 = vadd.f32 %v767, %v769
        %v772 = vadd.f32 %v768, %v770
        %v773 = vmax.f32 %v771, 0.0
        %v774 = vmax.f32 %v772, 0.0
        %776 = vset.pattern.permute.xlu0 0
        %777 = vperm.xlu0 %776, %v773
        %v778 = vpop.permute.xlu0 %777
        %781 = vset.pattern.permute.xlu0 0
        %782 = vperm.xlu0 %781, %v774
        %v783 = vpop.permute.xlu0 %782
        %785 = vset.pattern.permute.xlu0 15
        %786 = vperm.xlu0 %785, %v773
        %v787 = vpop.permute.xlu0 %786
        %789 = vset.pattern.permute.xlu0 15
        %790 = vperm.xlu0 %789, %v774
        %v791 = vpop.permute.xlu0 %790
        %793 = vrot.lane.b32.xlu0 %v773, 2
        %v794 = vpop.permute.xlu0 %793
        %795 = vrot.lane.b32.xlu0 %v774, 2
        %v796 = vpop.permute.xlu0 %795
        %v799 = vsel %vm277, %v778, %v794
        %v800 = vsel %vm277, %v783, %v796
        %v801 = vsel %vm280, %v799, %v787
        %v802 = vsel %vm280, %v800, %v791
        %v803 = vlaneseq
        %v804 = vshrl.u32 %v803, 7
        %v805 = vsub.s32 0, %v804
        %v806 = vrot.slane %v801, %v805
        %v807 = vlaneseq
        %v808 = vshrl.u32 %v807, 7
        %v809 = vsub.s32 7, %v808
        %v810 = vrot.slane %v802, %v809
        %v813 = vrot.slane %v801, 6
        %v814 = vrot.slane %v802, 6
        %v815 = vsel %vm293, %v813, %v814
        %v819 = vsel %vm293, %v806, %v813
        %v820 = vsel %vm293, %v814, %v810
        %s821 = scalar_lea.vmem [#allocation2], 168
        %822 = vst.msk [vmem:[%s821] sm:$0xff] %vm302, %v819
        %823 = vst.msk [vmem:[%s821 + $0x8] sm:$0xff] %vm302, %v815
        %824 = vst.msk [vmem:[%s821 + $0x10] sm:$0xf] %vm305, %v820
        %s825 = sld [smem:[#allocation7 + $0x400]]
        %v826 = vstv %s825
        %v827 = vmul.f32 %v826, %v218
        %v828 = vmul.f32 %v826, %v219
        %s829 = sld [smem:[#allocation7 + $0x401]]
        %v830 = vstv %s829
        %v831 = vmul.f32 %v830, %v221
        %v832 = vmul.f32 %v830, %v222
        %s833 = sld [smem:[#allocation7 + $0x402]]
        %v834 = vstv %s833
        %v835 = vmul.f32 %v834, %v224
        %v836 = vmul.f32 %v834, %v225
        %s837 = sld [smem:[#allocation7 + $0x403]]
        %v838 = vstv %s837
        %v839 = vmul.f32 %v838, %v227
        %v840 = vmul.f32 %v838, %v228
        %v841 = vadd.f32 %v827, %v831
        %v842 = vadd.f32 %v828, %v832
        %v843 = vadd.f32 %v835, %v839
        %v844 = vadd.f32 %v836, %v840
        %v845 = vadd.f32 %v841, %v843
        %v846 = vadd.f32 %v842, %v844
        %v847 = vmax.f32 %v845, 0.0
        %v848 = vmax.f32 %v846, 0.0
        %850 = vset.pattern.permute.xlu0 0
        %851 = vperm.xlu0 %850, %v847
        %v852 = vpop.permute.xlu0 %851
        %855 = vset.pattern.permute.xlu0 0
        %856 = vperm.xlu0 %855, %v848
        %v857 = vpop.permute.xlu0 %856
        %859 = vset.pattern.permute.xlu0 15
        %860 = vperm.xlu0 %859, %v847
        %v861 = vpop.permute.xlu0 %860
        %863 = vset.pattern.permute.xlu0 15
        %864 = vperm.xlu0 %863, %v848
        %v865 = vpop.permute.xlu0 %864
        %867 = vrot.lane.b32.xlu0 %v847, 2
        %v868 = vpop.permute.xlu0 %867
        %869 = vrot.lane.b32.xlu0 %v848, 2
        %v870 = vpop.permute.xlu0 %869
        %v873 = vsel %vm277, %v852, %v868
        %v874 = vsel %vm277, %v857, %v870
        %v875 = vsel %vm280, %v873, %v861
        %v876 = vsel %vm280, %v874, %v865
        %v877 = vlaneseq
        %v878 = vshrl.u32 %v877, 7
        %v879 = vsub.s32 0, %v878
        %v880 = vrot.slane %v875, %v879
        %v881 = vlaneseq
        %v882 = vshrl.u32 %v881, 7
        %v883 = vsub.s32 7, %v882
        %v884 = vrot.slane %v876, %v883
        %v887 = vrot.slane %v875, 6
        %v888 = vrot.slane %v876, 6
        %v889 = vsel %vm293, %v887, %v888
        %v893 = vsel %vm293, %v880, %v887
        %v894 = vsel %vm293, %v888, %v884
        %s895 = scalar_lea.vmem [#allocation2], 192
        %896 = vst.msk [vmem:[%s895] sm:$0xff] %vm302, %v893
        %897 = vst.msk [vmem:[%s895 + $0x8] sm:$0xff] %vm302, %v889
        %898 = vst.msk [vmem:[%s895 + $0x10] sm:$0xf] %vm305, %v894
        %s899 = sld [smem:[#allocation7 + $0x480]]
        %v900 = vstv %s899
        %v901 = vmul.f32 %v900, %v218
        %v902 = vmul.f32 %v900, %v219
        %s903 = sld [smem:[#allocation7 + $0x481]]
        %v904 = vstv %s903
        %v905 = vmul.f32 %v904, %v221
        %v906 = vmul.f32 %v904, %v222
        %s907 = sld [smem:[#allocation7 + $0x482]]
        %v908 = vstv %s907
        %v909 = vmul.f32 %v908, %v224
        %v910 = vmul.f32 %v908, %v225
        %s911 = sld [smem:[#allocation7 + $0x483]]
        %v912 = vstv %s911
        %v913 = vmul.f32 %v912, %v227
        %v914 = vmul.f32 %v912, %v228
        %v915 = vadd.f32 %v901, %v905
        %v916 = vadd.f32 %v902, %v906
        %v917 = vadd.f32 %v909, %v913
        %v918 = vadd.f32 %v910, %v914
        %v919 = vadd.f32 %v915, %v917
        %v920 = vadd.f32 %v916, %v918
        %v921 = vmax.f32 %v919, 0.0
        %v922 = vmax.f32 %v920, 0.0
        %924 = vset.pattern.permute.xlu0 0
        %925 = vperm.xlu0 %924, %v921
        %v926 = vpop.permute.xlu0 %925
        %929 = vset.pattern.permute.xlu0 0
        %930 = vperm.xlu0 %929, %v922
        %v931 = vpop.permute.xlu0 %930
        %933 = vset.pattern.permute.xlu0 15
        %934 = vperm.xlu0 %933, %v921
        %v935 = vpop.permute.xlu0 %934
        %937 = vset.pattern.permute.xlu0 15
        %938 = vperm.xlu0 %937, %v922
        %v939 = vpop.permute.xlu0 %938
        %941 = vrot.lane.b32.xlu0 %v921, 2
        %v942 = vpop.permute.xlu0 %941
        %943 = vrot.lane.b32.xlu0 %v922, 2
        %v944 = vpop.permute.xlu0 %943
        %v947 = vsel %vm277, %v926, %v942
        %v948 = vsel %vm277, %v931, %v944
        %v949 = vsel %vm280, %v947, %v935
        %v950 = vsel %vm280, %v948, %v939
        %v951 = vlaneseq
        %v952 = vshrl.u32 %v951, 7
        %v953 = vsub.s32 0, %v952
        %v954 = vrot.slane %v949, %v953
        %v955 = vlaneseq
        %v956 = vshrl.u32 %v955, 7
        %v957 = vsub.s32 7, %v956
        %v958 = vrot.slane %v950, %v957
        %v961 = vrot.slane %v949, 6
        %v962 = vrot.slane %v950, 6
        %v963 = vsel %vm293, %v961, %v962
        %v967 = vsel %vm293, %v954, %v961
        %v968 = vsel %vm293, %v962, %v958
        %s969 = scalar_lea.vmem [#allocation2], 216
        %970 = vst.msk [vmem:[%s969] sm:$0xff] %vm302, %v967
        %971 = vst.msk [vmem:[%s969 + $0x8] sm:$0xff] %vm302, %v963
        %972 = vst.msk [vmem:[%s969 + $0x10] sm:$0xf] %vm305, %v968
        %s973 = sld [smem:[#allocation7 + $0x500]]
        %v974 = vstv %s973
        %v975 = vmul.f32 %v974, %v218
        %v976 = vmul.f32 %v974, %v219
        %s977 = sld [smem:[#allocation7 + $0x501]]
        %v978 = vstv %s977
        %v979 = vmul.f32 %v978, %v221
        %v980 = vmul.f32 %v978, %v222
        %s981 = sld [smem:[#allocation7 + $0x502]]
        %v982 = vstv %s981
        %v983 = vmul.f32 %v982, %v224
        %v984 = vmul.f32 %v982, %v225
        %s985 = sld [smem:[#allocation7 + $0x503]]
        %v986 = vstv %s985
        %v987 = vmul.f32 %v986, %v227
        %v988 = vmul.f32 %v986, %v228
        %v989 = vadd.f32 %v975, %v979
        %v990 = vadd.f32 %v976, %v980
        %v991 = vadd.f32 %v983, %v987
        %v992 = vadd.f32 %v984, %v988
        %v993 = vadd.f32 %v989, %v991
        %v994 = vadd.f32 %v990, %v992
        %v995 = vmax.f32 %v993, 0.0
        %v996 = vmax.f32 %v994, 0.0
        %998 = vset.pattern.permute.xlu0 0
        %999 = vperm.xlu0 %998, %v995
        %v1000 = vpop.permute.xlu0 %999
        %1003 = vset.pattern.permute.xlu0 0
        %1004 = vperm.xlu0 %1003, %v996
        %v1005 = vpop.permute.xlu0 %1004
        %1007 = vset.pattern.permute.xlu0 15
        %1008 = vperm.xlu0 %1007, %v995
        %v1009 = vpop.permute.xlu0 %1008
        %1011 = vset.pattern.permute.xlu0 15
        %1012 = vperm.xlu0 %1011, %v996
        %v1013 = vpop.permute.xlu0 %1012
        %1015 = vrot.lane.b32.xlu0 %v995, 2
        %v1016 = vpop.permute.xlu0 %1015
        %1017 = vrot.lane.b32.xlu0 %v996, 2
        %v1018 = vpop.permute.xlu0 %1017
        %v1021 = vsel %vm277, %v1000, %v1016
        %v1022 = vsel %vm277, %v1005, %v1018
        %v1023 = vsel %vm280, %v1021, %v1009
        %v1024 = vsel %vm280, %v1022, %v1013
        %v1025 = vlaneseq
        %v1026 = vshrl.u32 %v1025, 7
        %v1027 = vsub.s32 0, %v1026
        %v1028 = vrot.slane %v1023, %v1027
        %v1029 = vlaneseq
        %v1030 = vshrl.u32 %v1029, 7
        %v1031 = vsub.s32 7, %v1030
        %v1032 = vrot.slane %v1024, %v1031
        %v1035 = vrot.slane %v1023, 6
        %v1036 = vrot.slane %v1024, 6
        %v1037 = vsel %vm293, %v1035, %v1036
        %v1041 = vsel %vm293, %v1028, %v1035
        %v1042 = vsel %vm293, %v1036, %v1032
        %s1043 = scalar_lea.vmem [#allocation2], 240
        %1044 = vst.msk [vmem:[%s1043] sm:$0xff] %vm302, %v1041
        %1045 = vst.msk [vmem:[%s1043 + $0x8] sm:$0xff] %vm302, %v1037
        %1046 = vst.msk [vmem:[%s1043 + $0x10] sm:$0xf] %vm305, %v1042
        %s1047 = sld [smem:[#allocation7 + $0x580]]
        %v1048 = vstv %s1047
        %v1049 = vmul.f32 %v1048, %v218
        %v1050 = vmul.f32 %v1048, %v219
        %s1051 = sld [smem:[#allocation7 + $0x581]]
        %v1052 = vstv %s1051
        %v1053 = vmul.f32 %v1052, %v221
        %v1054 = vmul.f32 %v1052, %v222
        %s1055 = sld [smem:[#allocation7 + $0x582]]
        %v1056 = vstv %s1055
        %v1057 = vmul.f32 %v1056, %v224
        %v1058 = vmul.f32 %v1056, %v225
        %s1059 = sld [smem:[#allocation7 + $0x583]]
        %v1060 = vstv %s1059
        %v1061 = vmul.f32 %v1060, %v227
        %v1062 = vmul.f32 %v1060, %v228
        %v1063 = vadd.f32 %v1049, %v1053
        %v1064 = vadd.f32 %v1050, %v1054
        %v1065 = vadd.f32 %v1057, %v1061
        %v1066 = vadd.f32 %v1058, %v1062
        %v1067 = vadd.f32 %v1063, %v1065
        %v1068 = vadd.f32 %v1064, %v1066
        %v1069 = vmax.f32 %v1067, 0.0
        %v1070 = vmax.f32 %v1068, 0.0
        %1072 = vset.pattern.permute.xlu0 0
        %1073 = vperm.xlu0 %1072, %v1069
        %v1074 = vpop.permute.xlu0 %1073
        %1077 = vset.pattern.permute.xlu0 0
        %1078 = vperm.xlu0 %1077, %v1070
        %v1079 = vpop.permute.xlu0 %1078
        %1081 = vset.pattern.permute.xlu0 15
        %1082 = vperm.xlu0 %1081, %v1069
        %v1083 = vpop.permute.xlu0 %1082
        %1085 = vset.pattern.permute.xlu0 15
        %1086 = vperm.xlu0 %1085, %v1070
        %v1087 = vpop.permute.xlu0 %1086
        %1089 = vrot.lane.b32.xlu0 %v1069, 2
        %v1090 = vpop.permute.xlu0 %1089
        %1091 = vrot.lane.b32.xlu0 %v1070, 2
        %v1092 = vpop.permute.xlu0 %1091
        %v1095 = vsel %vm277, %v1074, %v1090
        %v1096 = vsel %vm277, %v1079, %v1092
        %v1097 = vsel %vm280, %v1095, %v1083
        %v1098 = vsel %vm280, %v1096, %v1087
        %v1099 = vlaneseq
        %v1100 = vshrl.u32 %v1099, 7
        %v1101 = vsub.s32 0, %v1100
        %v1102 = vrot.slane %v1097, %v1101
        %v1103 = vlaneseq
        %v1104 = vshrl.u32 %v1103, 7
        %v1105 = vsub.s32 7, %v1104
        %v1106 = vrot.slane %v1098, %v1105
        %v1109 = vrot.slane %v1097, 6
        %v1110 = vrot.slane %v1098, 6
        %v1111 = vsel %vm293, %v1109, %v1110
        %v1115 = vsel %vm293, %v1102, %v1109
        %v1116 = vsel %vm293, %v1110, %v1106
        %s1117 = scalar_lea.vmem [#allocation2], 264
        %1118 = vst.msk [vmem:[%s1117] sm:$0xff] %vm302, %v1115
        %1119 = vst.msk [vmem:[%s1117 + $0x8] sm:$0xff] %vm302, %v1111
        %1120 = vst.msk [vmem:[%s1117 + $0x10] sm:$0xf] %vm305, %v1116
        %s1121 = sld [smem:[#allocation7 + $0x600]]
        %v1122 = vstv %s1121
        %v1123 = vmul.f32 %v1122, %v218
        %v1124 = vmul.f32 %v1122, %v219
        %s1125 = sld [smem:[#allocation7 + $0x601]]
        %v1126 = vstv %s1125
        %v1127 = vmul.f32 %v1126, %v221
        %v1128 = vmul.f32 %v1126, %v222
        %s1129 = sld [smem:[#allocation7 + $0x602]]
        %v1130 = vstv %s1129
        %v1131 = vmul.f32 %v1130, %v224
        %v1132 = vmul.f32 %v1130, %v225
        %s1133 = sld [smem:[#allocation7 + $0x603]]
        %v1134 = vstv %s1133
        %v1135 = vmul.f32 %v1134, %v227
        %v1136 = vmul.f32 %v1134, %v228
        %v1137 = vadd.f32 %v1123, %v1127
        %v1138 = vadd.f32 %v1124, %v1128
        %v1139 = vadd.f32 %v1131, %v1135
        %v1140 = vadd.f32 %v1132, %v1136
        %v1141 = vadd.f32 %v1137, %v1139
        %v1142 = vadd.f32 %v1138, %v1140
        %v1143 = vmax.f32 %v1141, 0.0
        %v1144 = vmax.f32 %v1142, 0.0
        %1146 = vset.pattern.permute.xlu0 0
        %1147 = vperm.xlu0 %1146, %v1143
        %v1148 = vpop.permute.xlu0 %1147
        %1151 = vset.pattern.permute.xlu0 0
        %1152 = vperm.xlu0 %1151, %v1144
        %v1153 = vpop.permute.xlu0 %1152
        %1155 = vset.pattern.permute.xlu0 15
        %1156 = vperm.xlu0 %1155, %v1143
        %v1157 = vpop.permute.xlu0 %1156
        %1159 = vset.pattern.permute.xlu0 15
        %1160 = vperm.xlu0 %1159, %v1144
        %v1161 = vpop.permute.xlu0 %1160
        %1163 = vrot.lane.b32.xlu0 %v1143, 2
        %v1164 = vpop.permute.xlu0 %1163
        %1165 = vrot.lane.b32.xlu0 %v1144, 2
        %v1166 = vpop.permute.xlu0 %1165
        %v1169 = vsel %vm277, %v1148, %v1164
        %v1170 = vsel %vm277, %v1153, %v1166
        %v1171 = vsel %vm280, %v1169, %v1157
        %v1172 = vsel %vm280, %v1170, %v1161
        %v1173 = vlaneseq
        %v1174 = vshrl.u32 %v1173, 7
        %v1175 = vsub.s32 0, %v1174
        %v1176 = vrot.slane %v1171, %v1175
        %v1177 = vlaneseq
        %v1178 = vshrl.u32 %v1177, 7
        %v1179 = vsub.s32 7, %v1178
        %v1180 = vrot.slane %v1172, %v1179
        %v1183 = vrot.slane %v1171, 6
        %v1184 = vrot.slane %v1172, 6
        %v1185 = vsel %vm293, %v1183, %v1184
        %v1189 = vsel %vm293, %v1176, %v1183
        %v1190 = vsel %vm293, %v1184, %v1180
        %s1191 = scalar_lea.vmem [#allocation2], 288
        %1192 = vst.msk [vmem:[%s1191] sm:$0xff] %vm302, %v1189
        %1193 = vst.msk [vmem:[%s1191 + $0x8] sm:$0xff] %vm302, %v1185
        %1194 = vst.msk [vmem:[%s1191 + $0x10] sm:$0xf] %vm305, %v1190
        %s1195 = sld [smem:[#allocation7 + $0x680]]
        %v1196 = vstv %s1195
        %v1197 = vmul.f32 %v1196, %v218
        %v1198 = vmul.f32 %v1196, %v219
        %s1199 = sld [smem:[#allocation7 + $0x681]]
        %v1200 = vstv %s1199
        %v1201 = vmul.f32 %v1200, %v221
        %v1202 = vmul.f32 %v1200, %v222
        %s1203 = sld [smem:[#allocation7 + $0x682]]
        %v1204 = vstv %s1203
        %v1205 = vmul.f32 %v1204, %v224
        %v1206 = vmul.f32 %v1204, %v225
        %s1207 = sld [smem:[#allocation7 + $0x683]]
        %v1208 = vstv %s1207
        %v1209 = vmul.f32 %v1208, %v227
        %v1210 = vmul.f32 %v1208, %v228
        %v1211 = vadd.f32 %v1197, %v1201
        %v1212 = vadd.f32 %v1198, %v1202
        %v1213 = vadd.f32 %v1205, %v1209
        %v1214 = vadd.f32 %v1206, %v1210
        %v1215 = vadd.f32 %v1211, %v1213
        %v1216 = vadd.f32 %v1212, %v1214
        %v1217 = vmax.f32 %v1215, 0.0
        %v1218 = vmax.f32 %v1216, 0.0
        %1220 = vset.pattern.permute.xlu0 0
        %1221 = vperm.xlu0 %1220, %v1217
        %v1222 = vpop.permute.xlu0 %1221
        %1225 = vset.pattern.permute.xlu0 0
        %1226 = vperm.xlu0 %1225, %v1218
        %v1227 = vpop.permute.xlu0 %1226
        %1229 = vset.pattern.permute.xlu0 15
        %1230 = vperm.xlu0 %1229, %v1217
        %v1231 = vpop.permute.xlu0 %1230
        %1233 = vset.pattern.permute.xlu0 15
        %1234 = vperm.xlu0 %1233, %v1218
        %v1235 = vpop.permute.xlu0 %1234
        %1237 = vrot.lane.b32.xlu0 %v1217, 2
        %v1238 = vpop.permute.xlu0 %1237
        %1239 = vrot.lane.b32.xlu0 %v1218, 2
        %v1240 = vpop.permute.xlu0 %1239
        %v1243 = vsel %vm277, %v1222, %v1238
        %v1244 = vsel %vm277, %v1227, %v1240
        %v1245 = vsel %vm280, %v1243, %v1231
        %v1246 = vsel %vm280, %v1244, %v1235
        %v1247 = vlaneseq
        %v1248 = vshrl.u32 %v1247, 7
        %v1249 = vsub.s32 0, %v1248
        %v1250 = vrot.slane %v1245, %v1249
        %v1251 = vlaneseq
        %v1252 = vshrl.u32 %v1251, 7
        %v1253 = vsub.s32 7, %v1252
        %v1254 = vrot.slane %v1246, %v1253
        %v1257 = vrot.slane %v1245, 6
        %v1258 = vrot.slane %v1246, 6
        %v1259 = vsel %vm293, %v1257, %v1258
        %v1263 = vsel %vm293, %v1250, %v1257
        %v1264 = vsel %vm293, %v1258, %v1254
        %s1265 = scalar_lea.vmem [#allocation2], 312
        %1266 = vst.msk [vmem:[%s1265] sm:$0xff] %vm302, %v1263
        %1267 = vst.msk [vmem:[%s1265 + $0x8] sm:$0xff] %vm302, %v1259
        %1268 = vst.msk [vmem:[%s1265 + $0x10] sm:$0xf] %vm305, %v1264
        %s1269 = sld [smem:[#allocation7 + $0x700]]
        %v1270 = vstv %s1269
        %v1271 = vmul.f32 %v1270, %v218
        %v1272 = vmul.f32 %v1270, %v219
        %s1273 = sld [smem:[#allocation7 + $0x701]]
        %v1274 = vstv %s1273
        %v1275 = vmul.f32 %v1274, %v221
        %v1276 = vmul.f32 %v1274, %v222
        %s1277 = sld [smem:[#allocation7 + $0x702]]
        %v1278 = vstv %s1277
        %v1279 = vmul.f32 %v1278, %v224
        %v1280 = vmul.f32 %v1278, %v225
        %s1281 = sld [smem:[#allocation7 + $0x703]]
        %v1282 = vstv %s1281
        %v1283 = vmul.f32 %v1282, %v227
        %v1284 = vmul.f32 %v1282, %v228
        %v1285 = vadd.f32 %v1271, %v1275
        %v1286 = vadd.f32 %v1272, %v1276
        %v1287 = vadd.f32 %v1279, %v1283
        %v1288 = vadd.f32 %v1280, %v1284
        %v1289 = vadd.f32 %v1285, %v1287
        %v1290 = vadd.f32 %v1286, %v1288
        %v1291 = vmax.f32 %v1289, 0.0
        %v1292 = vmax.f32 %v1290, 0.0
        %1294 = vset.pattern.permute.xlu0 0
        %1295 = vperm.xlu0 %1294, %v1291
        %v1296 = vpop.permute.xlu0 %1295
        %1299 = vset.pattern.permute.xlu0 0
        %1300 = vperm.xlu0 %1299, %v1292
        %v1301 = vpop.permute.xlu0 %1300
        %1303 = vset.pattern.permute.xlu0 15
        %1304 = vperm.xlu0 %1303, %v1291
        %v1305 = vpop.permute.xlu0 %1304
        %1307 = vset.pattern.permute.xlu0 15
        %1308 = vperm.xlu0 %1307, %v1292
        %v1309 = vpop.permute.xlu0 %1308
        %1311 = vrot.lane.b32.xlu0 %v1291, 2
        %v1312 = vpop.permute.xlu0 %1311
        %1313 = vrot.lane.b32.xlu0 %v1292, 2
        %v1314 = vpop.permute.xlu0 %1313
        %v1317 = vsel %vm277, %v1296, %v1312
        %v1318 = vsel %vm277, %v1301, %v1314
        %v1319 = vsel %vm280, %v1317, %v1305
        %v1320 = vsel %vm280, %v1318, %v1309
        %v1321 = vlaneseq
        %v1322 = vshrl.u32 %v1321, 7
        %v1323 = vsub.s32 0, %v1322
        %v1324 = vrot.slane %v1319, %v1323
        %v1325 = vlaneseq
        %v1326 = vshrl.u32 %v1325, 7
        %v1327 = vsub.s32 7, %v1326
        %v1328 = vrot.slane %v1320, %v1327
        %v1331 = vrot.slane %v1319, 6
        %v1332 = vrot.slane %v1320, 6
        %v1333 = vsel %vm293, %v1331, %v1332
        %v1337 = vsel %vm293, %v1324, %v1331
        %v1338 = vsel %vm293, %v1332, %v1328
        %s1339 = scalar_lea.vmem [#allocation2], 336
        %1340 = vst.msk [vmem:[%s1339] sm:$0xff] %vm302, %v1337
        %1341 = vst.msk [vmem:[%s1339 + $0x8] sm:$0xff] %vm302, %v1333
        %1342 = vst.msk [vmem:[%s1339 + $0x10] sm:$0xf] %vm305, %v1338
        %s1343 = sld [smem:[#allocation7 + $0x780]]
        %v1344 = vstv %s1343
        %v1345 = vmul.f32 %v1344, %v218
        %v1346 = vmul.f32 %v1344, %v219
        %s1347 = sld [smem:[#allocation7 + $0x781]]
        %v1348 = vstv %s1347
        %v1349 = vmul.f32 %v1348, %v221
        %v1350 = vmul.f32 %v1348, %v222
        %s1351 = sld [smem:[#allocation7 + $0x782]]
        %v1352 = vstv %s1351
        %v1353 = vmul.f32 %v1352, %v224
        %v1354 = vmul.f32 %v1352, %v225
        %s1355 = sld [smem:[#allocation7 + $0x783]]
        %v1356 = vstv %s1355
        %v1357 = vmul.f32 %v1356, %v227
        %v1358 = vmul.f32 %v1356, %v228
        %v1359 = vadd.f32 %v1345, %v1349
        %v1360 = vadd.f32 %v1346, %v1350
        %v1361 = vadd.f32 %v1353, %v1357
        %v1362 = vadd.f32 %v1354, %v1358
        %v1363 = vadd.f32 %v1359, %v1361
        %v1364 = vadd.f32 %v1360, %v1362
        %v1365 = vmax.f32 %v1363, 0.0
        %v1366 = vmax.f32 %v1364, 0.0
        %1368 = vset.pattern.permute.xlu0 0
        %1369 = vperm.xlu0 %1368, %v1365
        %v1370 = vpop.permute.xlu0 %1369
        %1373 = vset.pattern.permute.xlu0 0
        %1374 = vperm.xlu0 %1373, %v1366
        %v1375 = vpop.permute.xlu0 %1374
        %1377 = vset.pattern.permute.xlu0 15
        %1378 = vperm.xlu0 %1377, %v1365
        %v1379 = vpop.permute.xlu0 %1378
        %1381 = vset.pattern.permute.xlu0 15
        %1382 = vperm.xlu0 %1381, %v1366
        %v1383 = vpop.permute.xlu0 %1382
        %1385 = vrot.lane.b32.xlu0 %v1365, 2
        %v1386 = vpop.permute.xlu0 %1385
        %1387 = vrot.lane.b32.xlu0 %v1366, 2
        %v1388 = vpop.permute.xlu0 %1387
        %v1391 = vsel %vm277, %v1370, %v1386
        %v1392 = vsel %vm277, %v1375, %v1388
        %v1393 = vsel %vm280, %v1391, %v1379
        %v1394 = vsel %vm280, %v1392, %v1383
        %v1395 = vlaneseq
        %v1396 = vshrl.u32 %v1395, 7
        %v1397 = vsub.s32 0, %v1396
        %v1398 = vrot.slane %v1393, %v1397
        %v1399 = vlaneseq
        %v1400 = vshrl.u32 %v1399, 7
        %v1401 = vsub.s32 7, %v1400
        %v1402 = vrot.slane %v1394, %v1401
        %v1405 = vrot.slane %v1393, 6
        %v1406 = vrot.slane %v1394, 6
        %v1407 = vsel %vm293, %v1405, %v1406
        %v1411 = vsel %vm293, %v1398, %v1405
        %v1412 = vsel %vm293, %v1406, %v1402
        %s1413 = scalar_lea.vmem [#allocation2], 360
        %1414 = vst.msk [vmem:[%s1413] sm:$0xff] %vm302, %v1411
        %1415 = vst.msk [vmem:[%s1413 + $0x8] sm:$0xff] %vm302, %v1407
        %1416 = vst.msk [vmem:[%s1413 + $0x10] sm:$0xf] %vm305, %v1412
        %s1417 = sld [smem:[#allocation7 + $0x800]]
        %v1418 = vstv %s1417
        %v1419 = vmul.f32 %v1418, %v218
        %v1420 = vmul.f32 %v1418, %v219
        %s1421 = sld [smem:[#allocation7 + $0x801]]
        %v1422 = vstv %s1421
        %v1423 = vmul.f32 %v1422, %v221
        %v1424 = vmul.f32 %v1422, %v222
        %s1425 = sld [smem:[#allocation7 + $0x802]]
        %v1426 = vstv %s1425
        %v1427 = vmul.f32 %v1426, %v224
        %v1428 = vmul.f32 %v1426, %v225
        %s1429 = sld [smem:[#allocation7 + $0x803]]
        %v1430 = vstv %s1429
        %v1431 = vmul.f32 %v1430, %v227
        %v1432 = vmul.f32 %v1430, %v228
        %v1433 = vadd.f32 %v1419, %v1423
        %v1434 = vadd.f32 %v1420, %v1424
        %v1435 = vadd.f32 %v1427, %v1431
        %v1436 = vadd.f32 %v1428, %v1432
        %v1437 = vadd.f32 %v1433, %v1435
        %v1438 = vadd.f32 %v1434, %v1436
        %v1439 = vmax.f32 %v1437, 0.0
        %v1440 = vmax.f32 %v1438, 0.0
        %s1441 = sld [smem:[#allocation7 + $0x880]]
        %v1442 = vstv %s1441
        %v1443 = vmul.f32 %v1442, %v218
        %v1444 = vmul.f32 %v1442, %v219
        %s1445 = sld [smem:[#allocation7 + $0x881]]
        %v1446 = vstv %s1445
        %v1447 = vmul.f32 %v1446, %v221
        %v1448 = vmul.f32 %v1446, %v222
        %s1449 = sld [smem:[#allocation7 + $0x882]]
        %v1450 = vstv %s1449
        %v1451 = vmul.f32 %v1450, %v224
        %v1452 = vmul.f32 %v1450, %v225
        %s1453 = sld [smem:[#allocation7 + $0x883]]
        %v1454 = vstv %s1453
        %v1455 = vmul.f32 %v1454, %v227
        %v1456 = vmul.f32 %v1454, %v228
        %v1457 = vadd.f32 %v1443, %v1447
        %v1458 = vadd.f32 %v1444, %v1448
        %v1459 = vadd.f32 %v1451, %v1455
        %v1460 = vadd.f32 %v1452, %v1456
        %v1461 = vadd.f32 %v1457, %v1459
        %v1462 = vadd.f32 %v1458, %v1460
        %v1463 = vmax.f32 %v1461, 0.0
        %v1464 = vmax.f32 %v1462, 0.0
        %s1465 = sld [smem:[#allocation7 + $0x900]]
        %v1466 = vstv %s1465
        %v1467 = vmul.f32 %v1466, %v218
        %v1468 = vmul.f32 %v1466, %v219
        %s1469 = sld [smem:[#allocation7 + $0x901]]
        %v1470 = vstv %s1469
        %v1471 = vmul.f32 %v1470, %v221
        %v1472 = vmul.f32 %v1470, %v222
        %s1473 = sld [smem:[#allocation7 + $0x902]]
        %v1474 = vstv %s1473
        %v1475 = vmul.f32 %v1474, %v224
        %v1476 = vmul.f32 %v1474, %v225
        %s1477 = sld [smem:[#allocation7 + $0x903]]
        %v1478 = vstv %s1477
        %v1479 = vmul.f32 %v1478, %v227
        %v1480 = vmul.f32 %v1478, %v228
        %v1481 = vadd.f32 %v1467, %v1471
        %v1482 = vadd.f32 %v1468, %v1472
        %v1483 = vadd.f32 %v1475, %v1479
        %v1484 = vadd.f32 %v1476, %v1480
        %v1485 = vadd.f32 %v1481, %v1483
        %v1486 = vadd.f32 %v1482, %v1484
        %v1487 = vmax.f32 %v1485, 0.0
        %v1488 = vmax.f32 %v1486, 0.0
        %s1489 = sld [smem:[#allocation7 + $0x980]]
        %v1490 = vstv %s1489
        %v1491 = vmul.f32 %v1490, %v218
        %v1492 = vmul.f32 %v1490, %v219
        %s1493 = sld [smem:[#allocation7 + $0x981]]
        %v1494 = vstv %s1493
        %v1495 = vmul.f32 %v1494, %v221
        %v1496 = vmul.f32 %v1494, %v222
        %s1497 = sld [smem:[#allocation7 + $0x982]]
        %v1498 = vstv %s1497
        %v1499 = vmul.f32 %v1498, %v224
        %v1500 = vmul.f32 %v1498, %v225
        %s1501 = sld [smem:[#allocation7 + $0x983]]
        %v1502 = vstv %s1501
        %v1503 = vmul.f32 %v1502, %v227
        %v1504 = vmul.f32 %v1502, %v228
        %v1505 = vadd.f32 %v1491, %v1495
        %v1506 = vadd.f32 %v1492, %v1496
        %v1507 = vadd.f32 %v1499, %v1503
        %v1508 = vadd.f32 %v1500, %v1504
        %v1509 = vadd.f32 %v1505, %v1507
        %v1510 = vadd.f32 %v1506, %v1508
        %v1511 = vmax.f32 %v1509, 0.0
        %v1512 = vmax.f32 %v1510, 0.0
        %s1513 = sld [smem:[#allocation7 + $0xa00]]
        %v1514 = vstv %s1513
        %v1515 = vmul.f32 %v1514, %v218
        %v1516 = vmul.f32 %v1514, %v219
        %s1517 = sld [smem:[#allocation7 + $0xa01]]
        %v1518 = vstv %s1517
        %v1519 = vmul.f32 %v1518, %v221
        %v1520 = vmul.f32 %v1518, %v222
        %s1521 = sld [smem:[#allocation7 + $0xa02]]
        %v1522 = vstv %s1521
        %v1523 = vmul.f32 %v1522, %v224
        %v1524 = vmul.f32 %v1522, %v225
        %s1525 = sld [smem:[#allocation7 + $0xa03]]
        %v1526 = vstv %s1525
        %v1527 = vmul.f32 %v1526, %v227
        %v1528 = vmul.f32 %v1526, %v228
        %v1529 = vadd.f32 %v1515, %v1519
        %v1530 = vadd.f32 %v1516, %v1520
        %v1531 = vadd.f32 %v1523, %v1527
        %v1532 = vadd.f32 %v1524, %v1528
        %v1533 = vadd.f32 %v1529, %v1531
        %v1534 = vadd.f32 %v1530, %v1532
        %v1535 = vmax.f32 %v1533, 0.0
        %v1536 = vmax.f32 %v1534, 0.0
        %s1537 = sld [smem:[#allocation7 + $0xa80]]
        %v1538 = vstv %s1537
        %v1539 = vmul.f32 %v1538, %v218
        %v1540 = vmul.f32 %v1538, %v219
        %s1541 = sld [smem:[#allocation7 + $0xa81]]
        %v1542 = vstv %s1541
        %v1543 = vmul.f32 %v1542, %v221
        %v1544 = vmul.f32 %v1542, %v222
        %s1545 = sld [smem:[#allocation7 + $0xa82]]
        %v1546 = vstv %s1545
        %v1547 = vmul.f32 %v1546, %v224
        %v1548 = vmul.f32 %v1546, %v225
        %s1549 = sld [smem:[#allocation7 + $0xa83]]
        %v1550 = vstv %s1549
        %v1551 = vmul.f32 %v1550, %v227
        %v1552 = vmul.f32 %v1550, %v228
        %v1553 = vadd.f32 %v1539, %v1543
        %v1554 = vadd.f32 %v1540, %v1544
        %v1555 = vadd.f32 %v1547, %v1551
        %v1556 = vadd.f32 %v1548, %v1552
        %v1557 = vadd.f32 %v1553, %v1555
        %v1558 = vadd.f32 %v1554, %v1556
        %v1559 = vmax.f32 %v1557, 0.0
        %v1560 = vmax.f32 %v1558, 0.0
        %s1561 = sld [smem:[#allocation7 + $0xb00]]
        %v1562 = vstv %s1561
        %v1563 = vmul.f32 %v1562, %v218
        %v1564 = vmul.f32 %v1562, %v219
        %s1565 = sld [smem:[#allocation7 + $0xb01]]
        %v1566 = vstv %s1565
        %v1567 = vmul.f32 %v1566, %v221
        %v1568 = vmul.f32 %v1566, %v222
        %s1569 = sld [smem:[#allocation7 + $0xb02]]
        %v1570 = vstv %s1569
        %v1571 = vmul.f32 %v1570, %v224
        %v1572 = vmul.f32 %v1570, %v225
        %s1573 = sld [smem:[#allocation7 + $0xb03]]
        %v1574 = vstv %s1573
        %v1575 = vmul.f32 %v1574, %v227
        %v1576 = vmul.f32 %v1574, %v228
        %v1577 = vadd.f32 %v1563, %v1567
        %v1578 = vadd.f32 %v1564, %v1568
        %v1579 = vadd.f32 %v1571, %v1575
        %v1580 = vadd.f32 %v1572, %v1576
        %v1581 = vadd.f32 %v1577, %v1579
        %v1582 = vadd.f32 %v1578, %v1580
        %v1583 = vmax.f32 %v1581, 0.0
        %v1584 = vmax.f32 %v1582, 0.0
        %s1585 = sld [smem:[#allocation7 + $0xb80]]
        %v1586 = vstv %s1585
        %v1587 = vmul.f32 %v1586, %v218
        %v1588 = vmul.f32 %v1586, %v219
        %s1589 = sld [smem:[#allocation7 + $0xb81]]
        %v1590 = vstv %s1589
        %v1591 = vmul.f32 %v1590, %v221
        %v1592 = vmul.f32 %v1590, %v222
        %s1593 = sld [smem:[#allocation7 + $0xb82]]
        %v1594 = vstv %s1593
        %v1595 = vmul.f32 %v1594, %v224
        %v1596 = vmul.f32 %v1594, %v225
        %s1597 = sld [smem:[#allocation7 + $0xb83]]
        %v1598 = vstv %s1597
        %v1599 = vmul.f32 %v1598, %v227
        %v1600 = vmul.f32 %v1598, %v228
        %v1601 = vadd.f32 %v1587, %v1591
        %v1602 = vadd.f32 %v1588, %v1592
        %v1603 = vadd.f32 %v1595, %v1599
        %v1604 = vadd.f32 %v1596, %v1600
        %v1605 = vadd.f32 %v1601, %v1603
        %v1606 = vadd.f32 %v1602, %v1604
        %v1607 = vmax.f32 %v1605, 0.0
        %v1608 = vmax.f32 %v1606, 0.0
        %v1609 = vld [vmem:[#allocation2] sm:$0xff]
        %v1610 = vld [vmem:[#allocation2 + $0x8] sm:$0xff]
        %v1611 = vmul.f32 %v1609, %v1439
        %v1612 = vmul.f32 %v1610, %v1440
        %v1613 = vld [vmem:[%s377] sm:$0xff]
        %v1614 = vld [vmem:[%s377 + $0x8] sm:$0xff]
        %v1615 = vmul.f32 %v1613, %v1463
        %v1616 = vmul.f32 %v1614, %v1464
        %v1617 = vld [vmem:[%s451] sm:$0xff]
        %v1618 = vld [vmem:[%s451 + $0x8] sm:$0xff]
        %v1619 = vmul.f32 %v1617, %v1487
        %v1620 = vmul.f32 %v1618, %v1488
        %v1621 = vld [vmem:[%s525] sm:$0xff]
        %v1622 = vld [vmem:[%s525 + $0x8] sm:$0xff]
        %v1623 = vmul.f32 %v1621, %v1511
        %v1624 = vmul.f32 %v1622, %v1512
        %v1625 = vld [vmem:[%s599] sm:$0xff]
        %v1626 = vld [vmem:[%s599 + $0x8] sm:$0xff]
        %v1627 = vmul.f32 %v1625, %v1535
        %v1628 = vmul.f32 %v1626, %v1536
        %v1629 = vld [vmem:[%s673] sm:$0xff]
        %v1630 = vld [vmem:[%s673 + $0x8] sm:$0xff]
        %v1631 = vmul.f32 %v1629, %v1559
        %v1632 = vmul.f32 %v1630, %v1560
        %v1633 = vld [vmem:[%s747] sm:$0xff]
        %v1634 = vld [vmem:[%s747 + $0x8] sm:$0xff]
        %v1635 = vmul.f32 %v1633, %v1583
        %v1636 = vmul.f32 %v1634, %v1584
        %v1637 = vld [vmem:[%s821] sm:$0xff]
        %v1638 = vld [vmem:[%s821 + $0x8] sm:$0xff]
        %v1639 = vmul.f32 %v1637, %v1607
        %v1640 = vmul.f32 %v1638, %v1608
        %v1641 = vadd.f32 %v1611, %v1615
        %v1642 = vadd.f32 %v1612, %v1616
        %v1643 = vadd.f32 %v1619, %v1623
        %v1644 = vadd.f32 %v1620, %v1624
        %v1645 = vadd.f32 %v1627, %v1631
        %v1646 = vadd.f32 %v1628, %v1632
        %v1647 = vadd.f32 %v1635, %v1639
        %v1648 = vadd.f32 %v1636, %v1640
        %v1649 = vadd.f32 %v1641, %v1643
        %v1650 = vadd.f32 %v1642, %v1644
        %v1651 = vadd.f32 %v1645, %v1647
        %v1652 = vadd.f32 %v1646, %v1648
        %v1653 = vadd.f32 %v1649, %v1651
        %v1654 = vadd.f32 %v1650, %v1652
        %1657 = vrot.lane.b32.xlu0 %v1439, 2
        %v1658 = vpop.permute.xlu0 %1657
        %1659 = vrot.lane.b32.xlu0 %v1440, 2
        %v1660 = vpop.permute.xlu0 %1659
        %v1663 = vmul.f32 %v1609, %v1658
        %v1664 = vmul.f32 %v1610, %v1660
        %1667 = vrot.lane.b32.xlu0 %v1463, 2
        %v1668 = vpop.permute.xlu0 %1667
        %1669 = vrot.lane.b32.xlu0 %v1464, 2
        %v1670 = vpop.permute.xlu0 %1669
        %v1673 = vmul.f32 %v1613, %v1668
        %v1674 = vmul.f32 %v1614, %v1670
        %1677 = vrot.lane.b32.xlu0 %v1487, 2
        %v1678 = vpop.permute.xlu0 %1677
        %1679 = vrot.lane.b32.xlu0 %v1488, 2
        %v1680 = vpop.permute.xlu0 %1679
        %v1683 = vmul.f32 %v1617, %v1678
        %v1684 = vmul.f32 %v1618, %v1680
        %1687 = vrot.lane.b32.xlu0 %v1511, 2
        %v1688 = vpop.permute.xlu0 %1687
        %1689 = vrot.lane.b32.xlu0 %v1512, 2
        %v1690 = vpop.permute.xlu0 %1689
        %v1693 = vmul.f32 %v1621, %v1688
        %v1694 = vmul.f32 %v1622, %v1690
        %1697 = vrot.lane.b32.xlu0 %v1535, 2
        %v1698 = vpop.permute.xlu0 %1697
        %1699 = vrot.lane.b32.xlu0 %v1536, 2
        %v1700 = vpop.permute.xlu0 %1699
        %v1703 = vmul.f32 %v1625, %v1698
        %v1704 = vmul.f32 %v1626, %v1700
        %1707 = vrot.lane.b32.xlu0 %v1559, 2
        %v1708 = vpop.permute.xlu0 %1707
        %1709 = vrot.lane.b32.xlu0 %v1560, 2
        %v1710 = vpop.permute.xlu0 %1709
        %v1713 = vmul.f32 %v1629, %v1708
        %v1714 = vmul.f32 %v1630, %v1710
        %1717 = vrot.lane.b32.xlu0 %v1583, 2
        %v1718 = vpop.permute.xlu0 %1717
        %1719 = vrot.lane.b32.xlu0 %v1584, 2
        %v1720 = vpop.permute.xlu0 %1719
        %v1723 = vmul.f32 %v1633, %v1718
        %v1724 = vmul.f32 %v1634, %v1720
        %1727 = vrot.lane.b32.xlu0 %v1607, 2
        %v1728 = vpop.permute.xlu0 %1727
        %1729 = vrot.lane.b32.xlu0 %v1608, 2
        %v1730 = vpop.permute.xlu0 %1729
        %v1733 = vmul.f32 %v1637, %v1728
        %v1734 = vmul.f32 %v1638, %v1730
        %v1735 = vadd.f32 %v1663, %v1673
        %v1736 = vadd.f32 %v1664, %v1674
        %v1737 = vadd.f32 %v1683, %v1693
        %v1738 = vadd.f32 %v1684, %v1694
        %v1739 = vadd.f32 %v1703, %v1713
        %v1740 = vadd.f32 %v1704, %v1714
        %v1741 = vadd.f32 %v1723, %v1733
        %v1742 = vadd.f32 %v1724, %v1734
        %v1743 = vadd.f32 %v1735, %v1737
        %v1744 = vadd.f32 %v1736, %v1738
        %v1745 = vadd.f32 %v1739, %v1741
        %v1746 = vadd.f32 %v1740, %v1742
        %v1747 = vadd.f32 %v1743, %v1745
        %v1748 = vadd.f32 %v1744, %v1746
        %1749 = vrot.lane.b32.xlu0 %v1439, 4
        %v1750 = vpop.permute.xlu0 %1749
        %1751 = vrot.lane.b32.xlu0 %v1440, 4
        %v1752 = vpop.permute.xlu0 %1751
        %v1755 = vmul.f32 %v1609, %v1750
        %v1756 = vmul.f32 %v1610, %v1752
        %1757 = vrot.lane.b32.xlu0 %v1463, 4
        %v1758 = vpop.permute.xlu0 %1757
        %1759 = vrot.lane.b32.xlu0 %v1464, 4
        %v1760 = vpop.permute.xlu0 %1759
        %v1763 = vmul.f32 %v1613, %v1758
        %v1764 = vmul.f32 %v1614, %v1760
        %1765 = vrot.lane.b32.xlu0 %v1487, 4
        %v1766 = vpop.permute.xlu0 %1765
        %1767 = vrot.lane.b32.xlu0 %v1488, 4
        %v1768 = vpop.permute.xlu0 %1767
        %v1771 = vmul.f32 %v1617, %v1766
        %v1772 = vmul.f32 %v1618, %v1768
        %1773 = vrot.lane.b32.xlu0 %v1511, 4
        %v1774 = vpop.permute.xlu0 %1773
        %1775 = vrot.lane.b32.xlu0 %v1512, 4
        %v1776 = vpop.permute.xlu0 %1775
        %v1779 = vmul.f32 %v1621, %v1774
        %v1780 = vmul.f32 %v1622, %v1776
        %1781 = vrot.lane.b32.xlu0 %v1535, 4
        %v1782 = vpop.permute.xlu0 %1781
        %1783 = vrot.lane.b32.xlu0 %v1536, 4
        %v1784 = vpop.permute.xlu0 %1783
        %v1787 = vmul.f32 %v1625, %v1782
        %v1788 = vmul.f32 %v1626, %v1784
        %1789 = vrot.lane.b32.xlu0 %v1559, 4
        %v1790 = vpop.permute.xlu0 %1789
        %1791 = vrot.lane.b32.xlu0 %v1560, 4
        %v1792 = vpop.permute.xlu0 %1791
        %v1795 = vmul.f32 %v1629, %v1790
        %v1796 = vmul.f32 %v1630, %v1792
        %1797 = vrot.lane.b32.xlu0 %v1583, 4
        %v1798 = vpop.permute.xlu0 %1797
        %1799 = vrot.lane.b32.xlu0 %v1584, 4
        %v1800 = vpop.permute.xlu0 %1799
        %v1803 = vmul.f32 %v1633, %v1798
        %v1804 = vmul.f32 %v1634, %v1800
        %1805 = vrot.lane.b32.xlu0 %v1607, 4
        %v1806 = vpop.permute.xlu0 %1805
        %1807 = vrot.lane.b32.xlu0 %v1608, 4
        %v1808 = vpop.permute.xlu0 %1807
        %v1811 = vmul.f32 %v1637, %v1806
        %v1812 = vmul.f32 %v1638, %v1808
        %v1813 = vadd.f32 %v1755, %v1763
        %v1814 = vadd.f32 %v1756, %v1764
        %v1815 = vadd.f32 %v1771, %v1779
        %v1816 = vadd.f32 %v1772, %v1780
        %v1817 = vadd.f32 %v1787, %v1795
        %v1818 = vadd.f32 %v1788, %v1796
        %v1819 = vadd.f32 %v1803, %v1811
        %v1820 = vadd.f32 %v1804, %v1812
        %v1821 = vadd.f32 %v1813, %v1815
        %v1822 = vadd.f32 %v1814, %v1816
        %v1823 = vadd.f32 %v1817, %v1819
        %v1824 = vadd.f32 %v1818, %v1820
        %v1825 = vadd.f32 %v1821, %v1823
        %v1826 = vadd.f32 %v1822, %v1824
        %v1827 = vld [vmem:[#allocation2 + $0x2] sm:$0xff]
        %v1828 = vld [vmem:[#allocation2 + $0xa] sm:$0xff]
        %v1829 = vmul.f32 %v1827, %v1439
        %v1830 = vmul.f32 %v1828, %v1440
        %v1831 = vld [vmem:[%s377 + $0x2] sm:$0xff]
        %v1832 = vld [vmem:[%s377 + $0xa] sm:$0xff]
        %v1833 = vmul.f32 %v1831, %v1463
        %v1834 = vmul.f32 %v1832, %v1464
        %v1835 = vld [vmem:[%s451 + $0x2] sm:$0xff]
        %v1836 = vld [vmem:[%s451 + $0xa] sm:$0xff]
        %v1837 = vmul.f32 %v1835, %v1487
        %v1838 = vmul.f32 %v1836, %v1488
        %v1839 = vld [vmem:[%s525 + $0x2] sm:$0xff]
        %v1840 = vld [vmem:[%s525 + $0xa] sm:$0xff]
        %v1841 = vmul.f32 %v1839, %v1511
        %v1842 = vmul.f32 %v1840, %v1512
        %v1843 = vld [vmem:[%s599 + $0x2] sm:$0xff]
        %v1844 = vld [vmem:[%s599 + $0xa] sm:$0xff]
        %v1845 = vmul.f32 %v1843, %v1535
        %v1846 = vmul.f32 %v1844, %v1536
        %v1847 = vld [vmem:[%s673 + $0x2] sm:$0xff]
        %v1848 = vld [vmem:[%s673 + $0xa] sm:$0xff]
        %v1849 = vmul.f32 %v1847, %v1559
        %v1850 = vmul.f32 %v1848, %v1560
        %v1851 = vld [vmem:[%s747 + $0x2] sm:$0xff]
        %v1852 = vld [vmem:[%s747 + $0xa] sm:$0xff]
        %v1853 = vmul.f32 %v1851, %v1583
        %v1854 = vmul.f32 %v1852, %v1584
        %v1855 = vld [vmem:[%s821 + $0x2] sm:$0xff]
        %v1856 = vld [vmem:[%s821 + $0xa] sm:$0xff]
        %v1857 = vmul.f32 %v1855, %v1607
        %v1858 = vmul.f32 %v1856, %v1608
        %v1859 = vadd.f32 %v1829, %v1833
        %v1860 = vadd.f32 %v1830, %v1834
        %v1861 = vadd.f32 %v1837, %v1841
        %v1862 = vadd.f32 %v1838, %v1842
        %v1863 = vadd.f32 %v1845, %v1849
        %v1864 = vadd.f32 %v1846, %v1850
        %v1865 = vadd.f32 %v1853, %v1857
        %v1866 = vadd.f32 %v1854, %v1858
        %v1867 = vadd.f32 %v1859, %v1861
        %v1868 = vadd.f32 %v1860, %v1862
        %v1869 = vadd.f32 %v1863, %v1865
        %v1870 = vadd.f32 %v1864, %v1866
        %v1871 = vadd.f32 %v1867, %v1869
        %v1872 = vadd.f32 %v1868, %v1870
        %v1873 = vmul.f32 %v1827, %v1658
        %v1874 = vmul.f32 %v1828, %v1660
        %v1875 = vmul.f32 %v1831, %v1668
        %v1876 = vmul.f32 %v1832, %v1670
        %v1877 = vmul.f32 %v1835, %v1678
        %v1878 = vmul.f32 %v1836, %v1680
        %v1879 = vmul.f32 %v1839, %v1688
        %v1880 = vmul.f32 %v1840, %v1690
        %v1881 = vmul.f32 %v1843, %v1698
        %v1882 = vmul.f32 %v1844, %v1700
        %v1883 = vmul.f32 %v1847, %v1708
        %v1884 = vmul.f32 %v1848, %v1710
        %v1885 = vmul.f32 %v1851, %v1718
        %v1886 = vmul.f32 %v1852, %v1720
        %v1887 = vmul.f32 %v1855, %v1728
        %v1888 = vmul.f32 %v1856, %v1730
        %v1889 = vadd.f32 %v1873, %v1875
        %v1890 = vadd.f32 %v1874, %v1876
        %v1891 = vadd.f32 %v1877, %v1879
        %v1892 = vadd.f32 %v1878, %v1880
        %v1893 = vadd.f32 %v1881, %v1883
        %v1894 = vadd.f32 %v1882, %v1884
        %v1895 = vadd.f32 %v1885, %v1887
        %v1896 = vadd.f32 %v1886, %v1888
        %v1897 = vadd.f32 %v1889, %v1891
        %v1898 = vadd.f32 %v1890, %v1892
        %v1899 = vadd.f32 %v1893, %v1895
        %v1900 = vadd.f32 %v1894, %v1896
        %v1901 = vadd.f32 %v1897, %v1899
        %v1902 = vadd.f32 %v1898, %v1900
        %v1903 = vmul.f32 %v1827, %v1750
        %v1904 = vmul.f32 %v1828, %v1752
        %v1905 = vmul.f32 %v1831, %v1758
        %v1906 = vmul.f32 %v1832, %v1760
        %v1907 = vmul.f32 %v1835, %v1766
        %v1908 = vmul.f32 %v1836, %v1768
        %v1909 = vmul.f32 %v1839, %v1774
        %v1910 = vmul.f32 %v1840, %v1776
        %v1911 = vmul.f32 %v1843, %v1782
        %v1912 = vmul.f32 %v1844, %v1784
        %v1913 = vmul.f32 %v1847, %v1790
        %v1914 = vmul.f32 %v1848, %v1792
        %v1915 = vmul.f32 %v1851, %v1798
        %v1916 = vmul.f32 %v1852, %v1800
        %v1917 = vmul.f32 %v1855, %v1806
        %v1918 = vmul.f32 %v1856, %v1808
        %v1919 = vadd.f32 %v1903, %v1905
        %v1920 = vadd.f32 %v1904, %v1906
        %v1921 = vadd.f32 %v1907, %v1909
        %v1922 = vadd.f32 %v1908, %v1910
        %v1923 = vadd.f32 %v1911, %v1913
        %v1924 = vadd.f32 %v1912, %v1914
        %v1925 = vadd.f32 %v1915, %v1917
        %v1926 = vadd.f32 %v1916, %v1918
        %v1927 = vadd.f32 %v1919, %v1921
        %v1928 = vadd.f32 %v1920, %v1922
        %v1929 = vadd.f32 %v1923, %v1925
        %v1930 = vadd.f32 %v1924, %v1926
        %v1931 = vadd.f32 %v1927, %v1929
        %v1932 = vadd.f32 %v1928, %v1930
        %v1933 = vld [vmem:[#allocation2 + $0x4] sm:$0xff]
        %v1934 = vld [vmem:[#allocation2 + $0xc] sm:$0xff]
        %v1935 = vmul.f32 %v1933, %v1439
        %v1936 = vmul.f32 %v1934, %v1440
        %v1937 = vld [vmem:[%s377 + $0x4] sm:$0xff]
        %v1938 = vld [vmem:[%s377 + $0xc] sm:$0xff]
        %v1939 = vmul.f32 %v1937, %v1463
        %v1940 = vmul.f32 %v1938, %v1464
        %v1941 = vld [vmem:[%s451 + $0x4] sm:$0xff]
        %v1942 = vld [vmem:[%s451 + $0xc] sm:$0xff]
        %v1943 = vmul.f32 %v1941, %v1487
        %v1944 = vmul.f32 %v1942, %v1488
        %v1945 = vld [vmem:[%s525 + $0x4] sm:$0xff]
        %v1946 = vld [vmem:[%s525 + $0xc] sm:$0xff]
        %v1947 = vmul.f32 %v1945, %v1511
        %v1948 = vmul.f32 %v1946, %v1512
        %v1949 = vld [vmem:[%s599 + $0x4] sm:$0xff]
        %v1950 = vld [vmem:[%s599 + $0xc] sm:$0xff]
        %v1951 = vmul.f32 %v1949, %v1535
        %v1952 = vmul.f32 %v1950, %v1536
        %v1953 = vld [vmem:[%s673 + $0x4] sm:$0xff]
        %v1954 = vld [vmem:[%s673 + $0xc] sm:$0xff]
        %v1955 = vmul.f32 %v1953, %v1559
        %v1956 = vmul.f32 %v1954, %v1560
        %v1957 = vld [vmem:[%s747 + $0x4] sm:$0xff]
        %v1958 = vld [vmem:[%s747 + $0xc] sm:$0xff]
        %v1959 = vmul.f32 %v1957, %v1583
        %v1960 = vmul.f32 %v1958, %v1584
        %v1961 = vld [vmem:[%s821 + $0x4] sm:$0xff]
        %v1962 = vld [vmem:[%s821 + $0xc] sm:$0xff]
        %v1963 = vmul.f32 %v1961, %v1607
        %v1964 = vmul.f32 %v1962, %v1608
        %v1965 = vadd.f32 %v1935, %v1939
        %v1966 = vadd.f32 %v1936, %v1940
        %v1967 = vadd.f32 %v1943, %v1947
        %v1968 = vadd.f32 %v1944, %v1948
        %v1969 = vadd.f32 %v1951, %v1955
        %v1970 = vadd.f32 %v1952, %v1956
        %v1971 = vadd.f32 %v1959, %v1963
        %v1972 = vadd.f32 %v1960, %v1964
        %v1973 = vadd.f32 %v1965, %v1967
        %v1974 = vadd.f32 %v1966, %v1968
        %v1975 = vadd.f32 %v1969, %v1971
        %v1976 = vadd.f32 %v1970, %v1972
        %v1977 = vadd.f32 %v1973, %v1975
        %v1978 = vadd.f32 %v1974, %v1976
        %v1979 = vmul.f32 %v1933, %v1658
        %v1980 = vmul.f32 %v1934, %v1660
        %v1981 = vmul.f32 %v1937, %v1668
        %v1982 = vmul.f32 %v1938, %v1670
        %v1983 = vmul.f32 %v1941, %v1678
        %v1984 = vmul.f32 %v1942, %v1680
        %v1985 = vmul.f32 %v1945, %v1688
        %v1986 = vmul.f32 %v1946, %v1690
        %v1987 = vmul.f32 %v1949, %v1698
        %v1988 = vmul.f32 %v1950, %v1700
        %v1989 = vmul.f32 %v1953, %v1708
        %v1990 = vmul.f32 %v1954, %v1710
        %v1991 = vmul.f32 %v1957, %v1718
        %v1992 = vmul.f32 %v1958, %v1720
        %v1993 = vmul.f32 %v1961, %v1728
        %v1994 = vmul.f32 %v1962, %v1730
        %v1995 = vadd.f32 %v1979, %v1981
        %v1996 = vadd.f32 %v1980, %v1982
        %v1997 = vadd.f32 %v1983, %v1985
        %v1998 = vadd.f32 %v1984, %v1986
        %v1999 = vadd.f32 %v1987, %v1989
        %v2000 = vadd.f32 %v1988, %v1990
        %v2001 = vadd.f32 %v1991, %v1993
        %v2002 = vadd.f32 %v1992, %v1994
        %v2003 = vadd.f32 %v1995, %v1997
        %v2004 = vadd.f32 %v1996, %v1998
        %v2005 = vadd.f32 %v1999, %v2001
        %v2006 = vadd.f32 %v2000, %v2002
        %v2007 = vadd.f32 %v2003, %v2005
        %v2008 = vadd.f32 %v2004, %v2006
        %v2009 = vmul.f32 %v1933, %v1750
        %v2010 = vmul.f32 %v1934, %v1752
        %v2011 = vmul.f32 %v1937, %v1758
        %v2012 = vmul.f32 %v1938, %v1760
        %v2013 = vmul.f32 %v1941, %v1766
        %v2014 = vmul.f32 %v1942, %v1768
        %v2015 = vmul.f32 %v1945, %v1774
        %v2016 = vmul.f32 %v1946, %v1776
        %v2017 = vmul.f32 %v1949, %v1782
        %v2018 = vmul.f32 %v1950, %v1784
        %v2019 = vmul.f32 %v1953, %v1790
        %v2020 = vmul.f32 %v1954, %v1792
        %v2021 = vmul.f32 %v1957, %v1798
        %v2022 = vmul.f32 %v1958, %v1800
        %v2023 = vmul.f32 %v1961, %v1806
        %v2024 = vmul.f32 %v1962, %v1808
        %v2025 = vadd.f32 %v2009, %v2011
        %v2026 = vadd.f32 %v2010, %v2012
        %v2027 = vadd.f32 %v2013, %v2015
        %v2028 = vadd.f32 %v2014, %v2016
        %v2029 = vadd.f32 %v2017, %v2019
        %v2030 = vadd.f32 %v2018, %v2020
        %v2031 = vadd.f32 %v2021, %v2023
        %v2032 = vadd.f32 %v2022, %v2024
        %v2033 = vadd.f32 %v2025, %v2027
        %v2034 = vadd.f32 %v2026, %v2028
        %v2035 = vadd.f32 %v2029, %v2031
        %v2036 = vadd.f32 %v2030, %v2032
        %v2037 = vadd.f32 %v2033, %v2035
        %v2038 = vadd.f32 %v2034, %v2036
        %2041 = vrot.lane.b32.xlu0 %v1747, 126
        %v2042 = vpop.permute.xlu0 %2041
        %2043 = vrot.lane.b32.xlu0 %v1748, 126
        %v2044 = vpop.permute.xlu0 %2043
        %v2047 = vmax.f32 %v1653, %v2042
        %v2048 = vmax.f32 %v1654, %v2044
        %2051 = vrot.lane.b32.xlu0 %v1871, 4
        %v2052 = vpop.permute.xlu0 %2051
        %2053 = vrot.lane.b32.xlu0 %v1872, 4
        %v2054 = vpop.permute.xlu0 %2053
        %v2057 = vmax.f32 %v1825, %v2052
        %v2058 = vmax.f32 %v1826, %v2054
        %2061 = vrot.lane.b32.xlu0 %v1931, 126
        %v2062 = vpop.permute.xlu0 %2061
        %2063 = vrot.lane.b32.xlu0 %v1932, 126
        %v2064 = vpop.permute.xlu0 %2063
        %v2067 = vmax.f32 %v1901, %v2062
        %v2068 = vmax.f32 %v1902, %v2064
        %2071 = vrot.lane.b32.xlu0 %v2007, 126
        %v2072 = vpop.permute.xlu0 %2071
        %2073 = vrot.lane.b32.xlu0 %v2008, 126
        %v2074 = vpop.permute.xlu0 %2073
        %v2077 = vmax.f32 %v1977, %v2072
        %v2078 = vmax.f32 %v1978, %v2074
        %2081 = vrot.lane.b32.xlu0 %v2057, 124
        %v2082 = vpop.permute.xlu0 %2081
        %2083 = vrot.lane.b32.xlu0 %v2058, 124
        %v2084 = vpop.permute.xlu0 %2083
        %v2087 = vmax.f32 %v2047, %v2082
        %v2088 = vmax.f32 %v2048, %v2084
        %2091 = vrot.lane.b32.xlu0 %v2077, 2
        %v2092 = vpop.permute.xlu0 %2091
        %2093 = vrot.lane.b32.xlu0 %v2078, 2
        %v2094 = vpop.permute.xlu0 %2093
        %v2097 = vmax.f32 %v2067, %v2092
        %v2098 = vmax.f32 %v2068, %v2094
        %2101 = vrot.lane.b32.xlu0 %v2097, 126
        %v2102 = vpop.permute.xlu0 %2101
        %2103 = vrot.lane.b32.xlu0 %v2098, 126
        %v2104 = vpop.permute.xlu0 %2103
        %v2107 = vmax.f32 %v2087, %v2102
        %v2108 = vmax.f32 %v2088, %v2104
        %2111 = vrot.lane.b32.xlu0 %v2037, 124
        %v2112 = vpop.permute.xlu0 %2111
        %2113 = vrot.lane.b32.xlu0 %v2038, 124
        %v2114 = vpop.permute.xlu0 %2113
        %v2117 = vmax.f32 %v2107, %v2112
        %v2118 = vmax.f32 %v2108, %v2114
        %v2119 = vsub.f32 %v1653, %v2117
        %v2120 = vsub.f32 %v1654, %v2118
        %v2121 = vmul.f32 %v2119, 1.442695
        %v2122 = vpow.pop %v2121
        %v2123 = vmul.f32 %v2120, 1.442695
        %v2124 = vpow.pop %v2123
        %2127 = vrot.lane.b32.xlu0 %v2117, 2
        %v2128 = vpop.permute.xlu0 %2127
        %2129 = vrot.lane.b32.xlu0 %v2118, 2
        %v2130 = vpop.permute.xlu0 %2129
        %v2133 = vsub.f32 %v1747, %v2128
        %v2134 = vsub.f32 %v1748, %v2130
        %v2135 = vmul.f32 %v2133, 1.442695
        %v2136 = vpow.pop %v2135
        %v2137 = vmul.f32 %v2134, 1.442695
        %v2138 = vpow.pop %v2137
        %2139 = vrot.lane.b32.xlu0 %v2117, 4
        %v2140 = vpop.permute.xlu0 %2139
        %2141 = vrot.lane.b32.xlu0 %v2118, 4
        %v2142 = vpop.permute.xlu0 %2141
        %v2145 = vsub.f32 %v1825, %v2140
        %v2146 = vsub.f32 %v1826, %v2142
        %v2147 = vmul.f32 %v2145, 1.442695
        %v2148 = vpow.pop %v2147
        %v2149 = vmul.f32 %v2146, 1.442695
        %v2150 = vpow.pop %v2149
        %v2151 = vsub.f32 %v1871, %v2117
        %v2152 = vsub.f32 %v1872, %v2118
        %v2153 = vmul.f32 %v2151, 1.442695
        %v2154 = vpow.pop %v2153
        %v2155 = vmul.f32 %v2152, 1.442695
        %v2156 = vpow.pop %v2155
        %v2157 = vsub.f32 %v1901, %v2128
        %v2158 = vsub.f32 %v1902, %v2130
        %v2159 = vmul.f32 %v2157, 1.442695
        %v2160 = vpow.pop %v2159
        %v2161 = vmul.f32 %v2158, 1.442695
        %v2162 = vpow.pop %v2161
        %v2163 = vsub.f32 %v1931, %v2140
        %v2164 = vsub.f32 %v1932, %v2142
        %v2165 = vmul.f32 %v2163, 1.442695
        %v2166 = vpow.pop %v2165
        %v2167 = vmul.f32 %v2164, 1.442695
        %v2168 = vpow.pop %v2167
        %v2169 = vsub.f32 %v1977, %v2117
        %v2170 = vsub.f32 %v1978, %v2118
        %v2171 = vmul.f32 %v2169, 1.442695
        %v2172 = vpow.pop %v2171
        %v2173 = vmul.f32 %v2170, 1.442695
        %v2174 = vpow.pop %v2173
        %v2175 = vsub.f32 %v2007, %v2128
        %v2176 = vsub.f32 %v2008, %v2130
        %v2177 = vmul.f32 %v2175, 1.442695
        %v2178 = vpow.pop %v2177
        %v2179 = vmul.f32 %v2176, 1.442695
        %v2180 = vpow.pop %v2179
        %v2181 = vsub.f32 %v2037, %v2140
        %v2182 = vsub.f32 %v2038, %v2142
        %v2183 = vmul.f32 %v2181, 1.442695
        %v2184 = vpow.pop %v2183
        %v2185 = vmul.f32 %v2182, 1.442695
        %v2186 = vpow.pop %v2185
        %2189 = vrot.lane.b32.xlu0 %v2136, 126
        %v2190 = vpop.permute.xlu0 %2189
        %2191 = vrot.lane.b32.xlu0 %v2138, 126
        %v2192 = vpop.permute.xlu0 %2191
        %v2195 = vadd.f32 %v2122, %v2190
        %v2196 = vadd.f32 %v2124, %v2192
        %2199 = vrot.lane.b32.xlu0 %v2154, 4
        %v2200 = vpop.permute.xlu0 %2199
        %2201 = vrot.lane.b32.xlu0 %v2156, 4
        %v2202 = vpop.permute.xlu0 %2201
        %v2205 = vadd.f32 %v2148, %v2200
        %v2206 = vadd.f32 %v2150, %v2202
        %2209 = vrot.lane.b32.xlu0 %v2166, 126
        %v2210 = vpop.permute.xlu0 %2209
        %2211 = vrot.lane.b32.xlu0 %v2168, 126
        %v2212 = vpop.permute.xlu0 %2211
        %v2215 = vadd.f32 %v2160, %v2210
        %v2216 = vadd.f32 %v2162, %v2212
        %2219 = vrot.lane.b32.xlu0 %v2178, 126
        %v2220 = vpop.permute.xlu0 %2219
        %2221 = vrot.lane.b32.xlu0 %v2180, 126
        %v2222 = vpop.permute.xlu0 %2221
        %v2225 = vadd.f32 %v2172, %v2220
        %v2226 = vadd.f32 %v2174, %v2222
        %2229 = vrot.lane.b32.xlu0 %v2205, 124
        %v2230 = vpop.permute.xlu0 %2229
        %2231 = vrot.lane.b32.xlu0 %v2206, 124
        %v2232 = vpop.permute.xlu0 %2231
        %v2235 = vadd.f32 %v2195, %v2230
        %v2236 = vadd.f32 %v2196, %v2232
        %2239 = vrot.lane.b32.xlu0 %v2225, 2
        %v2240 = vpop.permute.xlu0 %2239
        %2241 = vrot.lane.b32.xlu0 %v2226, 2
        %v2242 = vpop.permute.xlu0 %2241
        %v2245 = vadd.f32 %v2215, %v2240
        %v2246 = vadd.f32 %v2216, %v2242
        %2249 = vrot.lane.b32.xlu0 %v2245, 126
        %v2250 = vpop.permute.xlu0 %2249
        %2251 = vrot.lane.b32.xlu0 %v2246, 126
        %v2252 = vpop.permute.xlu0 %2251
        %v2255 = vadd.f32 %v2235, %v2250
        %v2256 = vadd.f32 %v2236, %v2252
        %2259 = vrot.lane.b32.xlu0 %v2184, 124
        %v2260 = vpop.permute.xlu0 %2259
        %2261 = vrot.lane.b32.xlu0 %v2186, 124
        %v2262 = vpop.permute.xlu0 %2261
        %v2265 = vadd.f32 %v2255, %v2260
        %v2266 = vadd.f32 %v2256, %v2262
        %v2267 = vrcp.pop %v2265
        %v2268 = vrcp.pop %v2266
        %v2269 = vmul.f32 %v2122, %v2267
        %v2270 = vmul.f32 %v2124, %v2268
        %2273 = vrot.lane.b32.xlu0 %v2267, 2
        %v2274 = vpop.permute.xlu0 %2273
        %2275 = vrot.lane.b32.xlu0 %v2268, 2
        %v2276 = vpop.permute.xlu0 %2275
        %v2279 = vmul.f32 %v2136, %v2274
        %v2280 = vmul.f32 %v2138, %v2276
        %2281 = vrot.lane.b32.xlu0 %v2267, 4
        %v2282 = vpop.permute.xlu0 %2281
        %2283 = vrot.lane.b32.xlu0 %v2268, 4
        %v2284 = vpop.permute.xlu0 %2283
        %v2287 = vmul.f32 %v2148, %v2282
        %v2288 = vmul.f32 %v2150, %v2284
        %v2289 = vmul.f32 %v2154, %v2267
        %v2290 = vmul.f32 %v2156, %v2268
        %v2291 = vmul.f32 %v2160, %v2274
        %v2292 = vmul.f32 %v2162, %v2276
        %v2293 = vmul.f32 %v2166, %v2282
        %v2294 = vmul.f32 %v2168, %v2284
        %v2295 = vmul.f32 %v2172, %v2267
        %v2296 = vmul.f32 %v2174, %v2268
        %v2297 = vmul.f32 %v2178, %v2274
        %v2298 = vmul.f32 %v2180, %v2276
        %v2299 = vmul.f32 %v2184, %v2282
        %v2300 = vmul.f32 %v2186, %v2284
        %v2301 = vld [vmem:[%s895] sm:$0xff]
        %v2302 = vld [vmem:[%s895 + $0x8] sm:$0xff]
        %v2303 = vmul.f32 %v2301, %v2269
        %v2304 = vmul.f32 %v2302, %v2270
        %v2305 = vmul.f32 %v2301, %v2279
        %v2306 = vmul.f32 %v2302, %v2280
        %v2307 = vmul.f32 %v2301, %v2287
        %v2308 = vmul.f32 %v2302, %v2288
        %v2309 = vld [vmem:[%s895 + $0x2] sm:$0xff]
        %v2310 = vld [vmem:[%s895 + $0xa] sm:$0xff]
        %v2311 = vmul.f32 %v2309, %v2289
        %v2312 = vmul.f32 %v2310, %v2290
        %v2313 = vmul.f32 %v2309, %v2291
        %v2314 = vmul.f32 %v2310, %v2292
        %v2315 = vmul.f32 %v2309, %v2293
        %v2316 = vmul.f32 %v2310, %v2294
        %v2317 = vld [vmem:[%s895 + $0x4] sm:$0xff]
        %v2318 = vld [vmem:[%s895 + $0xc] sm:$0xff]
        %v2319 = vmul.f32 %v2317, %v2295
        %v2320 = vmul.f32 %v2318, %v2296
        %v2321 = vmul.f32 %v2317, %v2297
        %v2322 = vmul.f32 %v2318, %v2298
        %v2323 = vmul.f32 %v2317, %v2299
        %v2324 = vmul.f32 %v2318, %v2300
        %2327 = vrot.lane.b32.xlu0 %v2305, 126
        %v2328 = vpop.permute.xlu0 %2327
        %2329 = vrot.lane.b32.xlu0 %v2306, 126
        %v2330 = vpop.permute.xlu0 %2329
        %v2333 = vadd.f32 %v2303, %v2328
        %v2334 = vadd.f32 %v2304, %v2330
        %2337 = vrot.lane.b32.xlu0 %v2311, 4
        %v2338 = vpop.permute.xlu0 %2337
        %2339 = vrot.lane.b32.xlu0 %v2312, 4
        %v2340 = vpop.permute.xlu0 %2339
        %v2343 = vadd.f32 %v2307, %v2338
        %v2344 = vadd.f32 %v2308, %v2340
        %2347 = vrot.lane.b32.xlu0 %v2315, 126
        %v2348 = vpop.permute.xlu0 %2347
        %2349 = vrot.lane.b32.xlu0 %v2316, 126
        %v2350 = vpop.permute.xlu0 %2349
        %v2353 = vadd.f32 %v2313, %v2348
        %v2354 = vadd.f32 %v2314, %v2350
        %2357 = vrot.lane.b32.xlu0 %v2321, 126
        %v2358 = vpop.permute.xlu0 %2357
        %2359 = vrot.lane.b32.xlu0 %v2322, 126
        %v2360 = vpop.permute.xlu0 %2359
        %v2363 = vadd.f32 %v2319, %v2358
        %v2364 = vadd.f32 %v2320, %v2360
        %2367 = vrot.lane.b32.xlu0 %v2343, 124
        %v2368 = vpop.permute.xlu0 %2367
        %2369 = vrot.lane.b32.xlu0 %v2344, 124
        %v2370 = vpop.permute.xlu0 %2369
        %v2373 = vadd.f32 %v2333, %v2368
        %v2374 = vadd.f32 %v2334, %v2370
        %2377 = vrot.lane.b32.xlu0 %v2363, 2
        %v2378 = vpop.permute.xlu0 %2377
        %2379 = vrot.lane.b32.xlu0 %v2364, 2
        %v2380 = vpop.permute.xlu0 %2379
        %v2383 = vadd.f32 %v2353, %v2378
        %v2384 = vadd.f32 %v2354, %v2380
        %2387 = vrot.lane.b32.xlu0 %v2383, 126
        %v2388 = vpop.permute.xlu0 %2387
        %2389 = vrot.lane.b32.xlu0 %v2384, 126
        %v2390 = vpop.permute.xlu0 %2389
        %v2393 = vadd.f32 %v2373, %v2388
        %v2394 = vadd.f32 %v2374, %v2390
        %2397 = vrot.lane.b32.xlu0 %v2323, 124
        %v2398 = vpop.permute.xlu0 %2397
        %2399 = vrot.lane.b32.xlu0 %v2324, 124
        %v2400 = vpop.permute.xlu0 %2399
        %v2403 = vadd.f32 %v2393, %v2398
        %v2404 = vadd.f32 %v2394, %v2400
        %v2405 = vld [vmem:[%s969] sm:$0xff]
        %v2406 = vld [vmem:[%s969 + $0x8] sm:$0xff]
        %v2407 = vmul.f32 %v2405, %v2269
        %v2408 = vmul.f32 %v2406, %v2270
        %v2409 = vmul.f32 %v2405, %v2279
        %v2410 = vmul.f32 %v2406, %v2280
        %v2411 = vmul.f32 %v2405, %v2287
        %v2412 = vmul.f32 %v2406, %v2288
        %v2413 = vld [vmem:[%s969 + $0x2] sm:$0xff]
        %v2414 = vld [vmem:[%s969 + $0xa] sm:$0xff]
        %v2415 = vmul.f32 %v2413, %v2289
        %v2416 = vmul.f32 %v2414, %v2290
        %v2417 = vmul.f32 %v2413, %v2291
        %v2418 = vmul.f32 %v2414, %v2292
        %v2419 = vmul.f32 %v2413, %v2293
        %v2420 = vmul.f32 %v2414, %v2294
        %v2421 = vld [vmem:[%s969 + $0x4] sm:$0xff]
        %v2422 = vld [vmem:[%s969 + $0xc] sm:$0xff]
        %v2423 = vmul.f32 %v2421, %v2295
        %v2424 = vmul.f32 %v2422, %v2296
        %v2425 = vmul.f32 %v2421, %v2297
        %v2426 = vmul.f32 %v2422, %v2298
        %v2427 = vmul.f32 %v2421, %v2299
        %v2428 = vmul.f32 %v2422, %v2300
        %2431 = vrot.lane.b32.xlu0 %v2409, 126
        %v2432 = vpop.permute.xlu0 %2431
        %2433 = vrot.lane.b32.xlu0 %v2410, 126
        %v2434 = vpop.permute.xlu0 %2433
        %v2437 = vadd.f32 %v2407, %v2432
        %v2438 = vadd.f32 %v2408, %v2434
        %2441 = vrot.lane.b32.xlu0 %v2415, 4
        %v2442 = vpop.permute.xlu0 %2441
        %2443 = vrot.lane.b32.xlu0 %v2416, 4
        %v2444 = vpop.permute.xlu0 %2443
        %v2447 = vadd.f32 %v2411, %v2442
        %v2448 = vadd.f32 %v2412, %v2444
        %2451 = vrot.lane.b32.xlu0 %v2419, 126
        %v2452 = vpop.permute.xlu0 %2451
        %2453 = vrot.lane.b32.xlu0 %v2420, 126
        %v2454 = vpop.permute.xlu0 %2453
        %v2457 = vadd.f32 %v2417, %v2452
        %v2458 = vadd.f32 %v2418, %v2454
        %2461 = vrot.lane.b32.xlu0 %v2425, 126
        %v2462 = vpop.permute.xlu0 %2461
        %2463 = vrot.lane.b32.xlu0 %v2426, 126
        %v2464 = vpop.permute.xlu0 %2463
        %v2467 = vadd.f32 %v2423, %v2462
        %v2468 = vadd.f32 %v2424, %v2464
        %2471 = vrot.lane.b32.xlu0 %v2447, 124
        %v2472 = vpop.permute.xlu0 %2471
        %2473 = vrot.lane.b32.xlu0 %v2448, 124
        %v2474 = vpop.permute.xlu0 %2473
        %v2477 = vadd.f32 %v2437, %v2472
        %v2478 = vadd.f32 %v2438, %v2474
        %2481 = vrot.lane.b32.xlu0 %v2467, 2
        %v2482 = vpop.permute.xlu0 %2481
        %2483 = vrot.lane.b32.xlu0 %v2468, 2
        %v2484 = vpop.permute.xlu0 %2483
        %v2487 = vadd.f32 %v2457, %v2482
        %v2488 = vadd.f32 %v2458, %v2484
        %2491 = vrot.lane.b32.xlu0 %v2487, 126
        %v2492 = vpop.permute.xlu0 %2491
        %2493 = vrot.lane.b32.xlu0 %v2488, 126
        %v2494 = vpop.permute.xlu0 %2493
        %v2497 = vadd.f32 %v2477, %v2492
        %v2498 = vadd.f32 %v2478, %v2494
        %2501 = vrot.lane.b32.xlu0 %v2427, 124
        %v2502 = vpop.permute.xlu0 %2501
        %2503 = vrot.lane.b32.xlu0 %v2428, 124
        %v2504 = vpop.permute.xlu0 %2503
        %v2507 = vadd.f32 %v2497, %v2502
        %v2508 = vadd.f32 %v2498, %v2504
        %v2509 = vld [vmem:[%s1043] sm:$0xff]
        %v2510 = vld [vmem:[%s1043 + $0x8] sm:$0xff]
        %v2511 = vmul.f32 %v2509, %v2269
        %v2512 = vmul.f32 %v2510, %v2270
        %v2513 = vmul.f32 %v2509, %v2279
        %v2514 = vmul.f32 %v2510, %v2280
        %v2515 = vmul.f32 %v2509, %v2287
        %v2516 = vmul.f32 %v2510, %v2288
        %v2517 = vld [vmem:[%s1043 + $0x2] sm:$0xff]
        %v2518 = vld [vmem:[%s1043 + $0xa] sm:$0xff]
        %v2519 = vmul.f32 %v2517, %v2289
        %v2520 = vmul.f32 %v2518, %v2290
        %v2521 = vmul.f32 %v2517, %v2291
        %v2522 = vmul.f32 %v2518, %v2292
        %v2523 = vmul.f32 %v2517, %v2293
        %v2524 = vmul.f32 %v2518, %v2294
        %v2525 = vld [vmem:[%s1043 + $0x4] sm:$0xff]
        %v2526 = vld [vmem:[%s1043 + $0xc] sm:$0xff]
        %v2527 = vmul.f32 %v2525, %v2295
        %v2528 = vmul.f32 %v2526, %v2296
        %v2529 = vmul.f32 %v2525, %v2297
        %v2530 = vmul.f32 %v2526, %v2298
        %v2531 = vmul.f32 %v2525, %v2299
        %v2532 = vmul.f32 %v2526, %v2300
        %2535 = vrot.lane.b32.xlu0 %v2513, 126
        %v2536 = vpop.permute.xlu0 %2535
        %2537 = vrot.lane.b32.xlu0 %v2514, 126
        %v2538 = vpop.permute.xlu0 %2537
        %v2541 = vadd.f32 %v2511, %v2536
        %v2542 = vadd.f32 %v2512, %v2538
        %2545 = vrot.lane.b32.xlu0 %v2519, 4
        %v2546 = vpop.permute.xlu0 %2545
        %2547 = vrot.lane.b32.xlu0 %v2520, 4
        %v2548 = vpop.permute.xlu0 %2547
        %v2551 = vadd.f32 %v2515, %v2546
        %v2552 = vadd.f32 %v2516, %v2548
        %2555 = vrot.lane.b32.xlu0 %v2523, 126
        %v2556 = vpop.permute.xlu0 %2555
        %2557 = vrot.lane.b32.xlu0 %v2524, 126
        %v2558 = vpop.permute.xlu0 %2557
        %v2561 = vadd.f32 %v2521, %v2556
        %v2562 = vadd.f32 %v2522, %v2558
        %2565 = vrot.lane.b32.xlu0 %v2529, 126
        %v2566 = vpop.permute.xlu0 %2565
        %2567 = vrot.lane.b32.xlu0 %v2530, 126
        %v2568 = vpop.permute.xlu0 %2567
        %v2571 = vadd.f32 %v2527, %v2566
        %v2572 = vadd.f32 %v2528, %v2568
        %2575 = vrot.lane.b32.xlu0 %v2551, 124
        %v2576 = vpop.permute.xlu0 %2575
        %2577 = vrot.lane.b32.xlu0 %v2552, 124
        %v2578 = vpop.permute.xlu0 %2577
        %v2581 = vadd.f32 %v2541, %v2576
        %v2582 = vadd.f32 %v2542, %v2578
        %2585 = vrot.lane.b32.xlu0 %v2571, 2
        %v2586 = vpop.permute.xlu0 %2585
        %2587 = vrot.lane.b32.xlu0 %v2572, 2
        %v2588 = vpop.permute.xlu0 %2587
        %v2591 = vadd.f32 %v2561, %v2586
        %v2592 = vadd.f32 %v2562, %v2588
        %2595 = vrot.lane.b32.xlu0 %v2591, 126
        %v2596 = vpop.permute.xlu0 %2595
        %2597 = vrot.lane.b32.xlu0 %v2592, 126
        %v2598 = vpop.permute.xlu0 %2597
        %v2601 = vadd.f32 %v2581, %v2596
        %v2602 = vadd.f32 %v2582, %v2598
        %2605 = vrot.lane.b32.xlu0 %v2531, 124
        %v2606 = vpop.permute.xlu0 %2605
        %2607 = vrot.lane.b32.xlu0 %v2532, 124
        %v2608 = vpop.permute.xlu0 %2607
        %v2611 = vadd.f32 %v2601, %v2606
        %v2612 = vadd.f32 %v2602, %v2608
        %v2613 = vld [vmem:[%s1117] sm:$0xff]
        %v2614 = vld [vmem:[%s1117 + $0x8] sm:$0xff]
        %v2615 = vmul.f32 %v2613, %v2269
        %v2616 = vmul.f32 %v2614, %v2270
        %v2617 = vmul.f32 %v2613, %v2279
        %v2618 = vmul.f32 %v2614, %v2280
        %v2619 = vmul.f32 %v2613, %v2287
        %v2620 = vmul.f32 %v2614, %v2288
        %v2621 = vld [vmem:[%s1117 + $0x2] sm:$0xff]
        %v2622 = vld [vmem:[%s1117 + $0xa] sm:$0xff]
        %v2623 = vmul.f32 %v2621, %v2289
        %v2624 = vmul.f32 %v2622, %v2290
        %v2625 = vmul.f32 %v2621, %v2291
        %v2626 = vmul.f32 %v2622, %v2292
        %v2627 = vmul.f32 %v2621, %v2293
        %v2628 = vmul.f32 %v2622, %v2294
        %v2629 = vld [vmem:[%s1117 + $0x4] sm:$0xff]
        %v2630 = vld [vmem:[%s1117 + $0xc] sm:$0xff]
        %v2631 = vmul.f32 %v2629, %v2295
        %v2632 = vmul.f32 %v2630, %v2296
        %v2633 = vmul.f32 %v2629, %v2297
        %v2634 = vmul.f32 %v2630, %v2298
        %v2635 = vmul.f32 %v2629, %v2299
        %v2636 = vmul.f32 %v2630, %v2300
        %2639 = vrot.lane.b32.xlu0 %v2617, 126
        %v2640 = vpop.permute.xlu0 %2639
        %2641 = vrot.lane.b32.xlu0 %v2618, 126
        %v2642 = vpop.permute.xlu0 %2641
        %v2645 = vadd.f32 %v2615, %v2640
        %v2646 = vadd.f32 %v2616, %v2642
        %2649 = vrot.lane.b32.xlu0 %v2623, 4
        %v2650 = vpop.permute.xlu0 %2649
        %2651 = vrot.lane.b32.xlu0 %v2624, 4
        %v2652 = vpop.permute.xlu0 %2651
        %v2655 = vadd.f32 %v2619, %v2650
        %v2656 = vadd.f32 %v2620, %v2652
        %2659 = vrot.lane.b32.xlu0 %v2627, 126
        %v2660 = vpop.permute.xlu0 %2659
        %2661 = vrot.lane.b32.xlu0 %v2628, 126
        %v2662 = vpop.permute.xlu0 %2661
        %v2665 = vadd.f32 %v2625, %v2660
        %v2666 = vadd.f32 %v2626, %v2662
        %2669 = vrot.lane.b32.xlu0 %v2633, 126
        %v2670 = vpop.permute.xlu0 %2669
        %2671 = vrot.lane.b32.xlu0 %v2634, 126
        %v2672 = vpop.permute.xlu0 %2671
        %v2675 = vadd.f32 %v2631, %v2670
        %v2676 = vadd.f32 %v2632, %v2672
        %2679 = vrot.lane.b32.xlu0 %v2655, 124
        %v2680 = vpop.permute.xlu0 %2679
        %2681 = vrot.lane.b32.xlu0 %v2656, 124
        %v2682 = vpop.permute.xlu0 %2681
        %v2685 = vadd.f32 %v2645, %v2680
        %v2686 = vadd.f32 %v2646, %v2682
        %2689 = vrot.lane.b32.xlu0 %v2675, 2
        %v2690 = vpop.permute.xlu0 %2689
        %2691 = vrot.lane.b32.xlu0 %v2676, 2
        %v2692 = vpop.permute.xlu0 %2691
        %v2695 = vadd.f32 %v2665, %v2690
        %v2696 = vadd.f32 %v2666, %v2692
        %2699 = vrot.lane.b32.xlu0 %v2695, 126
        %v2700 = vpop.permute.xlu0 %2699
        %2701 = vrot.lane.b32.xlu0 %v2696, 126
        %v2702 = vpop.permute.xlu0 %2701
        %v2705 = vadd.f32 %v2685, %v2700
        %v2706 = vadd.f32 %v2686, %v2702
        %2709 = vrot.lane.b32.xlu0 %v2635, 124
        %v2710 = vpop.permute.xlu0 %2709
        %2711 = vrot.lane.b32.xlu0 %v2636, 124
        %v2712 = vpop.permute.xlu0 %2711
        %v2715 = vadd.f32 %v2705, %v2710
        %v2716 = vadd.f32 %v2706, %v2712
        %v2717 = vld [vmem:[%s1191] sm:$0xff]
        %v2718 = vld [vmem:[%s1191 + $0x8] sm:$0xff]
        %v2719 = vmul.f32 %v2717, %v2269
        %v2720 = vmul.f32 %v2718, %v2270
        %v2721 = vmul.f32 %v2717, %v2279
        %v2722 = vmul.f32 %v2718, %v2280
        %v2723 = vmul.f32 %v2717, %v2287
        %v2724 = vmul.f32 %v2718, %v2288
        %v2725 = vld [vmem:[%s1191 + $0x2] sm:$0xff]
        %v2726 = vld [vmem:[%s1191 + $0xa] sm:$0xff]
        %v2727 = vmul.f32 %v2725, %v2289
        %v2728 = vmul.f32 %v2726, %v2290
        %v2729 = vmul.f32 %v2725, %v2291
        %v2730 = vmul.f32 %v2726, %v2292
        %v2731 = vmul.f32 %v2725, %v2293
        %v2732 = vmul.f32 %v2726, %v2294
        %v2733 = vld [vmem:[%s1191 + $0x4] sm:$0xff]
        %v2734 = vld [vmem:[%s1191 + $0xc] sm:$0xff]
        %v2735 = vmul.f32 %v2733, %v2295
        %v2736 = vmul.f32 %v2734, %v2296
        %v2737 = vmul.f32 %v2733, %v2297
        %v2738 = vmul.f32 %v2734, %v2298
        %v2739 = vmul.f32 %v2733, %v2299
        %v2740 = vmul.f32 %v2734, %v2300
        %2743 = vrot.lane.b32.xlu0 %v2721, 126
        %v2744 = vpop.permute.xlu0 %2743
        %2745 = vrot.lane.b32.xlu0 %v2722, 126
        %v2746 = vpop.permute.xlu0 %2745
        %v2749 = vadd.f32 %v2719, %v2744
        %v2750 = vadd.f32 %v2720, %v2746
        %2753 = vrot.lane.b32.xlu0 %v2727, 4
        %v2754 = vpop.permute.xlu0 %2753
        %2755 = vrot.lane.b32.xlu0 %v2728, 4
        %v2756 = vpop.permute.xlu0 %2755
        %v2759 = vadd.f32 %v2723, %v2754
        %v2760 = vadd.f32 %v2724, %v2756
        %2763 = vrot.lane.b32.xlu0 %v2731, 126
        %v2764 = vpop.permute.xlu0 %2763
        %2765 = vrot.lane.b32.xlu0 %v2732, 126
        %v2766 = vpop.permute.xlu0 %2765
        %v2769 = vadd.f32 %v2729, %v2764
        %v2770 = vadd.f32 %v2730, %v2766
        %2773 = vrot.lane.b32.xlu0 %v2737, 126
        %v2774 = vpop.permute.xlu0 %2773
        %2775 = vrot.lane.b32.xlu0 %v2738, 126
        %v2776 = vpop.permute.xlu0 %2775
        %v2779 = vadd.f32 %v2735, %v2774
        %v2780 = vadd.f32 %v2736, %v2776
        %2783 = vrot.lane.b32.xlu0 %v2759, 124
        %v2784 = vpop.permute.xlu0 %2783
        %2785 = vrot.lane.b32.xlu0 %v2760, 124
        %v2786 = vpop.permute.xlu0 %2785
        %v2789 = vadd.f32 %v2749, %v2784
        %v2790 = vadd.f32 %v2750, %v2786
        %2793 = vrot.lane.b32.xlu0 %v2779, 2
        %v2794 = vpop.permute.xlu0 %2793
        %2795 = vrot.lane.b32.xlu0 %v2780, 2
        %v2796 = vpop.permute.xlu0 %2795
        %v2799 = vadd.f32 %v2769, %v2794
        %v2800 = vadd.f32 %v2770, %v2796
        %2803 = vrot.lane.b32.xlu0 %v2799, 126
        %v2804 = vpop.permute.xlu0 %2803
        %2805 = vrot.lane.b32.xlu0 %v2800, 126
        %v2806 = vpop.permute.xlu0 %2805
        %v2809 = vadd.f32 %v2789, %v2804
        %v2810 = vadd.f32 %v2790, %v2806
        %2813 = vrot.lane.b32.xlu0 %v2739, 124
        %v2814 = vpop.permute.xlu0 %2813
        %2815 = vrot.lane.b32.xlu0 %v2740, 124
        %v2816 = vpop.permute.xlu0 %2815
        %v2819 = vadd.f32 %v2809, %v2814
        %v2820 = vadd.f32 %v2810, %v2816
        %v2821 = vld [vmem:[%s1265] sm:$0xff]
        %v2822 = vld [vmem:[%s1265 + $0x8] sm:$0xff]
        %v2823 = vmul.f32 %v2821, %v2269
        %v2824 = vmul.f32 %v2822, %v2270
        %v2825 = vmul.f32 %v2821, %v2279
        %v2826 = vmul.f32 %v2822, %v2280
        %v2827 = vmul.f32 %v2821, %v2287
        %v2828 = vmul.f32 %v2822, %v2288
        %v2829 = vld [vmem:[%s1265 + $0x2] sm:$0xff]
        %v2830 = vld [vmem:[%s1265 + $0xa] sm:$0xff]
        %v2831 = vmul.f32 %v2829, %v2289
        %v2832 = vmul.f32 %v2830, %v2290
        %v2833 = vmul.f32 %v2829, %v2291
        %v2834 = vmul.f32 %v2830, %v2292
        %v2835 = vmul.f32 %v2829, %v2293
        %v2836 = vmul.f32 %v2830, %v2294
        %v2837 = vld [vmem:[%s1265 + $0x4] sm:$0xff]
        %v2838 = vld [vmem:[%s1265 + $0xc] sm:$0xff]
        %v2839 = vmul.f32 %v2837, %v2295
        %v2840 = vmul.f32 %v2838, %v2296
        %v2841 = vmul.f32 %v2837, %v2297
        %v2842 = vmul.f32 %v2838, %v2298
        %v2843 = vmul.f32 %v2837, %v2299
        %v2844 = vmul.f32 %v2838, %v2300
        %2847 = vrot.lane.b32.xlu0 %v2825, 126
        %v2848 = vpop.permute.xlu0 %2847
        %2849 = vrot.lane.b32.xlu0 %v2826, 126
        %v2850 = vpop.permute.xlu0 %2849
        %v2853 = vadd.f32 %v2823, %v2848
        %v2854 = vadd.f32 %v2824, %v2850
        %2857 = vrot.lane.b32.xlu0 %v2831, 4
        %v2858 = vpop.permute.xlu0 %2857
        %2859 = vrot.lane.b32.xlu0 %v2832, 4
        %v2860 = vpop.permute.xlu0 %2859
        %v2863 = vadd.f32 %v2827, %v2858
        %v2864 = vadd.f32 %v2828, %v2860
        %2867 = vrot.lane.b32.xlu0 %v2835, 126
        %v2868 = vpop.permute.xlu0 %2867
        %2869 = vrot.lane.b32.xlu0 %v2836, 126
        %v2870 = vpop.permute.xlu0 %2869
        %v2873 = vadd.f32 %v2833, %v2868
        %v2874 = vadd.f32 %v2834, %v2870
        %2877 = vrot.lane.b32.xlu0 %v2841, 126
        %v2878 = vpop.permute.xlu0 %2877
        %2879 = vrot.lane.b32.xlu0 %v2842, 126
        %v2880 = vpop.permute.xlu0 %2879
        %v2883 = vadd.f32 %v2839, %v2878
        %v2884 = vadd.f32 %v2840, %v2880
        %2887 = vrot.lane.b32.xlu0 %v2863, 124
        %v2888 = vpop.permute.xlu0 %2887
        %2889 = vrot.lane.b32.xlu0 %v2864, 124
        %v2890 = vpop.permute.xlu0 %2889
        %v2893 = vadd.f32 %v2853, %v2888
        %v2894 = vadd.f32 %v2854, %v2890
        %2897 = vrot.lane.b32.xlu0 %v2883, 2
        %v2898 = vpop.permute.xlu0 %2897
        %2899 = vrot.lane.b32.xlu0 %v2884, 2
        %v2900 = vpop.permute.xlu0 %2899
        %v2903 = vadd.f32 %v2873, %v2898
        %v2904 = vadd.f32 %v2874, %v2900
        %2907 = vrot.lane.b32.xlu0 %v2903, 126
        %v2908 = vpop.permute.xlu0 %2907
        %2909 = vrot.lane.b32.xlu0 %v2904, 126
        %v2910 = vpop.permute.xlu0 %2909
        %v2913 = vadd.f32 %v2893, %v2908
        %v2914 = vadd.f32 %v2894, %v2910
        %2917 = vrot.lane.b32.xlu0 %v2843, 124
        %v2918 = vpop.permute.xlu0 %2917
        %2919 = vrot.lane.b32.xlu0 %v2844, 124
        %v2920 = vpop.permute.xlu0 %2919
        %v2923 = vadd.f32 %v2913, %v2918
        %v2924 = vadd.f32 %v2914, %v2920
        %v2925 = vld [vmem:[%s1339] sm:$0xff]
        %v2926 = vld [vmem:[%s1339 + $0x8] sm:$0xff]
        %v2927 = vmul.f32 %v2925, %v2269
        %v2928 = vmul.f32 %v2926, %v2270
        %v2929 = vmul.f32 %v2925, %v2279
        %v2930 = vmul.f32 %v2926, %v2280
        %v2931 = vmul.f32 %v2925, %v2287
        %v2932 = vmul.f32 %v2926, %v2288
        %v2933 = vld [vmem:[%s1339 + $0x2] sm:$0xff]
        %v2934 = vld [vmem:[%s1339 + $0xa] sm:$0xff]
        %v2935 = vmul.f32 %v2933, %v2289
        %v2936 = vmul.f32 %v2934, %v2290
        %v2937 = vmul.f32 %v2933, %v2291
        %v2938 = vmul.f32 %v2934, %v2292
        %v2939 = vmul.f32 %v2933, %v2293
        %v2940 = vmul.f32 %v2934, %v2294
        %v2941 = vld [vmem:[%s1339 + $0x4] sm:$0xff]
        %v2942 = vld [vmem:[%s1339 + $0xc] sm:$0xff]
        %v2943 = vmul.f32 %v2941, %v2295
        %v2944 = vmul.f32 %v2942, %v2296
        %v2945 = vmul.f32 %v2941, %v2297
        %v2946 = vmul.f32 %v2942, %v2298
        %v2947 = vmul.f32 %v2941, %v2299
        %v2948 = vmul.f32 %v2942, %v2300
        %2951 = vrot.lane.b32.xlu0 %v2929, 126
        %v2952 = vpop.permute.xlu0 %2951
        %2953 = vrot.lane.b32.xlu0 %v2930, 126
        %v2954 = vpop.permute.xlu0 %2953
        %v2957 = vadd.f32 %v2927, %v2952
        %v2958 = vadd.f32 %v2928, %v2954
        %2961 = vrot.lane.b32.xlu0 %v2935, 4
        %v2962 = vpop.permute.xlu0 %2961
        %2963 = vrot.lane.b32.xlu0 %v2936, 4
        %v2964 = vpop.permute.xlu0 %2963
        %v2967 = vadd.f32 %v2931, %v2962
        %v2968 = vadd.f32 %v2932, %v2964
        %2971 = vrot.lane.b32.xlu0 %v2939, 126
        %v2972 = vpop.permute.xlu0 %2971
        %2973 = vrot.lane.b32.xlu0 %v2940, 126
        %v2974 = vpop.permute.xlu0 %2973
        %v2977 = vadd.f32 %v2937, %v2972
        %v2978 = vadd.f32 %v2938, %v2974
        %2981 = vrot.lane.b32.xlu0 %v2945, 126
        %v2982 = vpop.permute.xlu0 %2981
        %2983 = vrot.lane.b32.xlu0 %v2946, 126
        %v2984 = vpop.permute.xlu0 %2983
        %v2987 = vadd.f32 %v2943, %v2982
        %v2988 = vadd.f32 %v2944, %v2984
        %2991 = vrot.lane.b32.xlu0 %v2967, 124
        %v2992 = vpop.permute.xlu0 %2991
        %2993 = vrot.lane.b32.xlu0 %v2968, 124
        %v2994 = vpop.permute.xlu0 %2993
        %v2997 = vadd.f32 %v2957, %v2992
        %v2998 = vadd.f32 %v2958, %v2994
        %3001 = vrot.lane.b32.xlu0 %v2987, 2
        %v3002 = vpop.permute.xlu0 %3001
        %3003 = vrot.lane.b32.xlu0 %v2988, 2
        %v3004 = vpop.permute.xlu0 %3003
        %v3007 = vadd.f32 %v2977, %v3002
        %v3008 = vadd.f32 %v2978, %v3004
        %3011 = vrot.lane.b32.xlu0 %v3007, 126
        %v3012 = vpop.permute.xlu0 %3011
        %3013 = vrot.lane.b32.xlu0 %v3008, 126
        %v3014 = vpop.permute.xlu0 %3013
        %v3017 = vadd.f32 %v2997, %v3012
        %v3018 = vadd.f32 %v2998, %v3014
        %3021 = vrot.lane.b32.xlu0 %v2947, 124
        %v3022 = vpop.permute.xlu0 %3021
        %3023 = vrot.lane.b32.xlu0 %v2948, 124
        %v3024 = vpop.permute.xlu0 %3023
        %v3027 = vadd.f32 %v3017, %v3022
        %v3028 = vadd.f32 %v3018, %v3024
        %v3029 = vld [vmem:[%s1413] sm:$0xff]
        %v3030 = vld [vmem:[%s1413 + $0x8] sm:$0xff]
        %v3031 = vmul.f32 %v3029, %v2269
        %v3032 = vmul.f32 %v3030, %v2270
        %v3033 = vmul.f32 %v3029, %v2279
        %v3034 = vmul.f32 %v3030, %v2280
        %v3035 = vmul.f32 %v3029, %v2287
        %v3036 = vmul.f32 %v3030, %v2288
        %v3037 = vld [vmem:[%s1413 + $0x2] sm:$0xff]
        %v3038 = vld [vmem:[%s1413 + $0xa] sm:$0xff]
        %v3039 = vmul.f32 %v3037, %v2289
        %v3040 = vmul.f32 %v3038, %v2290
        %v3041 = vmul.f32 %v3037, %v2291
        %v3042 = vmul.f32 %v3038, %v2292
        %v3043 = vmul.f32 %v3037, %v2293
        %v3044 = vmul.f32 %v3038, %v2294
        %v3045 = vld [vmem:[%s1413 + $0x4] sm:$0xff]
        %v3046 = vld [vmem:[%s1413 + $0xc] sm:$0xff]
        %v3047 = vmul.f32 %v3045, %v2295
        %v3048 = vmul.f32 %v3046, %v2296
        %v3049 = vmul.f32 %v3045, %v2297
        %v3050 = vmul.f32 %v3046, %v2298
        %v3051 = vmul.f32 %v3045, %v2299
        %v3052 = vmul.f32 %v3046, %v2300
        %3055 = vrot.lane.b32.xlu0 %v3033, 126
        %v3056 = vpop.permute.xlu0 %3055
        %3057 = vrot.lane.b32.xlu0 %v3034, 126
        %v3058 = vpop.permute.xlu0 %3057
        %v3061 = vadd.f32 %v3031, %v3056
        %v3062 = vadd.f32 %v3032, %v3058
        %3065 = vrot.lane.b32.xlu0 %v3039, 4
        %v3066 = vpop.permute.xlu0 %3065
        %3067 = vrot.lane.b32.xlu0 %v3040, 4
        %v3068 = vpop.permute.xlu0 %3067
        %v3071 = vadd.f32 %v3035, %v3066
        %v3072 = vadd.f32 %v3036, %v3068
        %3075 = vrot.lane.b32.xlu0 %v3043, 126
        %v3076 = vpop.permute.xlu0 %3075
        %3077 = vrot.lane.b32.xlu0 %v3044, 126
        %v3078 = vpop.permute.xlu0 %3077
        %v3081 = vadd.f32 %v3041, %v3076
        %v3082 = vadd.f32 %v3042, %v3078
        %3085 = vrot.lane.b32.xlu0 %v3049, 126
        %v3086 = vpop.permute.xlu0 %3085
        %3087 = vrot.lane.b32.xlu0 %v3050, 126
        %v3088 = vpop.permute.xlu0 %3087
        %v3091 = vadd.f32 %v3047, %v3086
        %v3092 = vadd.f32 %v3048, %v3088
        %3095 = vrot.lane.b32.xlu0 %v3071, 124
        %v3096 = vpop.permute.xlu0 %3095
        %3097 = vrot.lane.b32.xlu0 %v3072, 124
        %v3098 = vpop.permute.xlu0 %3097
        %v3101 = vadd.f32 %v3061, %v3096
        %v3102 = vadd.f32 %v3062, %v3098
        %3105 = vrot.lane.b32.xlu0 %v3091, 2
        %v3106 = vpop.permute.xlu0 %3105
        %3107 = vrot.lane.b32.xlu0 %v3092, 2
        %v3108 = vpop.permute.xlu0 %3107
        %v3111 = vadd.f32 %v3081, %v3106
        %v3112 = vadd.f32 %v3082, %v3108
        %3115 = vrot.lane.b32.xlu0 %v3111, 126
        %v3116 = vpop.permute.xlu0 %3115
        %3117 = vrot.lane.b32.xlu0 %v3112, 126
        %v3118 = vpop.permute.xlu0 %3117
        %v3121 = vadd.f32 %v3101, %v3116
        %v3122 = vadd.f32 %v3102, %v3118
        %3125 = vrot.lane.b32.xlu0 %v3051, 124
        %v3126 = vpop.permute.xlu0 %3125
        %3127 = vrot.lane.b32.xlu0 %v3052, 124
        %v3128 = vpop.permute.xlu0 %3127
        %v3131 = vadd.f32 %v3121, %v3126
        %v3132 = vadd.f32 %v3122, %v3128
        %s3133 = sld [smem:[#allocation8]]
        %v3134 = vstv %s3133
        %v3135 = vmul.f32 %v3134, %v2403
        %v3136 = vmul.f32 %v3134, %v2404
        %s3137 = sld [smem:[#allocation8 + $0x80]]
        %v3138 = vstv %s3137
        %v3139 = vmul.f32 %v3138, %v2507
        %v3140 = vmul.f32 %v3138, %v2508
        %s3141 = sld [smem:[#allocation8 + $0x100]]
        %v3142 = vstv %s3141
        %v3143 = vmul.f32 %v3142, %v2611
        %v3144 = vmul.f32 %v3142, %v2612
        %s3145 = sld [smem:[#allocation8 + $0x180]]
        %v3146 = vstv %s3145
        %v3147 = vmul.f32 %v3146, %v2715
        %v3148 = vmul.f32 %v3146, %v2716
        %s3149 = sld [smem:[#allocation8 + $0x200]]
        %v3150 = vstv %s3149
        %v3151 = vmul.f32 %v3150, %v2819
        %v3152 = vmul.f32 %v3150, %v2820
        %s3153 = sld [smem:[#allocation8 + $0x280]]
        %v3154 = vstv %s3153
        %v3155 = vmul.f32 %v3154, %v2923
        %v3156 = vmul.f32 %v3154, %v2924
        %s3157 = sld [smem:[#allocation8 + $0x300]]
        %v3158 = vstv %s3157
        %v3159 = vmul.f32 %v3158, %v3027
        %v3160 = vmul.f32 %v3158, %v3028
        %s3161 = sld [smem:[#allocation8 + $0x380]]
        %v3162 = vstv %s3161
        %v3163 = vmul.f32 %v3162, %v3131
        %v3164 = vmul.f32 %v3162, %v3132
        %v3165 = vadd.f32 %v3135, %v3139
        %v3166 = vadd.f32 %v3136, %v3140
        %v3167 = vadd.f32 %v3143, %v3147
        %v3168 = vadd.f32 %v3144, %v3148
        %v3169 = vadd.f32 %v3151, %v3155
        %v3170 = vadd.f32 %v3152, %v3156
        %v3171 = vadd.f32 %v3159, %v3163
        %v3172 = vadd.f32 %v3160, %v3164
        %v3173 = vadd.f32 %v3165, %v3167
        %v3174 = vadd.f32 %v3166, %v3168
        %v3175 = vadd.f32 %v3169, %v3171
        %v3176 = vadd.f32 %v3170, %v3172
        %v3177 = vadd.f32 %v3173, %v3175
        %v3178 = vadd.f32 %v3174, %v3176
        %v3179 = vld [vmem:[%s186] sm:$0xff]
        %v3180 = vld [vmem:[%s186 + $0x8] sm:$0xff]
        %v3181 = vadd.f32 %v3177, %v3179
        %v3182 = vadd.f32 %v3178, %v3180
        %vm3183 = vcmask 130048
        %3184 = vst.msk [vmem:[%s217] sm:$0xff] %vm3183, %v3181
        %3185 = vst.msk [vmem:[%s217 + $0x8] sm:$0xff] %vm3183, %v3182
        %s3186 = sld [smem:[#allocation8 + $0x1]]
        %v3187 = vstv %s3186
        %v3188 = vmul.f32 %v3187, %v2403
        %v3189 = vmul.f32 %v3187, %v2404
        %s3190 = sld [smem:[#allocation8 + $0x81]]
        %v3191 = vstv %s3190
        %v3192 = vmul.f32 %v3191, %v2507
        %v3193 = vmul.f32 %v3191, %v2508
        %s3194 = sld [smem:[#allocation8 + $0x101]]
        %v3195 = vstv %s3194
        %v3196 = vmul.f32 %v3195, %v2611
        %v3197 = vmul.f32 %v3195, %v2612
        %s3198 = sld [smem:[#allocation8 + $0x181]]
        %v3199 = vstv %s3198
        %v3200 = vmul.f32 %v3199, %v2715
        %v3201 = vmul.f32 %v3199, %v2716
        %s3202 = sld [smem:[#allocation8 + $0x201]]
        %v3203 = vstv %s3202
        %v3204 = vmul.f32 %v3203, %v2819
        %v3205 = vmul.f32 %v3203, %v2820
        %s3206 = sld [smem:[#allocation8 + $0x281]]
        %v3207 = vstv %s3206
        %v3208 = vmul.f32 %v3207, %v2923
        %v3209 = vmul.f32 %v3207, %v2924
        %s3210 = sld [smem:[#allocation8 + $0x301]]
        %v3211 = vstv %s3210
        %v3212 = vmul.f32 %v3211, %v3027
        %v3213 = vmul.f32 %v3211, %v3028
        %s3214 = sld [smem:[#allocation8 + $0x381]]
        %v3215 = vstv %s3214
        %v3216 = vmul.f32 %v3215, %v3131
        %v3217 = vmul.f32 %v3215, %v3132
        %v3218 = vadd.f32 %v3188, %v3192
        %v3219 = vadd.f32 %v3189, %v3193
        %v3220 = vadd.f32 %v3196, %v3200
        %v3221 = vadd.f32 %v3197, %v3201
        %v3222 = vadd.f32 %v3204, %v3208
        %v3223 = vadd.f32 %v3205, %v3209
        %v3224 = vadd.f32 %v3212, %v3216
        %v3225 = vadd.f32 %v3213, %v3217
        %v3226 = vadd.f32 %v3218, %v3220
        %v3227 = vadd.f32 %v3219, %v3221
        %v3228 = vadd.f32 %v3222, %v3224
        %v3229 = vadd.f32 %v3223, %v3225
        %v3230 = vadd.f32 %v3226, %v3228
        %v3231 = vadd.f32 %v3227, %v3229
        %v3232 = vld [vmem:[%s220] sm:$0xff]
        %v3233 = vld [vmem:[%s220 + $0x8] sm:$0xff]
        %v3234 = vadd.f32 %v3230, %v3232
        %v3235 = vadd.f32 %v3231, %v3233
        %s3236 = scalar_lea.vmem %s217, 16 [#allocation10]
        %3237 = vst.msk [vmem:[%s3236] sm:$0xff] %vm3183, %v3234
        %3238 = vst.msk [vmem:[%s3236 + $0x8] sm:$0xff] %vm3183, %v3235
        %s3239 = sld [smem:[#allocation8 + $0x2]]
        %v3240 = vstv %s3239
        %v3241 = vmul.f32 %v3240, %v2403
        %v3242 = vmul.f32 %v3240, %v2404
        %s3243 = sld [smem:[#allocation8 + $0x82]]
        %v3244 = vstv %s3243
        %v3245 = vmul.f32 %v3244, %v2507
        %v3246 = vmul.f32 %v3244, %v2508
        %s3247 = sld [smem:[#allocation8 + $0x102]]
        %v3248 = vstv %s3247
        %v3249 = vmul.f32 %v3248, %v2611
        %v3250 = vmul.f32 %v3248, %v2612
        %s3251 = sld [smem:[#allocation8 + $0x182]]
        %v3252 = vstv %s3251
        %v3253 = vmul.f32 %v3252, %v2715
        %v3254 = vmul.f32 %v3252, %v2716
        %s3255 = sld [smem:[#allocation8 + $0x202]]
        %v3256 = vstv %s3255
        %v3257 = vmul.f32 %v3256, %v2819
        %v3258 = vmul.f32 %v3256, %v2820
        %s3259 = sld [smem:[#allocation8 + $0x282]]
        %v3260 = vstv %s3259
        %v3261 = vmul.f32 %v3260, %v2923
        %v3262 = vmul.f32 %v3260, %v2924
        %s3263 = sld [smem:[#allocation8 + $0x302]]
        %v3264 = vstv %s3263
        %v3265 = vmul.f32 %v3264, %v3027
        %v3266 = vmul.f32 %v3264, %v3028
        %s3267 = sld [smem:[#allocation8 + $0x382]]
        %v3268 = vstv %s3267
        %v3269 = vmul.f32 %v3268, %v3131
        %v3270 = vmul.f32 %v3268, %v3132
        %v3271 = vadd.f32 %v3241, %v3245
        %v3272 = vadd.f32 %v3242, %v3246
        %v3273 = vadd.f32 %v3249, %v3253
        %v3274 = vadd.f32 %v3250, %v3254
        %v3275 = vadd.f32 %v3257, %v3261
        %v3276 = vadd.f32 %v3258, %v3262
        %v3277 = vadd.f32 %v3265, %v3269
        %v3278 = vadd.f32 %v3266, %v3270
        %v3279 = vadd.f32 %v3271, %v3273
        %v3280 = vadd.f32 %v3272, %v3274
        %v3281 = vadd.f32 %v3275, %v3277
        %v3282 = vadd.f32 %v3276, %v3278
        %v3283 = vadd.f32 %v3279, %v3281
        %v3284 = vadd.f32 %v3280, %v3282
        %v3285 = vld [vmem:[%s223] sm:$0xff]
        %v3286 = vld [vmem:[%s223 + $0x8] sm:$0xff]
        %v3287 = vadd.f32 %v3283, %v3285
        %v3288 = vadd.f32 %v3284, %v3286
        %s3289 = scalar_lea.vmem %s217, 32 [#allocation10]
        %3290 = vst.msk [vmem:[%s3289] sm:$0xff] %vm3183, %v3287
        %3291 = vst.msk [vmem:[%s3289 + $0x8] sm:$0xff] %vm3183, %v3288
        %s3292 = sld [smem:[#allocation8 + $0x3]]
        %v3293 = vstv %s3292
        %v3294 = vmul.f32 %v3293, %v2403
        %v3295 = vmul.f32 %v3293, %v2404
        %s3296 = sld [smem:[#allocation8 + $0x83]]
        %v3297 = vstv %s3296
        %v3298 = vmul.f32 %v3297, %v2507
        %v3299 = vmul.f32 %v3297, %v2508
        %s3300 = sld [smem:[#allocation8 + $0x103]]
        %v3301 = vstv %s3300
        %v3302 = vmul.f32 %v3301, %v2611
        %v3303 = vmul.f32 %v3301, %v2612
        %s3304 = sld [smem:[#allocation8 + $0x183]]
        %v3305 = vstv %s3304
        %v3306 = vmul.f32 %v3305, %v2715
        %v3307 = vmul.f32 %v3305, %v2716
        %s3308 = sld [smem:[#allocation8 + $0x203]]
        %v3309 = vstv %s3308
        %v3310 = vmul.f32 %v3309, %v2819
        %v3311 = vmul.f32 %v3309, %v2820
        %s3312 = sld [smem:[#allocation8 + $0x283]]
        %v3313 = vstv %s3312
        %v3314 = vmul.f32 %v3313, %v2923
        %v3315 = vmul.f32 %v3313, %v2924
        %s3316 = sld [smem:[#allocation8 + $0x303]]
        %v3317 = vstv %s3316
        %v3318 = vmul.f32 %v3317, %v3027
        %v3319 = vmul.f32 %v3317, %v3028
        %s3320 = sld [smem:[#allocation8 + $0x383]]
        %v3321 = vstv %s3320
        %v3322 = vmul.f32 %v3321, %v3131
        %v3323 = vmul.f32 %v3321, %v3132
        %v3324 = vadd.f32 %v3294, %v3298
        %v3325 = vadd.f32 %v3295, %v3299
        %v3326 = vadd.f32 %v3302, %v3306
        %v3327 = vadd.f32 %v3303, %v3307
        %v3328 = vadd.f32 %v3310, %v3314
        %v3329 = vadd.f32 %v3311, %v3315
        %v3330 = vadd.f32 %v3318, %v3322
        %v3331 = vadd.f32 %v3319, %v3323
        %v3332 = vadd.f32 %v3324, %v3326
        %v3333 = vadd.f32 %v3325, %v3327
        %v3334 = vadd.f32 %v3328, %v3330
        %v3335 = vadd.f32 %v3329, %v3331
        %v3336 = vadd.f32 %v3332, %v3334
        %v3337 = vadd.f32 %v3333, %v3335
        %v3338 = vld [vmem:[%s226] sm:$0xff]
        %v3339 = vld [vmem:[%s226 + $0x8] sm:$0xff]
        %v3340 = vadd.f32 %v3336, %v3338
        %v3341 = vadd.f32 %v3337, %v3339
        %s3342 = scalar_lea.vmem %s217, 48 [#allocation10]
        %3343 = vst.msk [vmem:[%s3342] sm:$0xff] %vm3183, %v3340
        %3344 = vst.msk [vmem:[%s3342 + $0x8] sm:$0xff] %vm3183, %v3341
        %s3345 = sand.u32 %s98, 1
        %s3346 = scalar_lea.sflag [#allocation5], %s3345
        %s3347 = sand.u32 %s98, 1
        %s3348 = smul.addr %s3347, 64
        %s3349 = scalar_lea.vmem [#allocation10], %s3348
        // Predicated region
        $region45: #{nonlocal_dilation_pallas.1} parent=31 // pred_check
          %p3350 = pneg %p108
        $region46: #{nonlocal_dilation_pallas.1} parent=31 // pred_check_branch
          %3352 = sbr.rel (%p3350) target = $region48
        $region47: #{nonlocal_dilation_pallas.1} parent=31 // pred_region
          %s3354 = ssub.s32 1024, 1024
          %3355 = vsyncadd %s3346, %s3354
          %s3356 = smul.addr %s22, 8
          %s3357 = smul.addr %s3356, 128
          %s3358 = scalar_lea.hbm %s3, %s3357
          %s3359 = sshll.u32 %s3349, 4
          %s3360 = int_to_ptr.vmem [resolvable:$true] %s3359
          %3365 = dma.vmem_to_hbm [thread:$0]  %s3360, 1024, %s3358, %s3346, 128, 128, 8
        $region48: #{nonlocal_dilation_pallas.1} parent=31 // pred_fallthru
          _
      $region32: #{nonlocal_dilation_pallas.1} parent=5 // pred_fallthru
        _
      %p3366 = scmp.le.s32.totalorder 2, %s17
      // Predicated region
      $region49: #{nonlocal_dilation_pallas.1} parent=5 // pred_check
        %p3367 = pneg %p3366
      $region50: #{nonlocal_dilation_pallas.1} parent=5 // pred_check_branch
        %3369 = sbr.rel (%p3367) target = $region52
      $region51: #{nonlocal_dilation_pallas.1} parent=5 // pred_region
        %s3370 = ssub.s32 %s17, 2
        // Predicated region
        $region53: #{nonlocal_dilation_pallas.1} parent=51 // pred_check
          %p3371 = pneg %p114
        $region54: #{nonlocal_dilation_pallas.1} parent=51 // pred_check_branch
          %3373 = sbr.rel (%p3371) target = $region56
        $region55: #{nonlocal_dilation_pallas.1} parent=51 // pred_region
          %s3374 = sand.u32 %s99, 1
          %s3375 = scalar_lea.sflag [#allocation5], %s3374
          %s3376 = sand.u32 %s99, 1
          %s3377 = smul.addr %s3376, 64
          %s3378 = scalar_lea.vmem [#allocation10], %s3377
          %3379 = dma.done %s3375, 1024
        $region56: #{nonlocal_dilation_pallas.1} parent=51 // pred_fallthru
          _
      $region52: #{nonlocal_dilation_pallas.1} parent=5 // pred_fallthru
        _
    $region6: #{nonlocal_dilation_pallas.1} parent=1 // loop_footer
      %s21 = sadd.s32 1, %s17
    $region7: #{nonlocal_dilation_pallas.1} parent=1 // loop_footer_branch
      %16 = sbr.rel target = $region3
    $region8: #{nonlocal_dilation_pallas.1} parent=1 // loop_exit
      _
    %3380 = vsyncpa [#allocation4], 1
    %s3381 = scalar_lea.sflag [#allocation4], 1
    %3382 = vsyncpa %s3381, 1
    %3383 = vsyncpa [#allocation5], 1
    %s3384 = scalar_lea.sflag [#allocation5], 1
    %3385 = vsyncpa %s3384, 1
    %3386 = vsyncpa [#allocation6], 1
    %s3387 = scalar_lea.sflag [#allocation6], 1
    %3388 = vsyncpa %s3387, 1
    %3389 = vsyncpa [#allocation9], 1

</llo_original>
